<compile_context>
chip_gen: v6e
topology: v6e:2x2x1
jax: 0.10.0
libtpu: 0.0.40
codegen_flags: <defaults>
</compile_context>

<pallas_src>
import functools
import math

import jax
import jax.numpy as jnp
from jax.experimental import pallas as pl
from jax.experimental.pallas import tpu as pltpu

LATENT_PAD = 128   # lane-dense latent width (mu and logvar each get a full vreg column)
HIDDEN_PAD = 512   # hidden width padded 400 -> 512 (zero-padded, exact)


def _vae_kernel(x_ref, eps_ref,
                w1_ref, b1_ref,
                w2122_ref, b2122_ref,
                w3_ref, b3_ref,
                w4_ref, b4_ref,
                recon_ref, mulv_ref,
                *, bf16_sigmoid, latent_pad):
    x = x_ref[...]          # (tm, 784)  bf16 (streamed)
    eps = eps_ref[...]      # (tm, 128)  f32, zero in padded latent lanes

    # encoder: fc1 + relu  (bf16 MXU inputs, f32 accumulation)
    h1 = jnp.dot(x, w1_ref[...], preferred_element_type=jnp.float32) + b1_ref[...]
    h1 = jnp.maximum(h1, 0.0)                                   # (tm, 512)

    # fused fc21 || fc22 head -> lane-dense packed (tm, 256) = [mu |0| logvar |0]
    mulv = jnp.dot(h1.astype(w2122_ref.dtype), w2122_ref[...],
                   preferred_element_type=jnp.float32) + b2122_ref[...]
    mu_p = mulv[:, :latent_pad]        # vreg column 0  (free split)
    logvar_p = mulv[:, latent_pad:]    # vreg column 1  (free split)

    # reparameterize in f32 on VPU/EUP: z = mu + eps * exp(0.5 * logvar)
    # (padded lanes: mu=0, logvar=0 -> std=1, eps=0 -> z=0; fc3 pad rows are 0)
    std = jnp.exp(0.5 * logvar_p)
    z = mu_p + eps * std                                        # (tm, 128)

    # decoder: fc3 + relu
    h3 = jnp.dot(z.astype(w3_ref.dtype), w3_ref[...],
                 preferred_element_type=jnp.float32) + b3_ref[...]
    h3 = jnp.maximum(h3, 0.0)                                   # (tm, 512)

    # fc4 + sigmoid
    logits = jnp.dot(h3.astype(w4_ref.dtype), w4_ref[...],
                     preferred_element_type=jnp.float32) + b4_ref[...]
    if bf16_sigmoid:
        # v6e/v7x: EUP has a bf16 datapath -> ~2x transcendental throughput.
        recon = jax.nn.sigmoid(logits.astype(jnp.bfloat16))
    else:
        # v5e (no bf16 VPU/EUP): keep the elementwise path in f32.
        recon = jax.nn.sigmoid(logits)

    recon_ref[...] = recon.astype(recon_ref.dtype)   # bf16, lane-dense 784
    mulv_ref[...] = mulv                             # f32, lane-dense 256


def _cdiv(a, b):
    return -(-a // b)


def _round_up(n, m):
    return ((n + m - 1) // m) * m


@functools.partial(jax.jit,
                   static_argnames=("latent_dim", "block_rows", "bf16_sigmoid"))
def vae_forward(x, eps, params, *, latent_dim, block_rows=512, bf16_sigmoid=False):
    """x: (B, 1, 28, 28) (or anything whose trailing dims flatten to 784).

    eps: (B, latent_dim) standard-normal noise (torch.randn_like equivalent,
    passed in so the kernel is deterministic).
    """
    B = x.shape[0]
    x_flat = x.reshape(B, 784).astype(jnp.bfloat16)   # bf16 activation stream
    eps = eps.astype(jnp.float32)

    (w1, b1, w2122, b2122, w3, b3, w4, b4) = params
    L = w3.shape[0]          # padded latent width (128)
    d2 = w2122.shape[1]      # 2 * L (256)
    assert latent_dim <= L

    # Tile/grid choice:
    #  * n_tiles >= 2 and even so the "parallel" batch axis shards across both
    #    v7x TensorCores (grid=(1,) would idle the second TC).
    #  * tm derived from n_tiles (not the other way round) bounds per-tile
    #    batch padding to <16 rows.
    #  * tm is a multiple of 16 (bf16 sublane packing for the x/recon blocks).
    n_tiles = max(2, _cdiv(B, block_rows))
    n_tiles += n_tiles % 2
    tm = _round_up(_cdiv(B, n_tiles), 16)
    Bp = n_tiles * tm

    if Bp != B:
        x_flat = jnp.pad(x_flat, ((0, Bp - B), (0, 0)))
    # eps padded to a lane-dense (Bp, 128) block; padded lanes/rows are zero.
    eps_p = jnp.zeros((Bp, L), jnp.float32).at[:B, :latent_dim].set(eps)

    def row_spec(cols):
        return pl.BlockSpec((tm, cols), lambda i: (i, 0))

    def resident_spec(arr):
        # Full-array block, constant block index -> DMA'd once, stays in VMEM.
        return pl.BlockSpec(arr.shape, lambda i: (0, 0))

    kernel = functools.partial(_vae_kernel,
                               bf16_sigmoid=bf16_sigmoid,
                               latent_pad=L)

    recon, mulv = pl.pallas_call(
        kernel,
        out_shape=(
            jax.ShapeDtypeStruct((Bp, 784), jnp.bfloat16),   # recon (bf16 stream)
            jax.ShapeDtypeStruct((Bp, d2), jnp.float32),     # packed [mu|0|logvar|0]
        ),
        grid_spec=pltpu.PrefetchScalarGridSpec(
            num_scalar_prefetch=0,
            grid=(n_tiles,),
            in_specs=[
                row_spec(784),            # x (bf16)
                row_spec(L),              # eps (f32, lane-dense 128)
                resident_spec(w1), resident_spec(b1),
                resident_spec(w2122), resident_spec(b2122),
                resident_spec(w3), resident_spec(b3),
                resident_spec(w4), resident_spec(b4),
            ],
            out_specs=[row_spec(784), row_spec(d2)],
        ),
        compiler_params=pltpu.CompilerParams(
            dimension_semantics=("parallel",),   # batch axis shards across TCs on v7x
            vmem_limit_bytes=32 << 20,           # well below v7x 64 MiB physical
        ),
    )(x_flat, eps_p, w1, b1, w2122, b2122, w3, b3, w4, b4)

    recon = recon[:B]
    mu = mulv[:B, :latent_dim]
    logvar = mulv[:B, L:L + latent_dim]
    return recon, mu, logvar


def init_params(key, latent_dim, weights_dtype=jnp.bfloat16,
                hidden_pad=HIDDEN_PAD, latent_pad=LATENT_PAD):
    """PyTorch nn.Linear-style init (U[-1/sqrt(fan_in), +1/sqrt(fan_in)]).

    Weights stored as (in_features, out_features) in bf16 (halves resident
    weight bytes), biases in f32 as (1, out).  Layout padding (all exact):
      * hidden 400 -> hidden_pad (zero extra fc1 out-cols / fc21,fc22,fc4 in-rows)
      * fc21/fc22 fused into one (hidden_pad, 2*latent_pad) weight with mu in
        lanes [0, latent_dim) and logvar in lanes [latent_pad, latent_pad+dim)
      * fc3 takes the 128-lane padded latent (zero rows beyond latent_dim)
    """
    assert latent_dim <= latent_pad

    def linear(k, fan_in, fan_out):
        kw, kb = jax.random.split(k)
        bound = 1.0 / math.sqrt(fan_in)
        w = jax.random.uniform(kw, (fan_in, fan_out), jnp.float32, -bound, bound)
        b = jax.random.uniform(kb, (1, fan_out), jnp.float32, -bound, bound)
        return w, b

    k1, k21, k22, k3, k4 = jax.random.split(key, 5)
    w1, b1 = linear(k1, 784, 400)
    w21, b21 = linear(k21, 400, latent_dim)
    w22, b22 = linear(k22, 400, latent_dim)
    w3, b3 = linear(k3, latent_dim, 400)
    w4, b4 = linear(k4, 400, 784)

    H, L = hidden_pad, latent_pad

    w1p = jnp.zeros((784, H), jnp.float32).at[:, :400].set(w1)
    b1p = jnp.zeros((1, H), jnp.float32).at[:, :400].set(b1)

    w2122 = jnp.zeros((H, 2 * L), jnp.float32)
    w2122 = w2122.at[:400, :latent_dim].set(w21)
    w2122 = w2122.at[:400, L:L + latent_dim].set(w22)
    b2122 = jnp.zeros((1, 2 * L), jnp.float32)
    b2122 = b2122.at[:, :latent_dim].set(b21)
    b2122 = b2122.at[:, L:L + latent_dim].set(b22)

    w3p = jnp.zeros((L, H), jnp.float32).at[:latent_dim, :400].set(w3)
    b3p = jnp.zeros((1, H), jnp.float32).at[:, :400].set(b3)

    w4p = jnp.zeros((H, 784), jnp.float32).at[:400, :].set(w4)
    b4p = b4

    c = lambda w: w.astype(weights_dtype)
    return (c(w1p), b1p, c(w2122), b2122, c(w3p), b3p, c(w4p), b4p)


def reference_forward(x, eps, params, latent_dim,
                      latent_pad=LATENT_PAD, bf16_sigmoid=False):
    """Pure-JAX reference with the same bf16-weight / f32-accumulate recipe."""
    (w1, b1, w2122, b2122, w3, b3, w4, b4) = params
    B = x.shape[0]
    xf = x.reshape(B, 784).astype(jnp.bfloat16)

    def mm(a, w):
        return jnp.dot(a.astype(w.dtype), w, preferred_element_type=jnp.float32)

    h1 = jax.nn.relu(mm(xf, w1) + b1)
    mulv = mm(h1, w2122) + b2122
    mu = mulv[:, :latent_dim]
    logvar = mulv[:, latent_pad:latent_pad + latent_dim]

    eps_p = jnp.zeros((B, latent_pad), jnp.float32).at[:, :latent_dim].set(eps)
    z = mulv[:, :latent_pad] + eps_p * jnp.exp(0.5 * mulv[:, latent_pad:])

    h3 = jax.nn.relu(mm(z, w3) + b3)
    logits = mm(h3, w4) + b4
    if bf16_sigmoid:
        recon = jax.nn.sigmoid(logits.astype(jnp.bfloat16))
    else:
        recon = jax.nn.sigmoid(logits)
    return recon.astype(jnp.bfloat16), mu, logvar


def _default_bf16_sigmoid():
    # bf16 EUP exists on v6e / v7x; v5e (and older) have no bf16 VPU/EUP.
    try:
        kind = jax.devices()[0].device_kind.lower()
    except Exception:
        return False
    if "v5" in kind:
        return False
    return any(tag in kind for tag in ("v6", "v7", "7x"))


if __name__ == "__main__":
    LATENT_DIM = 32
    BATCH = 2

    key = jax.random.PRNGKey(0)
    k_params, k_x, k_eps = jax.random.split(key, 3)

    params = init_params(k_params, LATENT_DIM)

    # MNIST-style input (N, C, H, W) = (2, 1, 28, 28); forward flattens to (2, 784).
    x = jax.random.uniform(k_x, (BATCH, 1, 28, 28), jnp.float32)
    # torch.randn_like(std) equivalent, deterministic and passed in.
    eps = jax.random.normal(k_eps, (BATCH, LATENT_DIM), jnp.float32)

    bf16_sig = _default_bf16_sigmoid()

    recon, mu, logvar = vae_forward(x, eps, params, latent_dim=LATENT_DIM,
                                    bf16_sigmoid=bf16_sig)
    jax.block_until_ready((recon, mu, logvar))

    r_ref, m_ref, lv_ref = reference_forward(x, eps, params, LATENT_DIM,
                                             bf16_sigmoid=bf16_sig)
    assert recon.shape == (BATCH, 784)
    assert mu.shape == (BATCH, LATENT_DIM)
    assert logvar.shape == (BATCH, LATENT_DIM)
    # bf16 matmul inputs + bf16 recon output (same recipe on both paths):
    # relaxed tolerances (recon allows ~1 bf16 ulp of divergence).
    assert jnp.allclose(recon.astype(jnp.float32), r_ref.astype(jnp.float32),
                        atol=1e-2, rtol=1e-2)
    assert jnp.allclose(mu, m_ref, atol=5e-3, rtol=5e-3)
    assert jnp.allclose(logvar, lv_ref, atol=5e-3, rtol=5e-3)

    print("KERNEL_OK")
</pallas_src>

<mosaic_0001>
module attributes {stable_mosaic.version = 11 : i64} {
  func.func @_vae_kernel(%arg0: i32, %arg1: memref<16x784xbf16, #tpu.memory_space<vmem>>, %arg2: memref<16x128xf32, #tpu.memory_space<vmem>>, %arg3: memref<784x512xbf16, #tpu.memory_space<vmem>>, %arg4: memref<1x512xf32, #tpu.memory_space<vmem>>, %arg5: memref<512x256xbf16, #tpu.memory_space<vmem>>, %arg6: memref<1x256xf32, #tpu.memory_space<vmem>>, %arg7: memref<128x512xbf16, #tpu.memory_space<vmem>>, %arg8: memref<1x512xf32, #tpu.memory_space<vmem>>, %arg9: memref<512x784xbf16, #tpu.memory_space<vmem>>, %arg10: memref<1x784xf32, #tpu.memory_space<vmem>>, %arg11: memref<16x784xbf16, #tpu.memory_space<vmem>>, %arg12: memref<16x256xf32, #tpu.memory_space<vmem>>) attributes {dimension_semantics = [#tpu.dimension_semantics<parallel>], iteration_bounds = array<i64: 2>, scalar_prefetch = 0 : i64, scratch_operands = 0 : i64, tpu.core_type = #tpu.core_type<tc>, window_params = [{transform_indices = @transform_0, window_bounds = array<i64: 16, 784>}, {transform_indices = @transform_1, window_bounds = array<i64: 16, 128>}, {pipeline_mode = #tpu.pipeline_mode<synchronous>, transform_indices = @transform_2, window_bounds = array<i64: 784, 512>}, {pipeline_mode = #tpu.pipeline_mode<synchronous>, transform_indices = @transform_3, window_bounds = array<i64: 1, 512>}, {pipeline_mode = #tpu.pipeline_mode<synchronous>, transform_indices = @transform_4, window_bounds = array<i64: 512, 256>}, {pipeline_mode = #tpu.pipeline_mode<synchronous>, transform_indices = @transform_5, window_bounds = array<i64: 1, 256>}, {pipeline_mode = #tpu.pipeline_mode<synchronous>, transform_indices = @transform_6, window_bounds = array<i64: 128, 512>}, {pipeline_mode = #tpu.pipeline_mode<synchronous>, transform_indices = @transform_7, window_bounds = array<i64: 1, 512>}, {pipeline_mode = #tpu.pipeline_mode<synchronous>, transform_indices = @transform_8, window_bounds = array<i64: 512, 784>}, {pipeline_mode = #tpu.pipeline_mode<synchronous>, transform_indices = @transform_9, window_bounds = array<i64: 1, 784>}, {transform_indices = @transform_10, window_bounds = array<i64: 16, 784>}, {transform_indices = @transform_11, window_bounds = array<i64: 16, 256>}]} {
    %c0 = arith.constant 0 : index
    %c0_0 = arith.constant 0 : index
    %0 = vector.load %arg1[%c0, %c0_0] : memref<16x784xbf16, #tpu.memory_space<vmem>>, vector<16x784xbf16>
    %c0_1 = arith.constant 0 : index
    %c0_2 = arith.constant 0 : index
    %1 = vector.load %arg2[%c0_1, %c0_2] : memref<16x128xf32, #tpu.memory_space<vmem>>, vector<16x128xf32>
    %c0_3 = arith.constant 0 : index
    %c0_4 = arith.constant 0 : index
    %2 = vector.load %arg3[%c0_3, %c0_4] : memref<784x512xbf16, #tpu.memory_space<vmem>>, vector<784x512xbf16>
    %cst = arith.constant dense<0.000000e+00> : vector<16x512xf32>
    %3 = tpu.matmul %0, %2, %cst {dimension_numbers = #tpu.dot_dimension_numbers<[1], [0], [0], [1], [0, 0, 1, 1], [], []>} : vector<16x784xbf16>, vector<784x512xbf16>, vector<16x512xf32> -> vector<16x512xf32>
    %c0_5 = arith.constant 0 : index
    %c0_6 = arith.constant 0 : index
    %4 = vector.load %arg4[%c0_5, %c0_6] : memref<1x512xf32, #tpu.memory_space<vmem>>, vector<1x512xf32>
    %5 = vector.broadcast %4 : vector<1x512xf32> to vector<16x512xf32>
    %6 = arith.addf %3, %5 : vector<16x512xf32>
    %cst_7 = arith.constant 0.000000e+00 : f32
    %7 = vector.broadcast %cst_7 : f32 to vector<16x512xf32>
    %8 = arith.maximumf %6, %7 : vector<16x512xf32>
    %9 = arith.truncf %8 : vector<16x512xf32> to vector<16x512xbf16>
    %c0_8 = arith.constant 0 : index
    %c0_9 = arith.constant 0 : index
    %10 = vector.load %arg5[%c0_8, %c0_9] : memref<512x256xbf16, #tpu.memory_space<vmem>>, vector<512x256xbf16>
    %cst_10 = arith.constant dense<0.000000e+00> : vector<16x256xf32>
    %11 = tpu.matmul %9, %10, %cst_10 {dimension_numbers = #tpu.dot_dimension_numbers<[1], [0], [0], [1], [0, 0, 1, 1], [], []>} : vector<16x512xbf16>, vector<512x256xbf16>, vector<16x256xf32> -> vector<16x256xf32>
    %c0_11 = arith.constant 0 : index
    %c0_12 = arith.constant 0 : index
    %12 = vector.load %arg6[%c0_11, %c0_12] : memref<1x256xf32, #tpu.memory_space<vmem>>, vector<1x256xf32>
    %13 = vector.broadcast %12 : vector<1x256xf32> to vector<16x256xf32>
    %14 = arith.addf %11, %13 : vector<16x256xf32>
    %15 = vector.extract_strided_slice %14 {offsets = [0, 0], sizes = [16, 128], strides = [1, 1]} : vector<16x256xf32> to vector<16x128xf32>
    %16 = vector.extract_strided_slice %14 {offsets = [0, 128], sizes = [16, 128], strides = [1, 1]} : vector<16x256xf32> to vector<16x128xf32>
    %cst_13 = arith.constant 5.000000e-01 : f32
    %17 = vector.broadcast %cst_13 : f32 to vector<16x128xf32>
    %18 = arith.mulf %17, %16 : vector<16x128xf32>
    %19 = math.exp %18 : vector<16x128xf32>
    %20 = arith.mulf %1, %19 : vector<16x128xf32>
    %21 = arith.addf %15, %20 : vector<16x128xf32>
    %22 = arith.truncf %21 : vector<16x128xf32> to vector<16x128xbf16>
    %c0_14 = arith.constant 0 : index
    %c0_15 = arith.constant 0 : index
    %23 = vector.load %arg7[%c0_14, %c0_15] : memref<128x512xbf16, #tpu.memory_space<vmem>>, vector<128x512xbf16>
    %cst_16 = arith.constant dense<0.000000e+00> : vector<16x512xf32>
    %24 = tpu.matmul %22, %23, %cst_16 {dimension_numbers = #tpu.dot_dimension_numbers<[1], [0], [0], [1], [0, 0, 1, 1], [], []>} : vector<16x128xbf16>, vector<128x512xbf16>, vector<16x512xf32> -> vector<16x512xf32>
    %c0_17 = arith.constant 0 : index
    %c0_18 = arith.constant 0 : index
    %25 = vector.load %arg8[%c0_17, %c0_18] : memref<1x512xf32, #tpu.memory_space<vmem>>, vector<1x512xf32>
    %26 = vector.broadcast %25 : vector<1x512xf32> to vector<16x512xf32>
    %27 = arith.addf %24, %26 : vector<16x512xf32>
    %cst_19 = arith.constant 0.000000e+00 : f32
    %28 = vector.broadcast %cst_19 : f32 to vector<16x512xf32>
    %29 = arith.maximumf %27, %28 : vector<16x512xf32>
    %30 = arith.truncf %29 : vector<16x512xf32> to vector<16x512xbf16>
    %c0_20 = arith.constant 0 : index
    %c0_21 = arith.constant 0 : index
    %31 = vector.load %arg9[%c0_20, %c0_21] : memref<512x784xbf16, #tpu.memory_space<vmem>>, vector<512x784xbf16>
    %cst_22 = arith.constant dense<0.000000e+00> : vector<16x784xf32>
    %32 = tpu.matmul %30, %31, %cst_22 {dimension_numbers = #tpu.dot_dimension_numbers<[1], [0], [0], [1], [0, 0, 1, 1], [], []>} : vector<16x512xbf16>, vector<512x784xbf16>, vector<16x784xf32> -> vector<16x784xf32>
    %c0_23 = arith.constant 0 : index
    %c0_24 = arith.constant 0 : index
    %33 = vector.load %arg10[%c0_23, %c0_24] : memref<1x784xf32, #tpu.memory_space<vmem>>, vector<1x784xf32>
    %34 = vector.broadcast %33 : vector<1x784xf32> to vector<16x784xf32>
    %35 = arith.addf %32, %34 : vector<16x784xf32>
    %36 = arith.negf %35 : vector<16x784xf32>
    %37 = math.exp %36 : vector<16x784xf32>
    %cst_25 = arith.constant 1.000000e+00 : f32
    %38 = vector.broadcast %cst_25 : f32 to vector<16x784xf32>
    %39 = arith.addf %38, %37 : vector<16x784xf32>
    %40 = arith.divf %38, %39 : vector<16x784xf32>
    %41 = arith.truncf %40 : vector<16x784xf32> to vector<16x784xbf16>
    %c0_26 = arith.constant 0 : index
    %c0_27 = arith.constant 0 : index
    %42 = vector.load %arg11[%c0_26, %c0_27] : memref<16x784xbf16, #tpu.memory_space<vmem>>, vector<16x784xbf16>
    tpu.vector_store %arg11[%c0_26, %c0_27], %41 {strides = array<i32>} : memref<16x784xbf16, #tpu.memory_space<vmem>>, vector<16x784xbf16>,
    %c0_28 = arith.constant 0 : index
    %c0_29 = arith.constant 0 : index
    %43 = vector.load %arg12[%c0_28, %c0_29] : memref<16x256xf32, #tpu.memory_space<vmem>>, vector<16x256xf32>
    tpu.vector_store %arg12[%c0_28, %c0_29], %14 {strides = array<i32>} : memref<16x256xf32, #tpu.memory_space<vmem>>, vector<16x256xf32>,
    return
  }
  func.func @transform_0(%arg0: i32) -> (i32, i32) {
    %c0_i32 = arith.constant 0 : i32
    %c0_i32_0 = arith.constant 0 : i32
    return %arg0, %c0_i32 : i32, i32
  }
  func.func @transform_1(%arg0: i32) -> (i32, i32) {
    %c0_i32 = arith.constant 0 : i32
    %c0_i32_0 = arith.constant 0 : i32
    return %arg0, %c0_i32 : i32, i32
  }
  func.func @transform_2(%arg0: i32) -> (i32, i32) {
    %c0_i32 = arith.constant 0 : i32
    %c0_i32_0 = arith.constant 0 : i32
    %c0_i32_1 = arith.constant 0 : i32
    return %c0_i32, %c0_i32_0 : i32, i32
  }
  func.func @transform_3(%arg0: i32) -> (i32, i32) {
    %c0_i32 = arith.constant 0 : i32
    %c0_i32_0 = arith.constant 0 : i32
    %c0_i32_1 = arith.constant 0 : i32
    return %c0_i32, %c0_i32_0 : i32, i32
  }
  func.func @transform_4(%arg0: i32) -> (i32, i32) {
    %c0_i32 = arith.constant 0 : i32
    %c0_i32_0 = arith.constant 0 : i32
    %c0_i32_1 = arith.constant 0 : i32
    return %c0_i32, %c0_i32_0 : i32, i32
  }
  func.func @transform_5(%arg0: i32) -> (i32, i32) {
    %c0_i32 = arith.constant 0 : i32
    %c0_i32_0 = arith.constant 0 : i32
    %c0_i32_1 = arith.constant 0 : i32
    return %c0_i32, %c0_i32_0 : i32, i32
  }
  func.func @transform_6(%arg0: i32) -> (i32, i32) {
    %c0_i32 = arith.constant 0 : i32
    %c0_i32_0 = arith.constant 0 : i32
    %c0_i32_1 = arith.constant 0 : i32
    return %c0_i32, %c0_i32_0 : i32, i32
  }
  func.func @transform_7(%arg0: i32) -> (i32, i32) {
    %c0_i32 = arith.constant 0 : i32
    %c0_i32_0 = arith.constant 0 : i32
    %c0_i32_1 = arith.constant 0 : i32
    return %c0_i32, %c0_i32_0 : i32, i32
  }
  func.func @transform_8(%arg0: i32) -> (i32, i32) {
    %c0_i32 = arith.constant 0 : i32
    %c0_i32_0 = arith.constant 0 : i32
    %c0_i32_1 = arith.constant 0 : i32
    return %c0_i32, %c0_i32_0 : i32, i32
  }
  func.func @transform_9(%arg0: i32) -> (i32, i32) {
    %c0_i32 = arith.constant 0 : i32
    %c0_i32_0 = arith.constant 0 : i32
    %c0_i32_1 = arith.constant 0 : i32
    return %c0_i32, %c0_i32_0 : i32, i32
  }
  func.func @transform_10(%arg0: i32) -> (i32, i32) {
    %c0_i32 = arith.constant 0 : i32
    %c0_i32_0 = arith.constant 0 : i32
    return %arg0, %c0_i32 : i32, i32
  }
  func.func @transform_11(%arg0: i32) -> (i32, i32) {
    %c0_i32 = arith.constant 0 : i32
    %c0_i32_0 = arith.constant 0 : i32
    return %arg0, %c0_i32 : i32, i32
  }
}

</mosaic_0001>

<llo_original>
// kernel: vae_forward.1
$region0: #{vae_forward.1}
  #allocation0 [shape = 'u32[]', space=smem, size = 0x4, offset = 0x4, fixed_abs, tag = 'smem constant byte address 0x4 - core index']
  #allocation1 [shape = 'u32[144,128]{1,0:T(1,128)}', space=vmem, size = 0x12000, scoped, tag = 'internal scratch']
  %s0 = inlined_call_operand.vmem [shape: bf16[32,784], index: 0, kind: input, shape index: {}]
  %s1 = inlined_call_operand.vmem [shape: f32[32,128], index: 1, kind: input, shape index: {}]
  %s2 = inlined_call_operand.vmem [shape: bf16[784,512], index: 2, kind: input, shape index: {}]
  %s3 = inlined_call_operand.vmem [shape: f32[1,512], index: 3, kind: input, shape index: {}]
  %s4 = inlined_call_operand.vmem [shape: bf16[512,256], index: 4, kind: input, shape index: {}]
  %s5 = inlined_call_operand.vmem [shape: f32[1,256], index: 5, kind: input, shape index: {}]
  %s6 = inlined_call_operand.vmem [shape: bf16[128,512], index: 6, kind: input, shape index: {}]
  %s7 = inlined_call_operand.vmem [shape: f32[1,512], index: 7, kind: input, shape index: {}]
  %s8 = inlined_call_operand.vmem [shape: bf16[512,784], index: 8, kind: input, shape index: {}]
  %s9 = inlined_call_operand.vmem [shape: f32[1,784], index: 9, kind: input, shape index: {}]
  %s10 = inlined_call_operand.vmem [shape: bf16[32,784], index: 10, kind: output, shape index: {0}]
  %s11 = inlined_call_operand.vmem [shape: f32[32,256], index: 11, kind: output, shape index: {1}]
  %12 = xla_tuple %s10, %s11
  %s13 = sld [smem:[#allocation0]]
  $region81: #{vae_forward.1} parent=0
    _
  %s15 = ssub.s32 1, %s13
  %s16 = scalar_select 0, %s15, %s13
  loop: start=0, step=1, limit=4
  $region2: #{vae_forward.1} parent=0 // loop_pre_header
    _
  $region3: #{vae_forward.1} parent=0 // loop_header
    %s18 = sphi 0, %s22
    %p19 = scmp.ge.s32.totalorder %s18, 4
    %s28 = sphi 0, %s30
    %s31 = sphi 0, %s28
    %s32 = sphi 0, %s31
    %s48 = sphi 0, %s32
    %s54 = sphi 0, %s56
    %s57 = sphi 0, %s54
    %s58 = sphi 0, %s57
    %s74 = sphi 0, %s58
    %s78 = sphi 0, %s78
    %s80 = sphi 0, %s78
    %s81 = sphi 0, %s80
    %s95 = sphi 0, %s81
    %s99 = sphi 0, %s99
    %s101 = sphi 0, %s99
    %s102 = sphi 0, %s101
    %s116 = sphi 0, %s102
    %s120 = sphi 0, %s120
    %s122 = sphi 0, %s120
    %s123 = sphi 0, %s122
    %s137 = sphi 0, %s123
    %s141 = sphi 0, %s141
    %s143 = sphi 0, %s141
    %s144 = sphi 0, %s143
    %s158 = sphi 0, %s144
    %s162 = sphi 0, %s162
    %s164 = sphi 0, %s162
    %s165 = sphi 0, %s164
    %s179 = sphi 0, %s165
    %s183 = sphi 0, %s183
    %s185 = sphi 0, %s183
    %s186 = sphi 0, %s185
    %s200 = sphi 0, %s186
    %s204 = sphi 0, %s204
    %s206 = sphi 0, %s204
    %s207 = sphi 0, %s206
    %s221 = sphi 0, %s207
    %s225 = sphi 0, %s225
    %s227 = sphi 0, %s225
    %s228 = sphi 0, %s227
    %s242 = sphi 0, %s228
    %s248 = sphi 0, %s250
    %s251 = sphi 0, %s248
    %s252 = sphi 0, %s251
    %s268 = sphi 0, %s252
    %s274 = sphi 0, %s276
    %s277 = sphi 0, %s274
    %s278 = sphi 0, %s277
    %s294 = sphi 0, %s278
  $region4: #{vae_forward.1} parent=0 // loop_header_branch
    %21 = sbr.rel (%p19) target = $region8
  $region5: #{vae_forward.1} parent=0 // loop_body
    %s23 = ssub.s32 %s18, 1
    %s24 = ssub.s32 %s18, 2
    %s25 = sadd.s32 %s18, 1
    %s26 = ssub.s32 %s18, %s25
    %p27 = scmp.eq.s32.totalorder %s26, 0
    %s29 = sadd.s32 %s28, 1
    %s30 = scalar_select %p27, %s28, %s29
    %p33 = pneg %p27
    %p34 = scmp.eq.s32.totalorder %s18, 1
    %p35 = por %p33, %p34
    %p36 = scmp.ne.s32.totalorder %s28, %s31
    %p37 = scmp.eq.s32.totalorder %s18, 0
    %p38 = por %p36, %p37
    %p39 = scmp.ne.s32.totalorder %s28, %s31
    %p40 = scmp.eq.s32.totalorder %s23, 1
    %p41 = por %p39, %p40
    %p42 = scmp.ne.s32.totalorder %s31, %s32
    %p43 = scmp.eq.s32.totalorder %s23, 0
    %p44 = por %p42, %p43
    %p45 = scmp.ne.s32.totalorder %s31, %s32
    %p46 = scmp.eq.s32.totalorder %s24, 1
    %p47 = por %p45, %p46
    %p49 = scmp.ne.s32.totalorder %s32, %s48
    %p50 = scmp.eq.s32.totalorder %s24, 0
    %p51 = por %p49, %p50
    %s52 = ssub.s32 %s18, %s25
    %p53 = scmp.eq.s32.totalorder %s52, 0
    %s55 = sadd.s32 %s54, 1
    %s56 = scalar_select %p53, %s54, %s55
    %p59 = pneg %p53
    %p60 = scmp.eq.s32.totalorder %s18, 1
    %p61 = por %p59, %p60
    %p62 = scmp.ne.s32.totalorder %s54, %s57
    %p63 = scmp.eq.s32.totalorder %s18, 0
    %p64 = por %p62, %p63
    %p65 = scmp.ne.s32.totalorder %s54, %s57
    %p66 = scmp.eq.s32.totalorder %s23, 1
    %p67 = por %p65, %p66
    %p68 = scmp.ne.s32.totalorder %s57, %s58
    %p69 = scmp.eq.s32.totalorder %s23, 0
    %p70 = por %p68, %p69
    %p71 = scmp.ne.s32.totalorder %s57, %s58
    %p72 = scmp.eq.s32.totalorder %s24, 1
    %p73 = por %p71, %p72
    %p75 = scmp.ne.s32.totalorder %s58, %s74
    %p76 = scmp.eq.s32.totalorder %s24, 0
    %p77 = por %p75, %p76
    %s79 = sadd.s32 %s78, 1
    %p82 = scmp.eq.s32.totalorder %s18, 1
    %p83 = scmp.ne.s32.totalorder %s78, %s80
    %p84 = scmp.eq.s32.totalorder %s18, 0
    %p85 = por %p83, %p84
    %p86 = scmp.ne.s32.totalorder %s78, %s80
    %p87 = scmp.eq.s32.totalorder %s23, 1
    %p88 = por %p86, %p87
    %p89 = scmp.ne.s32.totalorder %s80, %s81
    %p90 = scmp.eq.s32.totalorder %s23, 0
    %p91 = por %p89, %p90
    %p92 = scmp.ne.s32.totalorder %s80, %s81
    %p93 = scmp.eq.s32.totalorder %s24, 1
    %p94 = por %p92, %p93
    %p96 = scmp.ne.s32.totalorder %s81, %s95
    %p97 = scmp.eq.s32.totalorder %s24, 0
    %p98 = por %p96, %p97
    %s100 = sadd.s32 %s99, 1
    %p103 = scmp.eq.s32.totalorder %s18, 1
    %p104 = scmp.ne.s32.totalorder %s99, %s101
    %p105 = scmp.eq.s32.totalorder %s18, 0
    %p106 = por %p104, %p105
    %p107 = scmp.ne.s32.totalorder %s99, %s101
    %p108 = scmp.eq.s32.totalorder %s23, 1
    %p109 = por %p107, %p108
    %p110 = scmp.ne.s32.totalorder %s101, %s102
    %p111 = scmp.eq.s32.totalorder %s23, 0
    %p112 = por %p110, %p111
    %p113 = scmp.ne.s32.totalorder %s101, %s102
    %p114 = scmp.eq.s32.totalorder %s24, 1
    %p115 = por %p113, %p114
    %p117 = scmp.ne.s32.totalorder %s102, %s116
    %p118 = scmp.eq.s32.totalorder %s24, 0
    %p119 = por %p117, %p118
    %s121 = sadd.s32 %s120, 1
    %p124 = scmp.eq.s32.totalorder %s18, 1
    %p125 = scmp.ne.s32.totalorder %s120, %s122
    %p126 = scmp.eq.s32.totalorder %s18, 0
    %p127 = por %p125, %p126
    %p128 = scmp.ne.s32.totalorder %s120, %s122
    %p129 = scmp.eq.s32.totalorder %s23, 1
    %p130 = por %p128, %p129
    %p131 = scmp.ne.s32.totalorder %s122, %s123
    %p132 = scmp.eq.s32.totalorder %s23, 0
    %p133 = por %p131, %p132
    %p134 = scmp.ne.s32.totalorder %s122, %s123
    %p135 = scmp.eq.s32.totalorder %s24, 1
    %p136 = por %p134, %p135
    %p138 = scmp.ne.s32.totalorder %s123, %s137
    %p139 = scmp.eq.s32.totalorder %s24, 0
    %p140 = por %p138, %p139
    %s142 = sadd.s32 %s141, 1
    %p145 = scmp.eq.s32.totalorder %s18, 1
    %p146 = scmp.ne.s32.totalorder %s141, %s143
    %p147 = scmp.eq.s32.totalorder %s18, 0
    %p148 = por %p146, %p147
    %p149 = scmp.ne.s32.totalorder %s141, %s143
    %p150 = scmp.eq.s32.totalorder %s23, 1
    %p151 = por %p149, %p150
    %p152 = scmp.ne.s32.totalorder %s143, %s144
    %p153 = scmp.eq.s32.totalorder %s23, 0
    %p154 = por %p152, %p153
    %p155 = scmp.ne.s32.totalorder %s143, %s144
    %p156 = scmp.eq.s32.totalorder %s24, 1
    %p157 = por %p155, %p156
    %p159 = scmp.ne.s32.totalorder %s144, %s158
    %p160 = scmp.eq.s32.totalorder %s24, 0
    %p161 = por %p159, %p160
    %s163 = sadd.s32 %s162, 1
    %p166 = scmp.eq.s32.totalorder %s18, 1
    %p167 = scmp.ne.s32.totalorder %s162, %s164
    %p168 = scmp.eq.s32.totalorder %s18, 0
    %p169 = por %p167, %p168
    %p170 = scmp.ne.s32.totalorder %s162, %s164
    %p171 = scmp.eq.s32.totalorder %s23, 1
    %p172 = por %p170, %p171
    %p173 = scmp.ne.s32.totalorder %s164, %s165
    %p174 = scmp.eq.s32.totalorder %s23, 0
    %p175 = por %p173, %p174
    %p176 = scmp.ne.s32.totalorder %s164, %s165
    %p177 = scmp.eq.s32.totalorder %s24, 1
    %p178 = por %p176, %p177
    %p180 = scmp.ne.s32.totalorder %s165, %s179
    %p181 = scmp.eq.s32.totalorder %s24, 0
    %p182 = por %p180, %p181
    %s184 = sadd.s32 %s183, 1
    %p187 = scmp.eq.s32.totalorder %s18, 1
    %p188 = scmp.ne.s32.totalorder %s183, %s185
    %p189 = scmp.eq.s32.totalorder %s18, 0
    %p190 = por %p188, %p189
    %p191 = scmp.ne.s32.totalorder %s183, %s185
    %p192 = scmp.eq.s32.totalorder %s23, 1
    %p193 = por %p191, %p192
    %p194 = scmp.ne.s32.totalorder %s185, %s186
    %p195 = scmp.eq.s32.totalorder %s23, 0
    %p196 = por %p194, %p195
    %p197 = scmp.ne.s32.totalorder %s185, %s186
    %p198 = scmp.eq.s32.totalorder %s24, 1
    %p199 = por %p197, %p198
    %p201 = scmp.ne.s32.totalorder %s186, %s200
    %p202 = scmp.eq.s32.totalorder %s24, 0
    %p203 = por %p201, %p202
    %s205 = sadd.s32 %s204, 1
    %p208 = scmp.eq.s32.totalorder %s18, 1
    %p209 = scmp.ne.s32.totalorder %s204, %s206
    %p210 = scmp.eq.s32.totalorder %s18, 0
    %p211 = por %p209, %p210
    %p212 = scmp.ne.s32.totalorder %s204, %s206
    %p213 = scmp.eq.s32.totalorder %s23, 1
    %p214 = por %p212, %p213
    %p215 = scmp.ne.s32.totalorder %s206, %s207
    %p216 = scmp.eq.s32.totalorder %s23, 0
    %p217 = por %p215, %p216
    %p218 = scmp.ne.s32.totalorder %s206, %s207
    %p219 = scmp.eq.s32.totalorder %s24, 1
    %p220 = por %p218, %p219
    %p222 = scmp.ne.s32.totalorder %s207, %s221
    %p223 = scmp.eq.s32.totalorder %s24, 0
    %p224 = por %p222, %p223
    %s226 = sadd.s32 %s225, 1
    %p229 = scmp.eq.s32.totalorder %s18, 1
    %p230 = scmp.ne.s32.totalorder %s225, %s227
    %p231 = scmp.eq.s32.totalorder %s18, 0
    %p232 = por %p230, %p231
    %p233 = scmp.ne.s32.totalorder %s225, %s227
    %p234 = scmp.eq.s32.totalorder %s23, 1
    %p235 = por %p233, %p234
    %p236 = scmp.ne.s32.totalorder %s227, %s228
    %p237 = scmp.eq.s32.totalorder %s23, 0
    %p238 = por %p236, %p237
    %p239 = scmp.ne.s32.totalorder %s227, %s228
    %p240 = scmp.eq.s32.totalorder %s24, 1
    %p241 = por %p239, %p240
    %p243 = scmp.ne.s32.totalorder %s228, %s242
    %p244 = scmp.eq.s32.totalorder %s24, 0
    %p245 = por %p243, %p244
    %s246 = ssub.s32 %s18, %s25
    %p247 = scmp.eq.s32.totalorder %s246, 0
    %s249 = sadd.s32 %s248, 1
    %s250 = scalar_select %p247, %s248, %s249
    %p253 = pneg %p247
    %p254 = scmp.eq.s32.totalorder %s18, 1
    %p255 = por %p253, %p254
    %p256 = scmp.ne.s32.totalorder %s248, %s251
    %p257 = scmp.eq.s32.totalorder %s18, 0
    %p258 = por %p256, %p257
    %p259 = scmp.ne.s32.totalorder %s248, %s251
    %p260 = scmp.eq.s32.totalorder %s23, 1
    %p261 = por %p259, %p260
    %p262 = scmp.ne.s32.totalorder %s251, %s252
    %p263 = scmp.eq.s32.totalorder %s23, 0
    %p264 = por %p262, %p263
    %p265 = scmp.ne.s32.totalorder %s251, %s252
    %p266 = scmp.eq.s32.totalorder %s24, 1
    %p267 = por %p265, %p266
    %p269 = scmp.ne.s32.totalorder %s252, %s268
    %p270 = scmp.eq.s32.totalorder %s24, 0
    %p271 = por %p269, %p270
    %s272 = ssub.s32 %s18, %s25
    %p273 = scmp.eq.s32.totalorder %s272, 0
    %s275 = sadd.s32 %s274, 1
    %s276 = scalar_select %p273, %s274, %s275
    %p279 = pneg %p273
    %p280 = scmp.eq.s32.totalorder %s18, 1
    %p281 = por %p279, %p280
    %p282 = scmp.ne.s32.totalorder %s274, %s277
    %p283 = scmp.eq.s32.totalorder %s18, 0
    %p284 = por %p282, %p283
    %p285 = scmp.ne.s32.totalorder %s274, %s277
    %p286 = scmp.eq.s32.totalorder %s23, 1
    %p287 = por %p285, %p286
    %p288 = scmp.ne.s32.totalorder %s277, %s278
    %p289 = scmp.eq.s32.totalorder %s23, 0
    %p290 = por %p288, %p289
    %p291 = scmp.ne.s32.totalorder %s277, %s278
    %p292 = scmp.eq.s32.totalorder %s24, 1
    %p293 = por %p291, %p292
    %p295 = scmp.ne.s32.totalorder %s278, %s294
    %p296 = scmp.eq.s32.totalorder %s24, 0
    %p297 = por %p295, %p296
    %p298 = scmp.le.s32.totalorder 1, %s18
    %p299 = scmp.lt.s32.totalorder %s18, 3
    %p300 = pnand %p298, %p299
    %p301 = pneg %p300
    // Predicated region
    $region9: #{vae_forward.1} parent=5 // pred_check
      _
    $region10: #{vae_forward.1} parent=5 // pred_check_branch
      %303 = sbr.rel (%p300) target = $region12
    $region11: #{vae_forward.1} parent=5 // pred_region
      %s304 = ssub.s32 %s18, 1
      // Predicated region
      $region13: #{vae_forward.1} parent=11 // pred_check
        %p305 = pneg %p91
      $region14: #{vae_forward.1} parent=11 // pred_check_branch
        %307 = sbr.rel (%p305) target = $region16
      $region15: #{vae_forward.1} parent=11 // pred_region
        _
      $region16: #{vae_forward.1} parent=11 // pred_fallthru
        _
      // Predicated region
      $region17: #{vae_forward.1} parent=11 // pred_check
        %p308 = pneg %p112
      $region18: #{vae_forward.1} parent=11 // pred_check_branch
        %310 = sbr.rel (%p308) target = $region20
      $region19: #{vae_forward.1} parent=11 // pred_region
        _
      $region20: #{vae_forward.1} parent=11 // pred_fallthru
        _
      // Predicated region
      $region21: #{vae_forward.1} parent=11 // pred_check
        %p311 = pneg %p133
      $region22: #{vae_forward.1} parent=11 // pred_check_branch
        %313 = sbr.rel (%p311) target = $region24
      $region23: #{vae_forward.1} parent=11 // pred_region
        _
      $region24: #{vae_forward.1} parent=11 // pred_fallthru
        _
      // Predicated region
      $region25: #{vae_forward.1} parent=11 // pred_check
        %p314 = pneg %p154
      $region26: #{vae_forward.1} parent=11 // pred_check_branch
        %316 = sbr.rel (%p314) target = $region28
      $region27: #{vae_forward.1} parent=11 // pred_region
        _
      $region28: #{vae_forward.1} parent=11 // pred_fallthru
        _
      // Predicated region
      $region29: #{vae_forward.1} parent=11 // pred_check
        %p317 = pneg %p175
      $region30: #{vae_forward.1} parent=11 // pred_check_branch
        %319 = sbr.rel (%p317) target = $region32
      $region31: #{vae_forward.1} parent=11 // pred_region
        _
      $region32: #{vae_forward.1} parent=11 // pred_fallthru
        _
      // Predicated region
      $region33: #{vae_forward.1} parent=11 // pred_check
        %p320 = pneg %p196
      $region34: #{vae_forward.1} parent=11 // pred_check_branch
        %322 = sbr.rel (%p320) target = $region36
      $region35: #{vae_forward.1} parent=11 // pred_region
        _
      $region36: #{vae_forward.1} parent=11 // pred_fallthru
        _
      // Predicated region
      $region37: #{vae_forward.1} parent=11 // pred_check
        %p323 = pneg %p217
      $region38: #{vae_forward.1} parent=11 // pred_check_branch
        %325 = sbr.rel (%p323) target = $region40
      $region39: #{vae_forward.1} parent=11 // pred_region
        _
      $region40: #{vae_forward.1} parent=11 // pred_fallthru
        _
      // Predicated region
      $region41: #{vae_forward.1} parent=11 // pred_check
        %p326 = pneg %p238
      $region42: #{vae_forward.1} parent=11 // pred_check_branch
        %328 = sbr.rel (%p326) target = $region44
      $region43: #{vae_forward.1} parent=11 // pred_region
        _
      $region44: #{vae_forward.1} parent=11 // pred_fallthru
        _
    $region12: #{vae_forward.1} parent=5 // pred_fallthru
      _
    %p329 = scmp.lt.s32.totalorder %s18, 2
    // Predicated region
    $region45: #{vae_forward.1} parent=5 // pred_check
      %p330 = pneg %p329
    $region46: #{vae_forward.1} parent=5 // pred_check_branch
      %332 = sbr.rel (%p330) target = $region48
    $region47: #{vae_forward.1} parent=5 // pred_region
      // Predicated region
      $region49: #{vae_forward.1} parent=47 // pred_check
        %p333 = pneg %p38
      $region50: #{vae_forward.1} parent=47 // pred_check_branch
        %335 = sbr.rel (%p333) target = $region52
      $region51: #{vae_forward.1} parent=47 // pred_region
        %s336 = smul.u32 2, %s18
        %p337 = scmp.lt.s32.totalorder %s336, 3
        %s338 = scalar_select %p337, %s336, 3
        %s339 = smul.addr %s338, 7
        %s340 = smul.addr %s339, 4
        %s341 = scalar_lea.vmem %s0, %s340
        %s342 = smul.u32 2, %s18
      $region52: #{vae_forward.1} parent=47 // pred_fallthru
        _
      // Predicated region
      $region53: #{vae_forward.1} parent=47 // pred_check
        %p343 = pneg %p64
      $region54: #{vae_forward.1} parent=47 // pred_check_branch
        %345 = sbr.rel (%p343) target = $region56
      $region55: #{vae_forward.1} parent=47 // pred_region
        %s346 = smul.u32 2, %s18
        %p347 = scmp.lt.s32.totalorder %s346, 3
        %s348 = scalar_select %p347, %s346, 3
        %s349 = smul.addr %s348, 8
        %s350 = scalar_lea.vmem %s1, %s349
        %s351 = smul.u32 2, %s18
      $region56: #{vae_forward.1} parent=47 // pred_fallthru
        _
    $region48: #{vae_forward.1} parent=5 // pred_fallthru
      _
    %p352 = scmp.le.s32.totalorder 1, %s18
    %p353 = scmp.lt.s32.totalorder %s18, 3
    %p354 = pnand %p352, %p353
    %p355 = pneg %p354
    // Predicated region
    $region57: #{vae_forward.1} parent=5 // pred_check
      _
    $region58: #{vae_forward.1} parent=5 // pred_check_branch
      %357 = sbr.rel (%p354) target = $region60
    $region59: #{vae_forward.1} parent=5 // pred_region
      %s358 = ssub.s32 %s18, 1
      %s359 = smul.u32 2, %s23
      %p360 = scmp.lt.s32.totalorder %s359, 3
      %s361 = scalar_select %p360, %s359, 3
      %s362 = smul.addr %s361, 7
      %s363 = smul.addr %s362, 4
      %s364 = scalar_lea.vmem %s0, %s363
      %p365 = pneg %p44
      %p366 = pneg %p41
      %s367 = smul.u32 2, %s23
      %p368 = scmp.lt.s32.totalorder %s367, 3
      %s369 = scalar_select %p368, %s367, 3
      %s370 = smul.addr %s369, 8
      %s371 = scalar_lea.vmem %s1, %s370
      %p372 = pneg %p70
      %p373 = pneg %p67
      %p374 = pneg %p91
      %p375 = pneg %p88
      %p376 = pneg %p112
      %p377 = pneg %p109
      %p378 = pneg %p133
      %p379 = pneg %p130
      %p380 = pneg %p154
      %p381 = pneg %p151
      %p382 = pneg %p175
      %p383 = pneg %p172
      %p384 = pneg %p196
      %p385 = pneg %p193
      %p386 = pneg %p217
      %p387 = pneg %p214
      %p388 = pneg %p238
      %p389 = pneg %p235
      %p390 = pneg %p264
      %p391 = pneg %p261
      %s392 = smul.u32 2, %s23
      %p393 = scmp.lt.s32.totalorder %s392, 3
      %s394 = scalar_select %p393, %s392, 3
      %s395 = smul.addr %s394, 7
      %s396 = smul.addr %s395, 4
      %s397 = scalar_lea.vmem %s10, %s396
      %p398 = pneg %p290
      %p399 = pneg %p287
      %s400 = smul.u32 2, %s23
      %p401 = scmp.lt.s32.totalorder %s400, 3
      %s402 = scalar_select %p401, %s400, 3
      %s403 = smul.addr %s402, 2
      %s404 = smul.addr %s403, 8
      %s405 = scalar_lea.vmem %s11, %s404
      %s406 = smul.u32 2, %s23
      %p407 = scmp.lt.s32.totalorder %s406, 3
      %s408 = scalar_select %p407, %s406, 3
      %s409 = smul.addr %s408, 7
      %s410 = smul.addr %s409, 4
      %s411 = scalar_lea.vmem %s0, %s410
      %s412 = smul.u32 2, %s23
      %s413 = smul.u32 2, %s23
      %p414 = scmp.lt.s32.totalorder %s413, 3
      %s415 = scalar_select %p414, %s413, 3
      %s416 = smul.addr %s415, 8
      %s417 = scalar_lea.vmem %s1, %s416
      %s418 = smul.u32 2, %s23
      %s419 = smul.u32 2, %s23
      %p420 = scmp.lt.s32.totalorder %s419, 3
      %s421 = scalar_select %p420, %s419, 3
      %s422 = smul.addr %s421, 7
      %s423 = smul.addr %s422, 4
      %s424 = scalar_lea.vmem %s10, %s423
      %s425 = smul.u32 2, %s23
      %s426 = smul.u32 2, %s23
      %p427 = scmp.lt.s32.totalorder %s426, 3
      %s428 = scalar_select %p427, %s426, 3
      %s429 = smul.addr %s428, 2
      %s430 = smul.addr %s429, 8
      %s431 = scalar_lea.vmem %s11, %s430
      %s432 = smul.u32 2, %s23
      %v434 = vld [vmem:[%s411] sm:$0xff]
      %v435 = vld [vmem:[%s411 + $0x8] sm:$0xff]
      %v436 = vld [vmem:[%s411 + $0x10] sm:$0xff]
      %v437 = vld [vmem:[%s411 + $0x18] sm:$0xf]
      %v438 = vld [vmem:[%s411 + $0x1c] sm:$0xff]
      %v439 = vld [vmem:[%s411 + $0x24] sm:$0xff]
      %v440 = vld [vmem:[%s411 + $0x2c] sm:$0xff]
      %v441 = vld [vmem:[%s411 + $0x34] sm:$0xf]
      %v442 = vld [vmem:[%s417] sm:$0xff]
      %v443 = vld [vmem:[%s417 + $0x8] sm:$0xff]
      %v444 = vld [vmem:[%s2] sm:$0xff]
      %v445 = vld [vmem:[%s2 + $0x8] sm:$0xff]
      %v446 = vld [vmem:[%s2 + $0x10] sm:$0xff]
      %v447 = vld [vmem:[%s2 + $0x18] sm:$0xff]
      %v448 = vld [vmem:[%s2 + $0x20] sm:$0xff]
      %v449 = vld [vmem:[%s2 + $0x28] sm:$0xff]
      %v450 = vld [vmem:[%s2 + $0x30] sm:$0xff]
      %v451 = vld [vmem:[%s2 + $0x38] sm:$0xff]
      %v452 = vld [vmem:[%s2 + $0x40] sm:$0xff]
      %v453 = vld [vmem:[%s2 + $0x48] sm:$0xff]
      %v454 = vld [vmem:[%s2 + $0x50] sm:$0xff]
      %v455 = vld [vmem:[%s2 + $0x58] sm:$0xff]
      %v456 = vld [vmem:[%s2 + $0x60] sm:$0xff]
      %v457 = vld [vmem:[%s2 + $0x68] sm:$0xff]
      %v458 = vld [vmem:[%s2 + $0x70] sm:$0xff]
      %v459 = vld [vmem:[%s2 + $0x78] sm:$0xff]
      %v460 = vld [vmem:[%s2 + $0x80] sm:$0xff]
      %v461 = vld [vmem:[%s2 + $0x88] sm:$0xff]
      %v462 = vld [vmem:[%s2 + $0x90] sm:$0xff]
      %v463 = vld [vmem:[%s2 + $0x98] sm:$0xff]
      %v464 = vld [vmem:[%s2 + $0xa0] sm:$0xff]
      %v465 = vld [vmem:[%s2 + $0xa8] sm:$0xff]
      %v466 = vld [vmem:[%s2 + $0xb0] sm:$0xff]
      %v467 = vld [vmem:[%s2 + $0xb8] sm:$0xff]
      %v468 = vld [vmem:[%s2 + $0xc0] sm:$0xff]
      %v469 = vld [vmem:[%s2 + $0xc8] sm:$0xff]
      %v470 = vld [vmem:[%s2 + $0xd0] sm:$0xff]
      %v471 = vld [vmem:[%s2 + $0xd8] sm:$0xff]
      %v472 = vld [vmem:[%s2 + $0xe0] sm:$0xff]
      %v473 = vld [vmem:[%s2 + $0xe8] sm:$0xff]
      %v474 = vld [vmem:[%s2 + $0xf0] sm:$0xff]
      %v475 = vld [vmem:[%s2 + $0xf8] sm:$0xff]
      %v476 = vld [vmem:[%s2 + $0x100] sm:$0xff]
      %v477 = vld [vmem:[%s2 + $0x108] sm:$0xff]
      %v478 = vld [vmem:[%s2 + $0x110] sm:$0xff]
      %v479 = vld [vmem:[%s2 + $0x118] sm:$0xff]
      %v480 = vld [vmem:[%s2 + $0x120] sm:$0xff]
      %v481 = vld [vmem:[%s2 + $0x128] sm:$0xff]
      %v482 = vld [vmem:[%s2 + $0x130] sm:$0xff]
      %v483 = vld [vmem:[%s2 + $0x138] sm:$0xff]
      %v484 = vld [vmem:[%s2 + $0x140] sm:$0xff]
      %v485 = vld [vmem:[%s2 + $0x148] sm:$0xff]
      %v486 = vld [vmem:[%s2 + $0x150] sm:$0xff]
      %v487 = vld [vmem:[%s2 + $0x158] sm:$0xff]
      %v488 = vld [vmem:[%s2 + $0x160] sm:$0xff]
      %v489 = vld [vmem:[%s2 + $0x168] sm:$0xff]
      %v490 = vld [vmem:[%s2 + $0x170] sm:$0xff]
      %v491 = vld [vmem:[%s2 + $0x178] sm:$0xff]
      %v492 = vld [vmem:[%s2 + $0x180] sm:$0xff]
      %v493 = vld [vmem:[%s2 + $0x188] sm:$0xff]
      %v494 = vld [vmem:[%s2 + $0x190] sm:$0xff]
      %v495 = vld [vmem:[%s2 + $0x198] sm:$0xff]
      %v496 = vld [vmem:[%s2 + $0x1a0] sm:$0xff]
      %v497 = vld [vmem:[%s2 + $0x1a8] sm:$0xff]
      %v498 = vld [vmem:[%s2 + $0x1b0] sm:$0xff]
      %v499 = vld [vmem:[%s2 + $0x1b8] sm:$0xff]
      %v500 = vld [vmem:[%s2 + $0x1c0] sm:$0xff]
      %v501 = vld [vmem:[%s2 + $0x1c8] sm:$0xff]
      %v502 = vld [vmem:[%s2 + $0x1d0] sm:$0xff]
      %v503 = vld [vmem:[%s2 + $0x1d8] sm:$0xff]
      %v504 = vld [vmem:[%s2 + $0x1e0] sm:$0xff]
      %v505 = vld [vmem:[%s2 + $0x1e8] sm:$0xff]
      %v506 = vld [vmem:[%s2 + $0x1f0] sm:$0xff]
      %v507 = vld [vmem:[%s2 + $0x1f8] sm:$0xff]
      %v508 = vld [vmem:[%s2 + $0x200] sm:$0xff]
      %v509 = vld [vmem:[%s2 + $0x208] sm:$0xff]
      %v510 = vld [vmem:[%s2 + $0x210] sm:$0xff]
      %v511 = vld [vmem:[%s2 + $0x218] sm:$0xff]
      %v512 = vld [vmem:[%s2 + $0x220] sm:$0xff]
      %v513 = vld [vmem:[%s2 + $0x228] sm:$0xff]
      %v514 = vld [vmem:[%s2 + $0x230] sm:$0xff]
      %v515 = vld [vmem:[%s2 + $0x238] sm:$0xff]
      %v516 = vld [vmem:[%s2 + $0x240] sm:$0xff]
      %v517 = vld [vmem:[%s2 + $0x248] sm:$0xff]
      %v518 = vld [vmem:[%s2 + $0x250] sm:$0xff]
      %v519 = vld [vmem:[%s2 + $0x258] sm:$0xff]
      %v520 = vld [vmem:[%s2 + $0x260] sm:$0xff]
      %v521 = vld [vmem:[%s2 + $0x268] sm:$0xff]
      %v522 = vld [vmem:[%s2 + $0x270] sm:$0xff]
      %v523 = vld [vmem:[%s2 + $0x278] sm:$0xff]
      %v524 = vld [vmem:[%s2 + $0x280] sm:$0xff]
      %v525 = vld [vmem:[%s2 + $0x288] sm:$0xff]
      %v526 = vld [vmem:[%s2 + $0x290] sm:$0xff]
      %v527 = vld [vmem:[%s2 + $0x298] sm:$0xff]
      %v528 = vld [vmem:[%s2 + $0x2a0] sm:$0xff]
      %v529 = vld [vmem:[%s2 + $0x2a8] sm:$0xff]
      %v530 = vld [vmem:[%s2 + $0x2b0] sm:$0xff]
      %v531 = vld [vmem:[%s2 + $0x2b8] sm:$0xff]
      %v532 = vld [vmem:[%s2 + $0x2c0] sm:$0xff]
      %v533 = vld [vmem:[%s2 + $0x2c8] sm:$0xff]
      %v534 = vld [vmem:[%s2 + $0x2d0] sm:$0xff]
      %v535 = vld [vmem:[%s2 + $0x2d8] sm:$0xff]
      %v536 = vld [vmem:[%s2 + $0x2e0] sm:$0xff]
      %v537 = vld [vmem:[%s2 + $0x2e8] sm:$0xff]
      %v538 = vld [vmem:[%s2 + $0x2f0] sm:$0xff]
      %v539 = vld [vmem:[%s2 + $0x2f8] sm:$0xff]
      %v540 = vld [vmem:[%s2 + $0x300] sm:$0xff]
      %v541 = vld [vmem:[%s2 + $0x308] sm:$0xff]
      %v542 = vld [vmem:[%s2 + $0x310] sm:$0xff]
      %v543 = vld [vmem:[%s2 + $0x318] sm:$0xff]
      %v544 = vld [vmem:[%s2 + $0x320] sm:$0xff]
      %v545 = vld [vmem:[%s2 + $0x328] sm:$0xff]
      %v546 = vld [vmem:[%s2 + $0x330] sm:$0xff]
      %v547 = vld [vmem:[%s2 + $0x338] sm:$0xff]
      %v548 = vld [vmem:[%s2 + $0x340] sm:$0xff]
      %v549 = vld [vmem:[%s2 + $0x348] sm:$0xff]
      %v550 = vld [vmem:[%s2 + $0x350] sm:$0xff]
      %v551 = vld [vmem:[%s2 + $0x358] sm:$0xff]
      %v552 = vld [vmem:[%s2 + $0x360] sm:$0xff]
      %v553 = vld [vmem:[%s2 + $0x368] sm:$0xff]
      %v554 = vld [vmem:[%s2 + $0x370] sm:$0xff]
      %v555 = vld [vmem:[%s2 + $0x378] sm:$0xff]
      %v556 = vld [vmem:[%s2 + $0x380] sm:$0xff]
      %v557 = vld [vmem:[%s2 + $0x388] sm:$0xff]
      %v558 = vld [vmem:[%s2 + $0x390] sm:$0xff]
      %v559 = vld [vmem:[%s2 + $0x398] sm:$0xff]
      %v560 = vld [vmem:[%s2 + $0x3a0] sm:$0xff]
      %v561 = vld [vmem:[%s2 + $0x3a8] sm:$0xff]
      %v562 = vld [vmem:[%s2 + $0x3b0] sm:$0xff]
      %v563 = vld [vmem:[%s2 + $0x3b8] sm:$0xff]
      %v564 = vld [vmem:[%s2 + $0x3c0] sm:$0xff]
      %v565 = vld [vmem:[%s2 + $0x3c8] sm:$0xff]
      %v566 = vld [vmem:[%s2 + $0x3d0] sm:$0xff]
      %v567 = vld [vmem:[%s2 + $0x3d8] sm:$0xff]
      %v568 = vld [vmem:[%s2 + $0x3e0] sm:$0xff]
      %v569 = vld [vmem:[%s2 + $0x3e8] sm:$0xff]
      %v570 = vld [vmem:[%s2 + $0x3f0] sm:$0xff]
      %v571 = vld [vmem:[%s2 + $0x3f8] sm:$0xff]
      %v572 = vld [vmem:[%s2 + $0x400] sm:$0xff]
      %v573 = vld [vmem:[%s2 + $0x408] sm:$0xff]
      %v574 = vld [vmem:[%s2 + $0x410] sm:$0xff]
      %v575 = vld [vmem:[%s2 + $0x418] sm:$0xff]
      %v576 = vld [vmem:[%s2 + $0x420] sm:$0xff]
      %v577 = vld [vmem:[%s2 + $0x428] sm:$0xff]
      %v578 = vld [vmem:[%s2 + $0x430] sm:$0xff]
      %v579 = vld [vmem:[%s2 + $0x438] sm:$0xff]
      %v580 = vld [vmem:[%s2 + $0x440] sm:$0xff]
      %v581 = vld [vmem:[%s2 + $0x448] sm:$0xff]
      %v582 = vld [vmem:[%s2 + $0x450] sm:$0xff]
      %v583 = vld [vmem:[%s2 + $0x458] sm:$0xff]
      %v584 = vld [vmem:[%s2 + $0x460] sm:$0xff]
      %v585 = vld [vmem:[%s2 + $0x468] sm:$0xff]
      %v586 = vld [vmem:[%s2 + $0x470] sm:$0xff]
      %v587 = vld [vmem:[%s2 + $0x478] sm:$0xff]
      %v588 = vld [vmem:[%s2 + $0x480] sm:$0xff]
      %v589 = vld [vmem:[%s2 + $0x488] sm:$0xff]
      %v590 = vld [vmem:[%s2 + $0x490] sm:$0xff]
      %v591 = vld [vmem:[%s2 + $0x498] sm:$0xff]
      %v592 = vld [vmem:[%s2 + $0x4a0] sm:$0xff]
      %v593 = vld [vmem:[%s2 + $0x4a8] sm:$0xff]
      %v594 = vld [vmem:[%s2 + $0x4b0] sm:$0xff]
      %v595 = vld [vmem:[%s2 + $0x4b8] sm:$0xff]
      %v596 = vld [vmem:[%s2 + $0x4c0] sm:$0xff]
      %v597 = vld [vmem:[%s2 + $0x4c8] sm:$0xff]
      %v598 = vld [vmem:[%s2 + $0x4d0] sm:$0xff]
      %v599 = vld [vmem:[%s2 + $0x4d8] sm:$0xff]
      %v600 = vld [vmem:[%s2 + $0x4e0] sm:$0xff]
      %v601 = vld [vmem:[%s2 + $0x4e8] sm:$0xff]
      %v602 = vld [vmem:[%s2 + $0x4f0] sm:$0xff]
      %v603 = vld [vmem:[%s2 + $0x4f8] sm:$0xff]
      %v604 = vld [vmem:[%s2 + $0x500] sm:$0xff]
      %v605 = vld [vmem:[%s2 + $0x508] sm:$0xff]
      %v606 = vld [vmem:[%s2 + $0x510] sm:$0xff]
      %v607 = vld [vmem:[%s2 + $0x518] sm:$0xff]
      %v608 = vld [vmem:[%s2 + $0x520] sm:$0xff]
      %v609 = vld [vmem:[%s2 + $0x528] sm:$0xff]
      %v610 = vld [vmem:[%s2 + $0x530] sm:$0xff]
      %v611 = vld [vmem:[%s2 + $0x538] sm:$0xff]
      %v612 = vld [vmem:[%s2 + $0x540] sm:$0xff]
      %v613 = vld [vmem:[%s2 + $0x548] sm:$0xff]
      %v614 = vld [vmem:[%s2 + $0x550] sm:$0xff]
      %v615 = vld [vmem:[%s2 + $0x558] sm:$0xff]
      %v616 = vld [vmem:[%s2 + $0x560] sm:$0xff]
      %v617 = vld [vmem:[%s2 + $0x568] sm:$0xff]
      %v618 = vld [vmem:[%s2 + $0x570] sm:$0xff]
      %v619 = vld [vmem:[%s2 + $0x578] sm:$0xff]
      %v620 = vld [vmem:[%s2 + $0x580] sm:$0xff]
      %v621 = vld [vmem:[%s2 + $0x588] sm:$0xff]
      %v622 = vld [vmem:[%s2 + $0x590] sm:$0xff]
      %v623 = vld [vmem:[%s2 + $0x598] sm:$0xff]
      %v624 = vld [vmem:[%s2 + $0x5a0] sm:$0xff]
      %v625 = vld [vmem:[%s2 + $0x5a8] sm:$0xff]
      %v626 = vld [vmem:[%s2 + $0x5b0] sm:$0xff]
      %v627 = vld [vmem:[%s2 + $0x5b8] sm:$0xff]
      %v628 = vld [vmem:[%s2 + $0x5c0] sm:$0xff]
      %v629 = vld [vmem:[%s2 + $0x5c8] sm:$0xff]
      %v630 = vld [vmem:[%s2 + $0x5d0] sm:$0xff]
      %v631 = vld [vmem:[%s2 + $0x5d8] sm:$0xff]
      %v632 = vld [vmem:[%s2 + $0x5e0] sm:$0xff]
      %v633 = vld [vmem:[%s2 + $0x5e8] sm:$0xff]
      %v634 = vld [vmem:[%s2 + $0x5f0] sm:$0xff]
      %v635 = vld [vmem:[%s2 + $0x5f8] sm:$0xff]
      %v636 = vld [vmem:[%s2 + $0x600] sm:$0xff]
      %v637 = vld [vmem:[%s2 + $0x608] sm:$0xff]
      %v638 = vld [vmem:[%s2 + $0x610] sm:$0xff]
      %v639 = vld [vmem:[%s2 + $0x618] sm:$0xff]
      %v640 = vld [vmem:[%s3] sm:$0xf]
      %v642 = vlaneseq
      %v643 = vshrl.u32 %v642, 7
      %v644 = vsub.s32 0, %v643
      %v645 = vrot.slane %v640, %v644
      %v646 = vlaneseq
      %v647 = vshrl.u32 %v646, 7
      %v648 = vsub.s32 1, %v647
      %v649 = vrot.slane %v640, %v648
      %v650 = vlaneseq
      %v651 = vshrl.u32 %v650, 7
      %v652 = vsub.s32 2, %v651
      %v653 = vrot.slane %v640, %v652
      %v654 = vlaneseq
      %v655 = vshrl.u32 %v654, 7
      %v656 = vsub.s32 3, %v655
      %v657 = vrot.slane %v640, %v656
      %v670 = vunpack.c.l.b16 %v434
      %v671 = vunpack.c.h.b16 %v434
      %v672 = vunpack.c.l.b16 %v435
      %v673 = vunpack.c.h.b16 %v435
      %v674 = vunpack.c.l.b16 %v436
      %v675 = vunpack.c.h.b16 %v436
      %v676 = vunpack.c.l.b16 %v437
      %v677 = vunpack.c.l.b16 %v438
      %v678 = vunpack.c.h.b16 %v438
      %v679 = vunpack.c.l.b16 %v439
      %v680 = vunpack.c.h.b16 %v439
      %v681 = vunpack.c.l.b16 %v440
      %v682 = vunpack.c.h.b16 %v440
      %v683 = vunpack.c.l.b16 %v441
      %v684 = vpack.c.b16 %v677, %v670
      %v685 = vpack.c.b16 %v678, %v671
      %v686 = vpack.c.b16 %v679, %v672
      %v687 = vpack.c.b16 %v680, %v673
      %v688 = vpack.c.b16 %v681, %v674
      %v689 = vpack.c.b16 %v682, %v675
      %v690 = vpack.c.b16 %v683, %v676
      %v893 = vunpack.c.l.b16 %v444
      %v894 = vunpack.c.h.b16 %v444
      %v895 = vunpack.c.l.b16 %v445
      %v896 = vunpack.c.h.b16 %v445
      %v897 = vunpack.c.l.b16 %v446
      %v898 = vunpack.c.h.b16 %v446
      %v899 = vunpack.c.l.b16 %v447
      %v900 = vunpack.c.h.b16 %v447
      %v901 = vunpack.c.l.b16 %v448
      %v902 = vunpack.c.h.b16 %v448
      %v903 = vunpack.c.l.b16 %v449
      %v904 = vunpack.c.h.b16 %v449
      %v905 = vunpack.c.l.b16 %v450
      %v906 = vunpack.c.h.b16 %v450
      %v907 = vunpack.c.l.b16 %v451
      %v908 = vunpack.c.h.b16 %v451
      %v909 = vunpack.c.l.b16 %v452
      %v910 = vunpack.c.h.b16 %v452
      %v911 = vunpack.c.l.b16 %v453
      %v912 = vunpack.c.h.b16 %v453
      %v913 = vunpack.c.l.b16 %v454
      %v914 = vunpack.c.h.b16 %v454
      %v915 = vunpack.c.l.b16 %v455
      %v916 = vunpack.c.h.b16 %v455
      %v917 = vunpack.c.l.b16 %v456
      %v918 = vunpack.c.h.b16 %v456
      %v919 = vunpack.c.l.b16 %v457
      %v920 = vunpack.c.h.b16 %v457
      %v921 = vunpack.c.l.b16 %v458
      %v922 = vunpack.c.h.b16 %v458
      %v923 = vunpack.c.l.b16 %v459
      %v924 = vunpack.c.h.b16 %v459
      %v925 = vunpack.c.l.b16 %v460
      %v926 = vunpack.c.h.b16 %v460
      %v927 = vunpack.c.l.b16 %v461
      %v928 = vunpack.c.h.b16 %v461
      %v929 = vunpack.c.l.b16 %v462
      %v930 = vunpack.c.h.b16 %v462
      %v931 = vunpack.c.l.b16 %v463
      %v932 = vunpack.c.h.b16 %v463
      %v933 = vunpack.c.l.b16 %v464
      %v934 = vunpack.c.h.b16 %v464
      %v935 = vunpack.c.l.b16 %v465
      %v936 = vunpack.c.h.b16 %v465
      %v937 = vunpack.c.l.b16 %v466
      %v938 = vunpack.c.h.b16 %v466
      %v939 = vunpack.c.l.b16 %v467
      %v940 = vunpack.c.h.b16 %v467
      %v941 = vunpack.c.l.b16 %v468
      %v942 = vunpack.c.h.b16 %v468
      %v943 = vunpack.c.l.b16 %v469
      %v944 = vunpack.c.h.b16 %v469
      %v945 = vunpack.c.l.b16 %v470
      %v946 = vunpack.c.h.b16 %v470
      %v947 = vunpack.c.l.b16 %v471
      %v948 = vunpack.c.h.b16 %v471
      %v949 = vunpack.c.l.b16 %v472
      %v950 = vunpack.c.h.b16 %v472
      %v951 = vunpack.c.l.b16 %v473
      %v952 = vunpack.c.h.b16 %v473
      %v953 = vunpack.c.l.b16 %v474
      %v954 = vunpack.c.h.b16 %v474
      %v955 = vunpack.c.l.b16 %v475
      %v956 = vunpack.c.h.b16 %v475
      %v957 = vunpack.c.l.b16 %v476
      %v958 = vunpack.c.h.b16 %v476
      %v959 = vunpack.c.l.b16 %v477
      %v960 = vunpack.c.h.b16 %v477
      %v961 = vunpack.c.l.b16 %v478
      %v962 = vunpack.c.h.b16 %v478
      %v963 = vunpack.c.l.b16 %v479
      %v964 = vunpack.c.h.b16 %v479
      %v965 = vunpack.c.l.b16 %v480
      %v966 = vunpack.c.h.b16 %v480
      %v967 = vunpack.c.l.b16 %v481
      %v968 = vunpack.c.h.b16 %v481
      %v969 = vunpack.c.l.b16 %v482
      %v970 = vunpack.c.h.b16 %v482
      %v971 = vunpack.c.l.b16 %v483
      %v972 = vunpack.c.h.b16 %v483
      %v973 = vunpack.c.l.b16 %v484
      %v974 = vunpack.c.h.b16 %v484
      %v975 = vunpack.c.l.b16 %v485
      %v976 = vunpack.c.h.b16 %v485
      %v977 = vunpack.c.l.b16 %v486
      %v978 = vunpack.c.h.b16 %v486
      %v979 = vunpack.c.l.b16 %v487
      %v980 = vunpack.c.h.b16 %v487
      %v981 = vunpack.c.l.b16 %v488
      %v982 = vunpack.c.h.b16 %v488
      %v983 = vunpack.c.l.b16 %v489
      %v984 = vunpack.c.h.b16 %v489
      %v985 = vunpack.c.l.b16 %v490
      %v986 = vunpack.c.h.b16 %v490
      %v987 = vunpack.c.l.b16 %v491
      %v988 = vunpack.c.h.b16 %v491
      %v989 = vunpack.c.l.b16 %v492
      %v990 = vunpack.c.h.b16 %v492
      %v991 = vunpack.c.l.b16 %v493
      %v992 = vunpack.c.h.b16 %v493
      %v993 = vunpack.c.l.b16 %v494
      %v994 = vunpack.c.h.b16 %v494
      %v995 = vunpack.c.l.b16 %v495
      %v996 = vunpack.c.h.b16 %v495
      %v997 = vunpack.c.l.b16 %v496
      %v998 = vunpack.c.h.b16 %v496
      %v999 = vunpack.c.l.b16 %v497
      %v1000 = vunpack.c.h.b16 %v497
      %v1001 = vunpack.c.l.b16 %v498
      %v1002 = vunpack.c.h.b16 %v498
      %v1003 = vunpack.c.l.b16 %v499
      %v1004 = vunpack.c.h.b16 %v499
      %v1005 = vunpack.c.l.b16 %v500
      %v1006 = vunpack.c.h.b16 %v500
      %v1007 = vunpack.c.l.b16 %v501
      %v1008 = vunpack.c.h.b16 %v501
      %v1009 = vunpack.c.l.b16 %v502
      %v1010 = vunpack.c.h.b16 %v502
      %v1011 = vunpack.c.l.b16 %v503
      %v1012 = vunpack.c.h.b16 %v503
      %v1013 = vunpack.c.l.b16 %v504
      %v1014 = vunpack.c.h.b16 %v504
      %v1015 = vunpack.c.l.b16 %v505
      %v1016 = vunpack.c.h.b16 %v505
      %v1017 = vunpack.c.l.b16 %v506
      %v1018 = vunpack.c.h.b16 %v506
      %v1019 = vunpack.c.l.b16 %v507
      %v1020 = vunpack.c.h.b16 %v507
      %v1021 = vunpack.c.l.b16 %v508
      %v1022 = vunpack.c.h.b16 %v508
      %v1023 = vunpack.c.l.b16 %v509
      %v1024 = vunpack.c.h.b16 %v509
      %v1025 = vunpack.c.l.b16 %v510
      %v1026 = vunpack.c.h.b16 %v510
      %v1027 = vunpack.c.l.b16 %v511
      %v1028 = vunpack.c.h.b16 %v511
      %v1029 = vunpack.c.l.b16 %v512
      %v1030 = vunpack.c.h.b16 %v512
      %v1031 = vunpack.c.l.b16 %v513
      %v1032 = vunpack.c.h.b16 %v513
      %v1033 = vunpack.c.l.b16 %v514
      %v1034 = vunpack.c.h.b16 %v514
      %v1035 = vunpack.c.l.b16 %v515
      %v1036 = vunpack.c.h.b16 %v515
      %v1037 = vunpack.c.l.b16 %v516
      %v1038 = vunpack.c.h.b16 %v516
      %v1039 = vunpack.c.l.b16 %v517
      %v1040 = vunpack.c.h.b16 %v517
      %v1041 = vunpack.c.l.b16 %v518
      %v1042 = vunpack.c.h.b16 %v518
      %v1043 = vunpack.c.l.b16 %v519
      %v1044 = vunpack.c.h.b16 %v519
      %v1045 = vunpack.c.l.b16 %v520
      %v1046 = vunpack.c.h.b16 %v520
      %v1047 = vunpack.c.l.b16 %v521
      %v1048 = vunpack.c.h.b16 %v521
      %v1049 = vunpack.c.l.b16 %v522
      %v1050 = vunpack.c.h.b16 %v522
      %v1051 = vunpack.c.l.b16 %v523
      %v1052 = vunpack.c.h.b16 %v523
      %v1053 = vunpack.c.l.b16 %v524
      %v1054 = vunpack.c.h.b16 %v524
      %v1055 = vunpack.c.l.b16 %v525
      %v1056 = vunpack.c.h.b16 %v525
      %v1057 = vunpack.c.l.b16 %v526
      %v1058 = vunpack.c.h.b16 %v526
      %v1059 = vunpack.c.l.b16 %v527
      %v1060 = vunpack.c.h.b16 %v527
      %v1061 = vunpack.c.l.b16 %v528
      %v1062 = vunpack.c.h.b16 %v528
      %v1063 = vunpack.c.l.b16 %v529
      %v1064 = vunpack.c.h.b16 %v529
      %v1065 = vunpack.c.l.b16 %v530
      %v1066 = vunpack.c.h.b16 %v530
      %v1067 = vunpack.c.l.b16 %v531
      %v1068 = vunpack.c.h.b16 %v531
      %v1069 = vunpack.c.l.b16 %v532
      %v1070 = vunpack.c.h.b16 %v532
      %v1071 = vunpack.c.l.b16 %v533
      %v1072 = vunpack.c.h.b16 %v533
      %v1073 = vunpack.c.l.b16 %v534
      %v1074 = vunpack.c.h.b16 %v534
      %v1075 = vunpack.c.l.b16 %v535
      %v1076 = vunpack.c.h.b16 %v535
      %v1077 = vunpack.c.l.b16 %v536
      %v1078 = vunpack.c.h.b16 %v536
      %v1079 = vunpack.c.l.b16 %v537
      %v1080 = vunpack.c.h.b16 %v537
      %v1081 = vunpack.c.l.b16 %v538
      %v1082 = vunpack.c.h.b16 %v538
      %v1083 = vunpack.c.l.b16 %v539
      %v1084 = vunpack.c.h.b16 %v539
      %v1085 = vunpack.c.l.b16 %v540
      %v1086 = vunpack.c.h.b16 %v540
      %v1087 = vunpack.c.l.b16 %v541
      %v1088 = vunpack.c.h.b16 %v541
      %v1089 = vunpack.c.l.b16 %v542
      %v1090 = vunpack.c.h.b16 %v542
      %v1091 = vunpack.c.l.b16 %v543
      %v1092 = vunpack.c.h.b16 %v543
      %v1093 = vunpack.c.l.b16 %v544
      %v1094 = vunpack.c.h.b16 %v544
      %v1095 = vunpack.c.l.b16 %v545
      %v1096 = vunpack.c.h.b16 %v545
      %v1097 = vunpack.c.l.b16 %v546
      %v1098 = vunpack.c.h.b16 %v546
      %v1099 = vunpack.c.l.b16 %v547
      %v1100 = vunpack.c.h.b16 %v547
      %v1101 = vunpack.c.l.b16 %v548
      %v1102 = vunpack.c.h.b16 %v548
      %v1103 = vunpack.c.l.b16 %v549
      %v1104 = vunpack.c.h.b16 %v549
      %v1105 = vunpack.c.l.b16 %v550
      %v1106 = vunpack.c.h.b16 %v550
      %v1107 = vunpack.c.l.b16 %v551
      %v1108 = vunpack.c.h.b16 %v551
      %v1109 = vunpack.c.l.b16 %v552
      %v1110 = vunpack.c.h.b16 %v552
      %v1111 = vunpack.c.l.b16 %v553
      %v1112 = vunpack.c.h.b16 %v553
      %v1113 = vunpack.c.l.b16 %v554
      %v1114 = vunpack.c.h.b16 %v554
      %v1115 = vunpack.c.l.b16 %v555
      %v1116 = vunpack.c.h.b16 %v555
      %v1117 = vunpack.c.l.b16 %v556
      %v1118 = vunpack.c.h.b16 %v556
      %v1119 = vunpack.c.l.b16 %v557
      %v1120 = vunpack.c.h.b16 %v557
      %v1121 = vunpack.c.l.b16 %v558
      %v1122 = vunpack.c.h.b16 %v558
      %v1123 = vunpack.c.l.b16 %v559
      %v1124 = vunpack.c.h.b16 %v559
      %v1125 = vunpack.c.l.b16 %v560
      %v1126 = vunpack.c.h.b16 %v560
      %v1127 = vunpack.c.l.b16 %v561
      %v1128 = vunpack.c.h.b16 %v561
      %v1129 = vunpack.c.l.b16 %v562
      %v1130 = vunpack.c.h.b16 %v562
      %v1131 = vunpack.c.l.b16 %v563
      %v1132 = vunpack.c.h.b16 %v563
      %v1133 = vunpack.c.l.b16 %v564
      %v1134 = vunpack.c.h.b16 %v564
      %v1135 = vunpack.c.l.b16 %v565
      %v1136 = vunpack.c.h.b16 %v565
      %v1137 = vunpack.c.l.b16 %v566
      %v1138 = vunpack.c.h.b16 %v566
      %v1139 = vunpack.c.l.b16 %v567
      %v1140 = vunpack.c.h.b16 %v567
      %v1141 = vunpack.c.l.b16 %v568
      %v1142 = vunpack.c.h.b16 %v568
      %v1143 = vunpack.c.l.b16 %v569
      %v1144 = vunpack.c.h.b16 %v569
      %v1145 = vunpack.c.l.b16 %v570
      %v1146 = vunpack.c.h.b16 %v570
      %v1147 = vunpack.c.l.b16 %v571
      %v1148 = vunpack.c.h.b16 %v571
      %v1149 = vunpack.c.l.b16 %v572
      %v1150 = vunpack.c.h.b16 %v572
      %v1151 = vunpack.c.l.b16 %v573
      %v1152 = vunpack.c.h.b16 %v573
      %v1153 = vunpack.c.l.b16 %v574
      %v1154 = vunpack.c.h.b16 %v574
      %v1155 = vunpack.c.l.b16 %v575
      %v1156 = vunpack.c.h.b16 %v575
      %v1157 = vunpack.c.l.b16 %v576
      %v1158 = vunpack.c.h.b16 %v576
      %v1159 = vunpack.c.l.b16 %v577
      %v1160 = vunpack.c.h.b16 %v577
      %v1161 = vunpack.c.l.b16 %v578
      %v1162 = vunpack.c.h.b16 %v578
      %v1163 = vunpack.c.l.b16 %v579
      %v1164 = vunpack.c.h.b16 %v579
      %v1165 = vunpack.c.l.b16 %v580
      %v1166 = vunpack.c.h.b16 %v580
      %v1167 = vunpack.c.l.b16 %v581
      %v1168 = vunpack.c.h.b16 %v581
      %v1169 = vunpack.c.l.b16 %v582
      %v1170 = vunpack.c.h.b16 %v582
      %v1171 = vunpack.c.l.b16 %v583
      %v1172 = vunpack.c.h.b16 %v583
      %v1173 = vunpack.c.l.b16 %v584
      %v1174 = vunpack.c.h.b16 %v584
      %v1175 = vunpack.c.l.b16 %v585
      %v1176 = vunpack.c.h.b16 %v585
      %v1177 = vunpack.c.l.b16 %v586
      %v1178 = vunpack.c.h.b16 %v586
      %v1179 = vunpack.c.l.b16 %v587
      %v1180 = vunpack.c.h.b16 %v587
      %v1181 = vunpack.c.l.b16 %v588
      %v1182 = vunpack.c.h.b16 %v588
      %v1183 = vunpack.c.l.b16 %v589
      %v1184 = vunpack.c.h.b16 %v589
      %v1185 = vunpack.c.l.b16 %v590
      %v1186 = vunpack.c.h.b16 %v590
      %v1187 = vunpack.c.l.b16 %v591
      %v1188 = vunpack.c.h.b16 %v591
      %v1189 = vunpack.c.l.b16 %v592
      %v1190 = vunpack.c.h.b16 %v592
      %v1191 = vunpack.c.l.b16 %v593
      %v1192 = vunpack.c.h.b16 %v593
      %v1193 = vunpack.c.l.b16 %v594
      %v1194 = vunpack.c.h.b16 %v594
      %v1195 = vunpack.c.l.b16 %v595
      %v1196 = vunpack.c.h.b16 %v595
      %v1197 = vunpack.c.l.b16 %v596
      %v1198 = vunpack.c.h.b16 %v596
      %v1199 = vunpack.c.l.b16 %v597
      %v1200 = vunpack.c.h.b16 %v597
      %v1201 = vunpack.c.l.b16 %v598
      %v1202 = vunpack.c.h.b16 %v598
      %v1203 = vunpack.c.l.b16 %v599
      %v1204 = vunpack.c.h.b16 %v599
      %v1205 = vunpack.c.l.b16 %v600
      %v1206 = vunpack.c.h.b16 %v600
      %v1207 = vunpack.c.l.b16 %v601
      %v1208 = vunpack.c.h.b16 %v601
      %v1209 = vunpack.c.l.b16 %v602
      %v1210 = vunpack.c.h.b16 %v602
      %v1211 = vunpack.c.l.b16 %v603
      %v1212 = vunpack.c.h.b16 %v603
      %v1213 = vunpack.c.l.b16 %v604
      %v1214 = vunpack.c.h.b16 %v604
      %v1215 = vunpack.c.l.b16 %v605
      %v1216 = vunpack.c.h.b16 %v605
      %v1217 = vunpack.c.l.b16 %v606
      %v1218 = vunpack.c.h.b16 %v606
      %v1219 = vunpack.c.l.b16 %v607
      %v1220 = vunpack.c.h.b16 %v607
      %v1221 = vunpack.c.l.b16 %v608
      %v1222 = vunpack.c.h.b16 %v608
      %v1223 = vunpack.c.l.b16 %v609
      %v1224 = vunpack.c.h.b16 %v609
      %v1225 = vunpack.c.l.b16 %v610
      %v1226 = vunpack.c.h.b16 %v610
      %v1227 = vunpack.c.l.b16 %v611
      %v1228 = vunpack.c.h.b16 %v611
      %v1229 = vunpack.c.l.b16 %v612
      %v1230 = vunpack.c.h.b16 %v612
      %v1231 = vunpack.c.l.b16 %v613
      %v1232 = vunpack.c.h.b16 %v613
      %v1233 = vunpack.c.l.b16 %v614
      %v1234 = vunpack.c.h.b16 %v614
      %v1235 = vunpack.c.l.b16 %v615
      %v1236 = vunpack.c.h.b16 %v615
      %v1237 = vunpack.c.l.b16 %v616
      %v1238 = vunpack.c.h.b16 %v616
      %v1239 = vunpack.c.l.b16 %v617
      %v1240 = vunpack.c.h.b16 %v617
      %v1241 = vunpack.c.l.b16 %v618
      %v1242 = vunpack.c.h.b16 %v618
      %v1243 = vunpack.c.l.b16 %v619
      %v1244 = vunpack.c.h.b16 %v619
      %v1245 = vunpack.c.l.b16 %v620
      %v1246 = vunpack.c.h.b16 %v620
      %v1247 = vunpack.c.l.b16 %v621
      %v1248 = vunpack.c.h.b16 %v621
      %v1249 = vunpack.c.l.b16 %v622
      %v1250 = vunpack.c.h.b16 %v622
      %v1251 = vunpack.c.l.b16 %v623
      %v1252 = vunpack.c.h.b16 %v623
      %v1253 = vunpack.c.l.b16 %v624
      %v1254 = vunpack.c.h.b16 %v624
      %v1255 = vunpack.c.l.b16 %v625
      %v1256 = vunpack.c.h.b16 %v625
      %v1257 = vunpack.c.l.b16 %v626
      %v1258 = vunpack.c.h.b16 %v626
      %v1259 = vunpack.c.l.b16 %v627
      %v1260 = vunpack.c.h.b16 %v627
      %v1261 = vunpack.c.l.b16 %v628
      %v1262 = vunpack.c.h.b16 %v628
      %v1263 = vunpack.c.l.b16 %v629
      %v1264 = vunpack.c.h.b16 %v629
      %v1265 = vunpack.c.l.b16 %v630
      %v1266 = vunpack.c.h.b16 %v630
      %v1267 = vunpack.c.l.b16 %v631
      %v1268 = vunpack.c.h.b16 %v631
      %v1269 = vunpack.c.l.b16 %v632
      %v1270 = vunpack.c.h.b16 %v632
      %v1271 = vunpack.c.l.b16 %v633
      %v1272 = vunpack.c.h.b16 %v633
      %v1273 = vunpack.c.l.b16 %v634
      %v1274 = vunpack.c.h.b16 %v634
      %v1275 = vunpack.c.l.b16 %v635
      %v1276 = vunpack.c.h.b16 %v635
      %v1277 = vunpack.c.l.b16 %v636
      %v1278 = vunpack.c.h.b16 %v636
      %v1279 = vunpack.c.l.b16 %v637
      %v1280 = vunpack.c.h.b16 %v637
      %v1281 = vunpack.c.l.b16 %v638
      %v1282 = vunpack.c.h.b16 %v638
      %v1283 = vunpack.c.l.b16 %v639
      %v1284 = vunpack.c.h.b16 %v639
      %v1285 = vpack.c.b16 %v897, %v893
      %v1286 = vpack.c.b16 %v898, %v894
      %v1287 = vpack.c.b16 %v899, %v895
      %v1288 = vpack.c.b16 %v900, %v896
      %v1289 = vpack.c.b16 %v905, %v901
      %v1290 = vpack.c.b16 %v906, %v902
      %v1291 = vpack.c.b16 %v907, %v903
      %v1292 = vpack.c.b16 %v908, %v904
      %v1293 = vpack.c.b16 %v913, %v909
      %v1294 = vpack.c.b16 %v914, %v910
      %v1295 = vpack.c.b16 %v915, %v911
      %v1296 = vpack.c.b16 %v916, %v912
      %v1297 = vpack.c.b16 %v921, %v917
      %v1298 = vpack.c.b16 %v922, %v918
      %v1299 = vpack.c.b16 %v923, %v919
      %v1300 = vpack.c.b16 %v924, %v920
      %v1301 = vpack.c.b16 %v929, %v925
      %v1302 = vpack.c.b16 %v930, %v926
      %v1303 = vpack.c.b16 %v931, %v927
      %v1304 = vpack.c.b16 %v932, %v928
      %v1305 = vpack.c.b16 %v937, %v933
      %v1306 = vpack.c.b16 %v938, %v934
      %v1307 = vpack.c.b16 %v939, %v935
      %v1308 = vpack.c.b16 %v940, %v936
      %v1309 = vpack.c.b16 %v945, %v941
      %v1310 = vpack.c.b16 %v946, %v942
      %v1311 = vpack.c.b16 %v947, %v943
      %v1312 = vpack.c.b16 %v948, %v944
      %v1313 = vpack.c.b16 %v953, %v949
      %v1314 = vpack.c.b16 %v954, %v950
      %v1315 = vpack.c.b16 %v955, %v951
      %v1316 = vpack.c.b16 %v956, %v952
      %v1317 = vpack.c.b16 %v961, %v957
      %v1318 = vpack.c.b16 %v962, %v958
      %v1319 = vpack.c.b16 %v963, %v959
      %v1320 = vpack.c.b16 %v964, %v960
      %v1321 = vpack.c.b16 %v969, %v965
      %v1322 = vpack.c.b16 %v970, %v966
      %v1323 = vpack.c.b16 %v971, %v967
      %v1324 = vpack.c.b16 %v972, %v968
      %v1325 = vpack.c.b16 %v977, %v973
      %v1326 = vpack.c.b16 %v978, %v974
      %v1327 = vpack.c.b16 %v979, %v975
      %v1328 = vpack.c.b16 %v980, %v976
      %v1329 = vpack.c.b16 %v985, %v981
      %v1330 = vpack.c.b16 %v986, %v982
      %v1331 = vpack.c.b16 %v987, %v983
      %v1332 = vpack.c.b16 %v988, %v984
      %v1333 = vpack.c.b16 %v993, %v989
      %v1334 = vpack.c.b16 %v994, %v990
      %v1335 = vpack.c.b16 %v995, %v991
      %v1336 = vpack.c.b16 %v996, %v992
      %v1337 = vpack.c.b16 %v1001, %v997
      %v1338 = vpack.c.b16 %v1002, %v998
      %v1339 = vpack.c.b16 %v1003, %v999
      %v1340 = vpack.c.b16 %v1004, %v1000
      %v1341 = vpack.c.b16 %v1009, %v1005
      %v1342 = vpack.c.b16 %v1010, %v1006
      %v1343 = vpack.c.b16 %v1011, %v1007
      %v1344 = vpack.c.b16 %v1012, %v1008
      %v1345 = vpack.c.b16 %v1017, %v1013
      %v1346 = vpack.c.b16 %v1018, %v1014
      %v1347 = vpack.c.b16 %v1019, %v1015
      %v1348 = vpack.c.b16 %v1020, %v1016
      %v1349 = vpack.c.b16 %v1025, %v1021
      %v1350 = vpack.c.b16 %v1026, %v1022
      %v1351 = vpack.c.b16 %v1027, %v1023
      %v1352 = vpack.c.b16 %v1028, %v1024
      %v1353 = vpack.c.b16 %v1033, %v1029
      %v1354 = vpack.c.b16 %v1034, %v1030
      %v1355 = vpack.c.b16 %v1035, %v1031
      %v1356 = vpack.c.b16 %v1036, %v1032
      %v1357 = vpack.c.b16 %v1041, %v1037
      %v1358 = vpack.c.b16 %v1042, %v1038
      %v1359 = vpack.c.b16 %v1043, %v1039
      %v1360 = vpack.c.b16 %v1044, %v1040
      %v1361 = vpack.c.b16 %v1049, %v1045
      %v1362 = vpack.c.b16 %v1050, %v1046
      %v1363 = vpack.c.b16 %v1051, %v1047
      %v1364 = vpack.c.b16 %v1052, %v1048
      %v1365 = vpack.c.b16 %v1057, %v1053
      %v1366 = vpack.c.b16 %v1058, %v1054
      %v1367 = vpack.c.b16 %v1059, %v1055
      %v1368 = vpack.c.b16 %v1060, %v1056
      %v1369 = vpack.c.b16 %v1065, %v1061
      %v1370 = vpack.c.b16 %v1066, %v1062
      %v1371 = vpack.c.b16 %v1067, %v1063
      %v1372 = vpack.c.b16 %v1068, %v1064
      %v1373 = vpack.c.b16 %v1073, %v1069
      %v1374 = vpack.c.b16 %v1074, %v1070
      %v1375 = vpack.c.b16 %v1075, %v1071
      %v1376 = vpack.c.b16 %v1076, %v1072
      %v1377 = vpack.c.b16 %v1081, %v1077
      %v1378 = vpack.c.b16 %v1082, %v1078
      %v1379 = vpack.c.b16 %v1083, %v1079
      %v1380 = vpack.c.b16 %v1084, %v1080
      %v1381 = vpack.c.b16 %v1089, %v1085
      %v1382 = vpack.c.b16 %v1090, %v1086
      %v1383 = vpack.c.b16 %v1091, %v1087
      %v1384 = vpack.c.b16 %v1092, %v1088
      %v1385 = vpack.c.b16 %v1097, %v1093
      %v1386 = vpack.c.b16 %v1098, %v1094
      %v1387 = vpack.c.b16 %v1099, %v1095
      %v1388 = vpack.c.b16 %v1100, %v1096
      %v1389 = vpack.c.b16 %v1105, %v1101
      %v1390 = vpack.c.b16 %v1106, %v1102
      %v1391 = vpack.c.b16 %v1107, %v1103
      %v1392 = vpack.c.b16 %v1108, %v1104
      %v1393 = vpack.c.b16 %v1113, %v1109
      %v1394 = vpack.c.b16 %v1114, %v1110
      %v1395 = vpack.c.b16 %v1115, %v1111
      %v1396 = vpack.c.b16 %v1116, %v1112
      %v1397 = vpack.c.b16 %v1121, %v1117
      %v1398 = vpack.c.b16 %v1122, %v1118
      %v1399 = vpack.c.b16 %v1123, %v1119
      %v1400 = vpack.c.b16 %v1124, %v1120
      %v1401 = vpack.c.b16 %v1129, %v1125
      %v1402 = vpack.c.b16 %v1130, %v1126
      %v1403 = vpack.c.b16 %v1131, %v1127
      %v1404 = vpack.c.b16 %v1132, %v1128
      %v1405 = vpack.c.b16 %v1137, %v1133
      %v1406 = vpack.c.b16 %v1138, %v1134
      %v1407 = vpack.c.b16 %v1139, %v1135
      %v1408 = vpack.c.b16 %v1140, %v1136
      %v1409 = vpack.c.b16 %v1145, %v1141
      %v1410 = vpack.c.b16 %v1146, %v1142
      %v1411 = vpack.c.b16 %v1147, %v1143
      %v1412 = vpack.c.b16 %v1148, %v1144
      %v1413 = vpack.c.b16 %v1153, %v1149
      %v1414 = vpack.c.b16 %v1154, %v1150
      %v1415 = vpack.c.b16 %v1155, %v1151
      %v1416 = vpack.c.b16 %v1156, %v1152
      %v1417 = vpack.c.b16 %v1161, %v1157
      %v1418 = vpack.c.b16 %v1162, %v1158
      %v1419 = vpack.c.b16 %v1163, %v1159
      %v1420 = vpack.c.b16 %v1164, %v1160
      %v1421 = vpack.c.b16 %v1169, %v1165
      %v1422 = vpack.c.b16 %v1170, %v1166
      %v1423 = vpack.c.b16 %v1171, %v1167
      %v1424 = vpack.c.b16 %v1172, %v1168
      %v1425 = vpack.c.b16 %v1177, %v1173
      %v1426 = vpack.c.b16 %v1178, %v1174
      %v1427 = vpack.c.b16 %v1179, %v1175
      %v1428 = vpack.c.b16 %v1180, %v1176
      %v1429 = vpack.c.b16 %v1185, %v1181
      %v1430 = vpack.c.b16 %v1186, %v1182
      %v1431 = vpack.c.b16 %v1187, %v1183
      %v1432 = vpack.c.b16 %v1188, %v1184
      %v1433 = vpack.c.b16 %v1193, %v1189
      %v1434 = vpack.c.b16 %v1194, %v1190
      %v1435 = vpack.c.b16 %v1195, %v1191
      %v1436 = vpack.c.b16 %v1196, %v1192
      %v1437 = vpack.c.b16 %v1201, %v1197
      %v1438 = vpack.c.b16 %v1202, %v1198
      %v1439 = vpack.c.b16 %v1203, %v1199
      %v1440 = vpack.c.b16 %v1204, %v1200
      %v1441 = vpack.c.b16 %v1209, %v1205
      %v1442 = vpack.c.b16 %v1210, %v1206
      %v1443 = vpack.c.b16 %v1211, %v1207
      %v1444 = vpack.c.b16 %v1212, %v1208
      %v1445 = vpack.c.b16 %v1217, %v1213
      %v1446 = vpack.c.b16 %v1218, %v1214
      %v1447 = vpack.c.b16 %v1219, %v1215
      %v1448 = vpack.c.b16 %v1220, %v1216
      %v1449 = vpack.c.b16 %v1225, %v1221
      %v1450 = vpack.c.b16 %v1226, %v1222
      %v1451 = vpack.c.b16 %v1227, %v1223
      %v1452 = vpack.c.b16 %v1228, %v1224
      %v1453 = vpack.c.b16 %v1233, %v1229
      %v1454 = vpack.c.b16 %v1234, %v1230
      %v1455 = vpack.c.b16 %v1235, %v1231
      %v1456 = vpack.c.b16 %v1236, %v1232
      %v1457 = vpack.c.b16 %v1241, %v1237
      %v1458 = vpack.c.b16 %v1242, %v1238
      %v1459 = vpack.c.b16 %v1243, %v1239
      %v1460 = vpack.c.b16 %v1244, %v1240
      %v1461 = vpack.c.b16 %v1249, %v1245
      %v1462 = vpack.c.b16 %v1250, %v1246
      %v1463 = vpack.c.b16 %v1251, %v1247
      %v1464 = vpack.c.b16 %v1252, %v1248
      %v1465 = vpack.c.b16 %v1257, %v1253
      %v1466 = vpack.c.b16 %v1258, %v1254
      %v1467 = vpack.c.b16 %v1259, %v1255
      %v1468 = vpack.c.b16 %v1260, %v1256
      %v1469 = vpack.c.b16 %v1265, %v1261
      %v1470 = vpack.c.b16 %v1266, %v1262
      %v1471 = vpack.c.b16 %v1267, %v1263
      %v1472 = vpack.c.b16 %v1268, %v1264
      %v1473 = vpack.c.b16 %v1273, %v1269
      %v1474 = vpack.c.b16 %v1274, %v1270
      %v1475 = vpack.c.b16 %v1275, %v1271
      %v1476 = vpack.c.b16 %v1276, %v1272
      %v1477 = vpack.c.b16 %v1281, %v1277
      %v1478 = vpack.c.b16 %v1282, %v1278
      %v1479 = vpack.c.b16 %v1283, %v1279
      %v1480 = vpack.c.b16 %v1284, %v1280
      %vm1677 = vcmask 130048
      %v1679 = vsel %vm1677, %v690, 0
      %1681 = vmatprep.subr.bf16.mxu0 %v1314
      %1682 = vmatpush1.bf16.msra.mxu0 %v1313
      %1683 = vmatprep.subr.bf16.mxu0 %v1310
      %1684 = vmatpush1.bf16.msra.mxu0 %v1309
      %1685 = vmatprep.subr.bf16.mxu0 %v1306
      %1686 = vmatpush1.bf16.msra.mxu0 %v1305
      %1687 = vmatprep.subr.bf16.mxu0 %v1302
      %1688 = vmatpush1.bf16.msra.mxu0 %v1301
      %1689 = vmatprep.subr.bf16.mxu0 %v1298
      %1690 = vmatpush1.bf16.msra.mxu0 %v1297
      %1691 = vmatprep.subr.bf16.mxu0 %v1294
      %1692 = vmatpush1.bf16.msra.mxu0 %v1293
      %1693 = vmatprep.subr.bf16.mxu0 %v1290
      %1694 = vmatpush1.bf16.msra.mxu0 %v1289
      %1695 = vmatprep.subr.bf16.mxu0 %v1286
      %1696 = vmatpush1.bf16.msra.mxu0 %v1285
      %1697 = vmatprep.subr.bf16.mxu0 %v1346
      %1698 = vmatpush2.bf16.msra.mxu0 %v1345
      %1699 = vmatprep.subr.bf16.mxu0 %v1342
      %1700 = vmatpush2.bf16.msra.mxu0 %v1341
      %1701 = vmatprep.subr.bf16.mxu0 %v1338
      %1702 = vmatpush2.bf16.msra.mxu0 %v1337
      %1703 = vmatprep.subr.bf16.mxu0 %v1334
      %1704 = vmatpush2.bf16.msra.mxu0 %v1333
      %1705 = vmatprep.subr.bf16.mxu0 %v1330
      %1706 = vmatpush2.bf16.msra.mxu0 %v1329
      %1707 = vmatprep.subr.bf16.mxu0 %v1326
      %1708 = vmatpush2.bf16.msra.mxu0 %v1325
      %1709 = vmatprep.subr.bf16.mxu0 %v1322
      %1710 = vmatpush2.bf16.msra.mxu0 %v1321
      %1711 = vmatprep.subr.bf16.mxu0 %v1318
      %1712 = vmatpush2.bf16.msra.mxu0 %v1317
      %1713 = vmatprep.mubr.bf16.mxu0 %v685
      %1714 = vmatmul.mubr.bf16.gmra.mxu0 %v684
      %v1715 = vpop.f32.mrf.mxu0
      %v1716 = vadd.f32 %v645, %v1715
      %v1717 = vpop.f32.mrf.mxu0
      %v1718 = vadd.f32 %v649, %v1717
      %v1719 = vpop.f32.mrf.mxu0
      %v1720 = vadd.f32 %v645, %v1719
      %v1721 = vpop.f32.mrf.mxu0
      %v1722 = vadd.f32 %v649, %v1721
      %1723 = vdwg.mxu0
      %1724 = vmatprep.subr.bf16.mxu0 %v1378
      %1725 = vmatpush1.bf16.msra.mxu0 %v1377
      %1726 = vmatprep.subr.bf16.mxu0 %v1374
      %1727 = vmatpush1.bf16.msra.mxu0 %v1373
      %1728 = vmatprep.subr.bf16.mxu0 %v1370
      %1729 = vmatpush1.bf16.msra.mxu0 %v1369
      %1730 = vmatprep.subr.bf16.mxu0 %v1366
      %1731 = vmatpush1.bf16.msra.mxu0 %v1365
      %1732 = vmatprep.subr.bf16.mxu0 %v1362
      %1733 = vmatpush1.bf16.msra.mxu0 %v1361
      %1734 = vmatprep.subr.bf16.mxu0 %v1358
      %1735 = vmatpush1.bf16.msra.mxu0 %v1357
      %1736 = vmatprep.subr.bf16.mxu0 %v1354
      %1737 = vmatpush1.bf16.msra.mxu0 %v1353
      %1738 = vmatprep.subr.bf16.mxu0 %v1350
      %1739 = vmatpush1.bf16.msra.mxu0 %v1349
      %1740 = vmatprep.subr.bf16.mxu0 %v1410
      %1741 = vmatpush2.bf16.msra.mxu0 %v1409
      %1742 = vmatprep.subr.bf16.mxu0 %v1406
      %1743 = vmatpush2.bf16.msra.mxu0 %v1405
      %1744 = vmatprep.subr.bf16.mxu0 %v1402
      %1745 = vmatpush2.bf16.msra.mxu0 %v1401
      %1746 = vmatprep.subr.bf16.mxu0 %v1398
      %1747 = vmatpush2.bf16.msra.mxu0 %v1397
      %1748 = vmatprep.subr.bf16.mxu0 %v1394
      %1749 = vmatpush2.bf16.msra.mxu0 %v1393
      %1750 = vmatprep.subr.bf16.mxu0 %v1390
      %1751 = vmatpush2.bf16.msra.mxu0 %v1389
      %1752 = vmatprep.subr.bf16.mxu0 %v1386
      %1753 = vmatpush2.bf16.msra.mxu0 %v1385
      %1754 = vmatprep.subr.bf16.mxu0 %v1382
      %1755 = vmatpush2.bf16.msra.mxu0 %v1381
      %1756 = vmatprep.mubr.bf16.mxu0 %v687
      %1757 = vmatmul.mubr.bf16.gmra.mxu0 %v686
      %v1758 = vpop.f32.mrf.mxu0
      %v1759 = vadd.f32 %v1716, %v1758
      %v1760 = vpop.f32.mrf.mxu0
      %v1761 = vadd.f32 %v1718, %v1760
      %v1762 = vpop.f32.mrf.mxu0
      %v1763 = vadd.f32 %v1720, %v1762
      %v1764 = vpop.f32.mrf.mxu0
      %v1765 = vadd.f32 %v1722, %v1764
      %1766 = vdwg.mxu0
      %1767 = vmatprep.subr.bf16.mxu0 %v1442
      %1768 = vmatpush1.bf16.msra.mxu0 %v1441
      %1769 = vmatprep.subr.bf16.mxu0 %v1438
      %1770 = vmatpush1.bf16.msra.mxu0 %v1437
      %1771 = vmatprep.subr.bf16.mxu0 %v1434
      %1772 = vmatpush1.bf16.msra.mxu0 %v1433
      %1773 = vmatprep.subr.bf16.mxu0 %v1430
      %1774 = vmatpush1.bf16.msra.mxu0 %v1429
      %1775 = vmatprep.subr.bf16.mxu0 %v1426
      %1776 = vmatpush1.bf16.msra.mxu0 %v1425
      %1777 = vmatprep.subr.bf16.mxu0 %v1422
      %1778 = vmatpush1.bf16.msra.mxu0 %v1421
      %1779 = vmatprep.subr.bf16.mxu0 %v1418
      %1780 = vmatpush1.bf16.msra.mxu0 %v1417
      %1781 = vmatprep.subr.bf16.mxu0 %v1414
      %1782 = vmatpush1.bf16.msra.mxu0 %v1413
      %1783 = vmatprep.subr.bf16.mxu0 %v1474
      %1784 = vmatpush2.bf16.msra.mxu0 %v1473
      %1785 = vmatprep.subr.bf16.mxu0 %v1470
      %1786 = vmatpush2.bf16.msra.mxu0 %v1469
      %1787 = vmatprep.subr.bf16.mxu0 %v1466
      %1788 = vmatpush2.bf16.msra.mxu0 %v1465
      %1789 = vmatprep.subr.bf16.mxu0 %v1462
      %1790 = vmatpush2.bf16.msra.mxu0 %v1461
      %1791 = vmatprep.subr.bf16.mxu0 %v1458
      %1792 = vmatpush2.bf16.msra.mxu0 %v1457
      %1793 = vmatprep.subr.bf16.mxu0 %v1454
      %1794 = vmatpush2.bf16.msra.mxu0 %v1453
      %1795 = vmatprep.subr.bf16.mxu0 %v1450
      %1796 = vmatpush2.bf16.msra.mxu0 %v1449
      %1797 = vmatprep.subr.bf16.mxu0 %v1446
      %1798 = vmatpush2.bf16.msra.mxu0 %v1445
      %1799 = vmatprep.mubr.bf16.mxu0 %v689
      %1800 = vmatmul.mubr.bf16.gmra.mxu0 %v688
      %v1801 = vpop.f32.mrf.mxu0
      %v1802 = vadd.f32 %v1759, %v1801
      %v1803 = vpop.f32.mrf.mxu0
      %v1804 = vadd.f32 %v1761, %v1803
      %v1805 = vpop.f32.mrf.mxu0
      %v1806 = vadd.f32 %v1763, %v1805
      %v1807 = vpop.f32.mrf.mxu0
      %v1808 = vadd.f32 %v1765, %v1807
      %1809 = vdwg.mxu0
      %1810 = vmatprep.subr.bf16.mxu0 0
      %1811 = vmatpush1.bf16.msra.mxu0 0
      %1812 = vmatprep.subr.bf16.mxu0 0
      %1813 = vmatpush1.bf16.msra.mxu0 0
      %1814 = vmatprep.subr.bf16.mxu0 0
      %1815 = vmatpush1.bf16.msra.mxu0 0
      %1816 = vmatprep.subr.bf16.mxu0 0
      %1817 = vmatpush1.bf16.msra.mxu0 0
      %1818 = vmatprep.subr.bf16.mxu0 0
      %1819 = vmatpush1.bf16.msra.mxu0 0
      %1820 = vmatprep.subr.bf16.mxu0 0
      %1821 = vmatpush1.bf16.msra.mxu0 0
      %1822 = vmatprep.subr.bf16.mxu0 0
      %1823 = vmatpush1.bf16.msra.mxu0 0
      %1824 = vmatprep.subr.bf16.mxu0 %v1478
      %1825 = vmatpush1.bf16.msra.mxu0 %v1477
      %1826 = vmatprep.subr.bf16.mxu0 0
      %1827 = vmatpush2.bf16.msra.mxu0 0
      %1828 = vmatprep.subr.bf16.mxu0 0
      %1829 = vmatpush2.bf16.msra.mxu0 0
      %1830 = vmatprep.subr.bf16.mxu0 0
      %1831 = vmatpush2.bf16.msra.mxu0 0
      %1832 = vmatprep.subr.bf16.mxu0 0
      %1833 = vmatpush2.bf16.msra.mxu0 0
      %1834 = vmatprep.subr.bf16.mxu0 0
      %1835 = vmatpush2.bf16.msra.mxu0 0
      %1836 = vmatprep.subr.bf16.mxu0 0
      %1837 = vmatpush2.bf16.msra.mxu0 0
      %1838 = vmatprep.subr.bf16.mxu0 0
      %1839 = vmatpush2.bf16.msra.mxu0 0
      %1840 = vmatprep.subr.bf16.mxu0 0
      %1841 = vmatpush2.bf16.msra.mxu0 0
      %1842 = vmatprep.mubr.bf16.mxu0 0
      %1843 = vmatmul.mubr.bf16.gmra.mxu0 %v1679
      %v1844 = vpop.f32.mrf.mxu0
      %v1845 = vadd.f32 %v1802, %v1844
      %v1846 = vpop.f32.mrf.mxu0
      %v1847 = vadd.f32 %v1804, %v1846
      %v1848 = vpop.f32.mrf.mxu0
      %v1849 = vadd.f32 %v1806, %v1848
      %v1850 = vpop.f32.mrf.mxu0
      %v1851 = vadd.f32 %v1808, %v1850
      %1852 = vdwg.mxu0
      %1853 = vmatprep.subr.bf16.mxu0 %v1316
      %1854 = vmatpush1.bf16.msra.mxu0 %v1315
      %1855 = vmatprep.subr.bf16.mxu0 %v1312
      %1856 = vmatpush1.bf16.msra.mxu0 %v1311
      %1857 = vmatprep.subr.bf16.mxu0 %v1308
      %1858 = vmatpush1.bf16.msra.mxu0 %v1307
      %1859 = vmatprep.subr.bf16.mxu0 %v1304
      %1860 = vmatpush1.bf16.msra.mxu0 %v1303
      %1861 = vmatprep.subr.bf16.mxu0 %v1300
      %1862 = vmatpush1.bf16.msra.mxu0 %v1299
      %1863 = vmatprep.subr.bf16.mxu0 %v1296
      %1864 = vmatpush1.bf16.msra.mxu0 %v1295
      %1865 = vmatprep.subr.bf16.mxu0 %v1292
      %1866 = vmatpush1.bf16.msra.mxu0 %v1291
      %1867 = vmatprep.subr.bf16.mxu0 %v1288
      %1868 = vmatpush1.bf16.msra.mxu0 %v1287
      %1869 = vmatprep.subr.bf16.mxu0 %v1348
      %1870 = vmatpush2.bf16.msra.mxu0 %v1347
      %1871 = vmatprep.subr.bf16.mxu0 %v1344
      %1872 = vmatpush2.bf16.msra.mxu0 %v1343
      %1873 = vmatprep.subr.bf16.mxu0 %v1340
      %1874 = vmatpush2.bf16.msra.mxu0 %v1339
      %1875 = vmatprep.subr.bf16.mxu0 %v1336
      %1876 = vmatpush2.bf16.msra.mxu0 %v1335
      %1877 = vmatprep.subr.bf16.mxu0 %v1332
      %1878 = vmatpush2.bf16.msra.mxu0 %v1331
      %1879 = vmatprep.subr.bf16.mxu0 %v1328
      %1880 = vmatpush2.bf16.msra.mxu0 %v1327
      %1881 = vmatprep.subr.bf16.mxu0 %v1324
      %1882 = vmatpush2.bf16.msra.mxu0 %v1323
      %1883 = vmatprep.subr.bf16.mxu0 %v1320
      %1884 = vmatpush2.bf16.msra.mxu0 %v1319
      %1885 = vmatprep.mubr.bf16.mxu0 %v685
      %1886 = vmatmul.mubr.bf16.gmra.mxu0 %v684
      %v1887 = vpop.f32.mrf.mxu0
      %v1888 = vadd.f32 %v653, %v1887
      %v1889 = vpop.f32.mrf.mxu0
      %v1890 = vadd.f32 %v657, %v1889
      %v1891 = vpop.f32.mrf.mxu0
      %v1892 = vadd.f32 %v653, %v1891
      %v1893 = vpop.f32.mrf.mxu0
      %v1894 = vadd.f32 %v657, %v1893
      %1895 = vdwg.mxu0
      %1896 = vmatprep.subr.bf16.mxu0 %v1380
      %1897 = vmatpush1.bf16.msra.mxu0 %v1379
      %1898 = vmatprep.subr.bf16.mxu0 %v1376
      %1899 = vmatpush1.bf16.msra.mxu0 %v1375
      %1900 = vmatprep.subr.bf16.mxu0 %v1372
      %1901 = vmatpush1.bf16.msra.mxu0 %v1371
      %1902 = vmatprep.subr.bf16.mxu0 %v1368
      %1903 = vmatpush1.bf16.msra.mxu0 %v1367
      %1904 = vmatprep.subr.bf16.mxu0 %v1364
      %1905 = vmatpush1.bf16.msra.mxu0 %v1363
      %1906 = vmatprep.subr.bf16.mxu0 %v1360
      %1907 = vmatpush1.bf16.msra.mxu0 %v1359
      %1908 = vmatprep.subr.bf16.mxu0 %v1356
      %1909 = vmatpush1.bf16.msra.mxu0 %v1355
      %1910 = vmatprep.subr.bf16.mxu0 %v1352
      %1911 = vmatpush1.bf16.msra.mxu0 %v1351
      %1912 = vmatprep.subr.bf16.mxu0 %v1412
      %1913 = vmatpush2.bf16.msra.mxu0 %v1411
      %1914 = vmatprep.subr.bf16.mxu0 %v1408
      %1915 = vmatpush2.bf16.msra.mxu0 %v1407
      %1916 = vmatprep.subr.bf16.mxu0 %v1404
      %1917 = vmatpush2.bf16.msra.mxu0 %v1403
      %1918 = vmatprep.subr.bf16.mxu0 %v1400
      %1919 = vmatpush2.bf16.msra.mxu0 %v1399
      %1920 = vmatprep.subr.bf16.mxu0 %v1396
      %1921 = vmatpush2.bf16.msra.mxu0 %v1395
      %1922 = vmatprep.subr.bf16.mxu0 %v1392
      %1923 = vmatpush2.bf16.msra.mxu0 %v1391
      %1924 = vmatprep.subr.bf16.mxu0 %v1388
      %1925 = vmatpush2.bf16.msra.mxu0 %v1387
      %1926 = vmatprep.subr.bf16.mxu0 %v1384
      %1927 = vmatpush2.bf16.msra.mxu0 %v1383
      %1928 = vmatprep.mubr.bf16.mxu0 %v687
      %1929 = vmatmul.mubr.bf16.gmra.mxu0 %v686
      %v1930 = vpop.f32.mrf.mxu0
      %v1931 = vadd.f32 %v1888, %v1930
      %v1932 = vpop.f32.mrf.mxu0
      %v1933 = vadd.f32 %v1890, %v1932
      %v1934 = vpop.f32.mrf.mxu0
      %v1935 = vadd.f32 %v1892, %v1934
      %v1936 = vpop.f32.mrf.mxu0
      %v1937 = vadd.f32 %v1894, %v1936
      %1938 = vdwg.mxu0
      %1939 = vmatprep.subr.bf16.mxu0 %v1444
      %1940 = vmatpush1.bf16.msra.mxu0 %v1443
      %1941 = vmatprep.subr.bf16.mxu0 %v1440
      %1942 = vmatpush1.bf16.msra.mxu0 %v1439
      %1943 = vmatprep.subr.bf16.mxu0 %v1436
      %1944 = vmatpush1.bf16.msra.mxu0 %v1435
      %1945 = vmatprep.subr.bf16.mxu0 %v1432
      %1946 = vmatpush1.bf16.msra.mxu0 %v1431
      %1947 = vmatprep.subr.bf16.mxu0 %v1428
      %1948 = vmatpush1.bf16.msra.mxu0 %v1427
      %1949 = vmatprep.subr.bf16.mxu0 %v1424
      %1950 = vmatpush1.bf16.msra.mxu0 %v1423
      %1951 = vmatprep.subr.bf16.mxu0 %v1420
      %1952 = vmatpush1.bf16.msra.mxu0 %v1419
      %1953 = vmatprep.subr.bf16.mxu0 %v1416
      %1954 = vmatpush1.bf16.msra.mxu0 %v1415
      %1955 = vmatprep.subr.bf16.mxu0 %v1476
      %1956 = vmatpush2.bf16.msra.mxu0 %v1475
      %1957 = vmatprep.subr.bf16.mxu0 %v1472
      %1958 = vmatpush2.bf16.msra.mxu0 %v1471
      %1959 = vmatprep.subr.bf16.mxu0 %v1468
      %1960 = vmatpush2.bf16.msra.mxu0 %v1467
      %1961 = vmatprep.subr.bf16.mxu0 %v1464
      %1962 = vmatpush2.bf16.msra.mxu0 %v1463
      %1963 = vmatprep.subr.bf16.mxu0 %v1460
      %1964 = vmatpush2.bf16.msra.mxu0 %v1459
      %1965 = vmatprep.subr.bf16.mxu0 %v1456
      %1966 = vmatpush2.bf16.msra.mxu0 %v1455
      %1967 = vmatprep.subr.bf16.mxu0 %v1452
      %1968 = vmatpush2.bf16.msra.mxu0 %v1451
      %1969 = vmatprep.subr.bf16.mxu0 %v1448
      %1970 = vmatpush2.bf16.msra.mxu0 %v1447
      %1971 = vmatprep.mubr.bf16.mxu0 %v689
      %1972 = vmatmul.mubr.bf16.gmra.mxu0 %v688
      %v1973 = vpop.f32.mrf.mxu0
      %v1974 = vadd.f32 %v1931, %v1973
      %v1975 = vpop.f32.mrf.mxu0
      %v1976 = vadd.f32 %v1933, %v1975
      %v1977 = vpop.f32.mrf.mxu0
      %v1978 = vadd.f32 %v1935, %v1977
      %v1979 = vpop.f32.mrf.mxu0
      %v1980 = vadd.f32 %v1937, %v1979
      %1981 = vdwg.mxu0
      %1982 = vmatprep.subr.bf16.mxu0 0
      %1983 = vmatpush1.bf16.msra.mxu0 0
      %1984 = vmatprep.subr.bf16.mxu0 0
      %1985 = vmatpush1.bf16.msra.mxu0 0
      %1986 = vmatprep.subr.bf16.mxu0 0
      %1987 = vmatpush1.bf16.msra.mxu0 0
      %1988 = vmatprep.subr.bf16.mxu0 0
      %1989 = vmatpush1.bf16.msra.mxu0 0
      %1990 = vmatprep.subr.bf16.mxu0 0
      %1991 = vmatpush1.bf16.msra.mxu0 0
      %1992 = vmatprep.subr.bf16.mxu0 0
      %1993 = vmatpush1.bf16.msra.mxu0 0
      %1994 = vmatprep.subr.bf16.mxu0 0
      %1995 = vmatpush1.bf16.msra.mxu0 0
      %1996 = vmatprep.subr.bf16.mxu0 %v1480
      %1997 = vmatpush1.bf16.msra.mxu0 %v1479
      %1998 = vmatprep.subr.bf16.mxu0 0
      %1999 = vmatpush2.bf16.msra.mxu0 0
      %2000 = vmatprep.subr.bf16.mxu0 0
      %2001 = vmatpush2.bf16.msra.mxu0 0
      %2002 = vmatprep.subr.bf16.mxu0 0
      %2003 = vmatpush2.bf16.msra.mxu0 0
      %2004 = vmatprep.subr.bf16.mxu0 0
      %2005 = vmatpush2.bf16.msra.mxu0 0
      %2006 = vmatprep.subr.bf16.mxu0 0
      %2007 = vmatpush2.bf16.msra.mxu0 0
      %2008 = vmatprep.subr.bf16.mxu0 0
      %2009 = vmatpush2.bf16.msra.mxu0 0
      %2010 = vmatprep.subr.bf16.mxu0 0
      %2011 = vmatpush2.bf16.msra.mxu0 0
      %2012 = vmatprep.subr.bf16.mxu0 0
      %2013 = vmatpush2.bf16.msra.mxu0 0
      %2014 = vmatprep.mubr.bf16.mxu0 0
      %2015 = vmatmul.mubr.bf16.gmra.mxu0 %v1679
      %v2016 = vpop.f32.mrf.mxu0
      %v2017 = vadd.f32 %v1974, %v2016
      %v2018 = vpop.f32.mrf.mxu0
      %v2019 = vadd.f32 %v1976, %v2018
      %v2020 = vpop.f32.mrf.mxu0
      %v2021 = vadd.f32 %v1978, %v2020
      %v2022 = vpop.f32.mrf.mxu0
      %v2023 = vadd.f32 %v1980, %v2022
      %2024 = vdwg.mxu0
      %v2025 = vmax.f32 %v1845, 0.0
      %v2026 = vmax.f32 %v1847, 0.0
      %v2027 = vmax.f32 %v2017, 0.0
      %v2028 = vmax.f32 %v2019, 0.0
      %v2029 = vmax.f32 %v1849, 0.0
      %v2030 = vmax.f32 %v1851, 0.0
      %v2031 = vmax.f32 %v2021, 0.0
      %v2032 = vmax.f32 %v2023, 0.0
      %v2033 = vpack.c.bf16 %v2029, %v2025
      %v2034 = vpack.c.bf16 %v2030, %v2026
      %v2035 = vpack.c.bf16 %v2031, %v2027
      %v2036 = vpack.c.bf16 %v2032, %v2028
      %v2037 = vld [vmem:[%s4] sm:$0xff]
      %v2038 = vld [vmem:[%s4 + $0x8] sm:$0xff]
      %v2039 = vld [vmem:[%s4 + $0x10] sm:$0xff]
      %v2040 = vld [vmem:[%s4 + $0x18] sm:$0xff]
      %v2041 = vld [vmem:[%s4 + $0x20] sm:$0xff]
      %v2042 = vld [vmem:[%s4 + $0x28] sm:$0xff]
      %v2043 = vld [vmem:[%s4 + $0x30] sm:$0xff]
      %v2044 = vld [vmem:[%s4 + $0x38] sm:$0xff]
      %v2045 = vld [vmem:[%s4 + $0x40] sm:$0xff]
      %v2046 = vld [vmem:[%s4 + $0x48] sm:$0xff]
      %v2047 = vld [vmem:[%s4 + $0x50] sm:$0xff]
      %v2048 = vld [vmem:[%s4 + $0x58] sm:$0xff]
      %v2049 = vld [vmem:[%s4 + $0x60] sm:$0xff]
      %v2050 = vld [vmem:[%s4 + $0x68] sm:$0xff]
      %v2051 = vld [vmem:[%s4 + $0x70] sm:$0xff]
      %v2052 = vld [vmem:[%s4 + $0x78] sm:$0xff]
      %v2053 = vld [vmem:[%s4 + $0x80] sm:$0xff]
      %v2054 = vld [vmem:[%s4 + $0x88] sm:$0xff]
      %v2055 = vld [vmem:[%s4 + $0x90] sm:$0xff]
      %v2056 = vld [vmem:[%s4 + $0x98] sm:$0xff]
      %v2057 = vld [vmem:[%s4 + $0xa0] sm:$0xff]
      %v2058 = vld [vmem:[%s4 + $0xa8] sm:$0xff]
      %v2059 = vld [vmem:[%s4 + $0xb0] sm:$0xff]
      %v2060 = vld [vmem:[%s4 + $0xb8] sm:$0xff]
      %v2061 = vld [vmem:[%s4 + $0xc0] sm:$0xff]
      %v2062 = vld [vmem:[%s4 + $0xc8] sm:$0xff]
      %v2063 = vld [vmem:[%s4 + $0xd0] sm:$0xff]
      %v2064 = vld [vmem:[%s4 + $0xd8] sm:$0xff]
      %v2065 = vld [vmem:[%s4 + $0xe0] sm:$0xff]
      %v2066 = vld [vmem:[%s4 + $0xe8] sm:$0xff]
      %v2067 = vld [vmem:[%s4 + $0xf0] sm:$0xff]
      %v2068 = vld [vmem:[%s4 + $0xf8] sm:$0xff]
      %v2069 = vld [vmem:[%s4 + $0x100] sm:$0xff]
      %v2070 = vld [vmem:[%s4 + $0x108] sm:$0xff]
      %v2071 = vld [vmem:[%s4 + $0x110] sm:$0xff]
      %v2072 = vld [vmem:[%s4 + $0x118] sm:$0xff]
      %v2073 = vld [vmem:[%s4 + $0x120] sm:$0xff]
      %v2074 = vld [vmem:[%s4 + $0x128] sm:$0xff]
      %v2075 = vld [vmem:[%s4 + $0x130] sm:$0xff]
      %v2076 = vld [vmem:[%s4 + $0x138] sm:$0xff]
      %v2077 = vld [vmem:[%s4 + $0x140] sm:$0xff]
      %v2078 = vld [vmem:[%s4 + $0x148] sm:$0xff]
      %v2079 = vld [vmem:[%s4 + $0x150] sm:$0xff]
      %v2080 = vld [vmem:[%s4 + $0x158] sm:$0xff]
      %v2081 = vld [vmem:[%s4 + $0x160] sm:$0xff]
      %v2082 = vld [vmem:[%s4 + $0x168] sm:$0xff]
      %v2083 = vld [vmem:[%s4 + $0x170] sm:$0xff]
      %v2084 = vld [vmem:[%s4 + $0x178] sm:$0xff]
      %v2085 = vld [vmem:[%s4 + $0x180] sm:$0xff]
      %v2086 = vld [vmem:[%s4 + $0x188] sm:$0xff]
      %v2087 = vld [vmem:[%s4 + $0x190] sm:$0xff]
      %v2088 = vld [vmem:[%s4 + $0x198] sm:$0xff]
      %v2089 = vld [vmem:[%s4 + $0x1a0] sm:$0xff]
      %v2090 = vld [vmem:[%s4 + $0x1a8] sm:$0xff]
      %v2091 = vld [vmem:[%s4 + $0x1b0] sm:$0xff]
      %v2092 = vld [vmem:[%s4 + $0x1b8] sm:$0xff]
      %v2093 = vld [vmem:[%s4 + $0x1c0] sm:$0xff]
      %v2094 = vld [vmem:[%s4 + $0x1c8] sm:$0xff]
      %v2095 = vld [vmem:[%s4 + $0x1d0] sm:$0xff]
      %v2096 = vld [vmem:[%s4 + $0x1d8] sm:$0xff]
      %v2097 = vld [vmem:[%s4 + $0x1e0] sm:$0xff]
      %v2098 = vld [vmem:[%s4 + $0x1e8] sm:$0xff]
      %v2099 = vld [vmem:[%s4 + $0x1f0] sm:$0xff]
      %v2100 = vld [vmem:[%s4 + $0x1f8] sm:$0xff]
      %v2101 = vld [vmem:[%s5] sm:$0x3]
      %v2103 = vlaneseq
      %v2104 = vshrl.u32 %v2103, 7
      %v2105 = vsub.s32 0, %v2104
      %v2106 = vrot.slane %v2101, %v2105
      %v2107 = vlaneseq
      %v2108 = vshrl.u32 %v2107, 7
      %v2109 = vsub.s32 1, %v2108
      %v2110 = vrot.slane %v2101, %v2109
      %v2177 = vunpack.c.l.b16 %v2037
      %v2178 = vunpack.c.h.b16 %v2037
      %v2179 = vunpack.c.l.b16 %v2038
      %v2180 = vunpack.c.h.b16 %v2038
      %v2181 = vunpack.c.l.b16 %v2039
      %v2182 = vunpack.c.h.b16 %v2039
      %v2183 = vunpack.c.l.b16 %v2040
      %v2184 = vunpack.c.h.b16 %v2040
      %v2185 = vunpack.c.l.b16 %v2041
      %v2186 = vunpack.c.h.b16 %v2041
      %v2187 = vunpack.c.l.b16 %v2042
      %v2188 = vunpack.c.h.b16 %v2042
      %v2189 = vunpack.c.l.b16 %v2043
      %v2190 = vunpack.c.h.b16 %v2043
      %v2191 = vunpack.c.l.b16 %v2044
      %v2192 = vunpack.c.h.b16 %v2044
      %v2193 = vunpack.c.l.b16 %v2045
      %v2194 = vunpack.c.h.b16 %v2045
      %v2195 = vunpack.c.l.b16 %v2046
      %v2196 = vunpack.c.h.b16 %v2046
      %v2197 = vunpack.c.l.b16 %v2047
      %v2198 = vunpack.c.h.b16 %v2047
      %v2199 = vunpack.c.l.b16 %v2048
      %v2200 = vunpack.c.h.b16 %v2048
      %v2201 = vunpack.c.l.b16 %v2049
      %v2202 = vunpack.c.h.b16 %v2049
      %v2203 = vunpack.c.l.b16 %v2050
      %v2204 = vunpack.c.h.b16 %v2050
      %v2205 = vunpack.c.l.b16 %v2051
      %v2206 = vunpack.c.h.b16 %v2051
      %v2207 = vunpack.c.l.b16 %v2052
      %v2208 = vunpack.c.h.b16 %v2052
      %v2209 = vunpack.c.l.b16 %v2053
      %v2210 = vunpack.c.h.b16 %v2053
      %v2211 = vunpack.c.l.b16 %v2054
      %v2212 = vunpack.c.h.b16 %v2054
      %v2213 = vunpack.c.l.b16 %v2055
      %v2214 = vunpack.c.h.b16 %v2055
      %v2215 = vunpack.c.l.b16 %v2056
      %v2216 = vunpack.c.h.b16 %v2056
      %v2217 = vunpack.c.l.b16 %v2057
      %v2218 = vunpack.c.h.b16 %v2057
      %v2219 = vunpack.c.l.b16 %v2058
      %v2220 = vunpack.c.h.b16 %v2058
      %v2221 = vunpack.c.l.b16 %v2059
      %v2222 = vunpack.c.h.b16 %v2059
      %v2223 = vunpack.c.l.b16 %v2060
      %v2224 = vunpack.c.h.b16 %v2060
      %v2225 = vunpack.c.l.b16 %v2061
      %v2226 = vunpack.c.h.b16 %v2061
      %v2227 = vunpack.c.l.b16 %v2062
      %v2228 = vunpack.c.h.b16 %v2062
      %v2229 = vunpack.c.l.b16 %v2063
      %v2230 = vunpack.c.h.b16 %v2063
      %v2231 = vunpack.c.l.b16 %v2064
      %v2232 = vunpack.c.h.b16 %v2064
      %v2233 = vunpack.c.l.b16 %v2065
      %v2234 = vunpack.c.h.b16 %v2065
      %v2235 = vunpack.c.l.b16 %v2066
      %v2236 = vunpack.c.h.b16 %v2066
      %v2237 = vunpack.c.l.b16 %v2067
      %v2238 = vunpack.c.h.b16 %v2067
      %v2239 = vunpack.c.l.b16 %v2068
      %v2240 = vunpack.c.h.b16 %v2068
      %v2241 = vunpack.c.l.b16 %v2069
      %v2242 = vunpack.c.h.b16 %v2069
      %v2243 = vunpack.c.l.b16 %v2070
      %v2244 = vunpack.c.h.b16 %v2070
      %v2245 = vunpack.c.l.b16 %v2071
      %v2246 = vunpack.c.h.b16 %v2071
      %v2247 = vunpack.c.l.b16 %v2072
      %v2248 = vunpack.c.h.b16 %v2072
      %v2249 = vunpack.c.l.b16 %v2073
      %v2250 = vunpack.c.h.b16 %v2073
      %v2251 = vunpack.c.l.b16 %v2074
      %v2252 = vunpack.c.h.b16 %v2074
      %v2253 = vunpack.c.l.b16 %v2075
      %v2254 = vunpack.c.h.b16 %v2075
      %v2255 = vunpack.c.l.b16 %v2076
      %v2256 = vunpack.c.h.b16 %v2076
      %v2257 = vunpack.c.l.b16 %v2077
      %v2258 = vunpack.c.h.b16 %v2077
      %v2259 = vunpack.c.l.b16 %v2078
      %v2260 = vunpack.c.h.b16 %v2078
      %v2261 = vunpack.c.l.b16 %v2079
      %v2262 = vunpack.c.h.b16 %v2079
      %v2263 = vunpack.c.l.b16 %v2080
      %v2264 = vunpack.c.h.b16 %v2080
      %v2265 = vunpack.c.l.b16 %v2081
      %v2266 = vunpack.c.h.b16 %v2081
      %v2267 = vunpack.c.l.b16 %v2082
      %v2268 = vunpack.c.h.b16 %v2082
      %v2269 = vunpack.c.l.b16 %v2083
      %v2270 = vunpack.c.h.b16 %v2083
      %v2271 = vunpack.c.l.b16 %v2084
      %v2272 = vunpack.c.h.b16 %v2084
      %v2273 = vunpack.c.l.b16 %v2085
      %v2274 = vunpack.c.h.b16 %v2085
      %v2275 = vunpack.c.l.b16 %v2086
      %v2276 = vunpack.c.h.b16 %v2086
      %v2277 = vunpack.c.l.b16 %v2087
      %v2278 = vunpack.c.h.b16 %v2087
      %v2279 = vunpack.c.l.b16 %v2088
      %v2280 = vunpack.c.h.b16 %v2088
      %v2281 = vunpack.c.l.b16 %v2089
      %v2282 = vunpack.c.h.b16 %v2089
      %v2283 = vunpack.c.l.b16 %v2090
      %v2284 = vunpack.c.h.b16 %v2090
      %v2285 = vunpack.c.l.b16 %v2091
      %v2286 = vunpack.c.h.b16 %v2091
      %v2287 = vunpack.c.l.b16 %v2092
      %v2288 = vunpack.c.h.b16 %v2092
      %v2289 = vunpack.c.l.b16 %v2093
      %v2290 = vunpack.c.h.b16 %v2093
      %v2291 = vunpack.c.l.b16 %v2094
      %v2292 = vunpack.c.h.b16 %v2094
      %v2293 = vunpack.c.l.b16 %v2095
      %v2294 = vunpack.c.h.b16 %v2095
      %v2295 = vunpack.c.l.b16 %v2096
      %v2296 = vunpack.c.h.b16 %v2096
      %v2297 = vunpack.c.l.b16 %v2097
      %v2298 = vunpack.c.h.b16 %v2097
      %v2299 = vunpack.c.l.b16 %v2098
      %v2300 = vunpack.c.h.b16 %v2098
      %v2301 = vunpack.c.l.b16 %v2099
      %v2302 = vunpack.c.h.b16 %v2099
      %v2303 = vunpack.c.l.b16 %v2100
      %v2304 = vunpack.c.h.b16 %v2100
      %v2305 = vpack.c.b16 %v2179, %v2177
      %v2306 = vpack.c.b16 %v2180, %v2178
      %v2307 = vpack.c.b16 %v2183, %v2181
      %v2308 = vpack.c.b16 %v2184, %v2182
      %v2309 = vpack.c.b16 %v2187, %v2185
      %v2310 = vpack.c.b16 %v2188, %v2186
      %v2311 = vpack.c.b16 %v2191, %v2189
      %v2312 = vpack.c.b16 %v2192, %v2190
      %v2313 = vpack.c.b16 %v2195, %v2193
      %v2314 = vpack.c.b16 %v2196, %v2194
      %v2315 = vpack.c.b16 %v2199, %v2197
      %v2316 = vpack.c.b16 %v2200, %v2198
      %v2317 = vpack.c.b16 %v2203, %v2201
      %v2318 = vpack.c.b16 %v2204, %v2202
      %v2319 = vpack.c.b16 %v2207, %v2205
      %v2320 = vpack.c.b16 %v2208, %v2206
      %v2321 = vpack.c.b16 %v2211, %v2209
      %v2322 = vpack.c.b16 %v2212, %v2210
      %v2323 = vpack.c.b16 %v2215, %v2213
      %v2324 = vpack.c.b16 %v2216, %v2214
      %v2325 = vpack.c.b16 %v2219, %v2217
      %v2326 = vpack.c.b16 %v2220, %v2218
      %v2327 = vpack.c.b16 %v2223, %v2221
      %v2328 = vpack.c.b16 %v2224, %v2222
      %v2329 = vpack.c.b16 %v2227, %v2225
      %v2330 = vpack.c.b16 %v2228, %v2226
      %v2331 = vpack.c.b16 %v2231, %v2229
      %v2332 = vpack.c.b16 %v2232, %v2230
      %v2333 = vpack.c.b16 %v2235, %v2233
      %v2334 = vpack.c.b16 %v2236, %v2234
      %v2335 = vpack.c.b16 %v2239, %v2237
      %v2336 = vpack.c.b16 %v2240, %v2238
      %v2337 = vpack.c.b16 %v2243, %v2241
      %v2338 = vpack.c.b16 %v2244, %v2242
      %v2339 = vpack.c.b16 %v2247, %v2245
      %v2340 = vpack.c.b16 %v2248, %v2246
      %v2341 = vpack.c.b16 %v2251, %v2249
      %v2342 = vpack.c.b16 %v2252, %v2250
      %v2343 = vpack.c.b16 %v2255, %v2253
      %v2344 = vpack.c.b16 %v2256, %v2254
      %v2345 = vpack.c.b16 %v2259, %v2257
      %v2346 = vpack.c.b16 %v2260, %v2258
      %v2347 = vpack.c.b16 %v2263, %v2261
      %v2348 = vpack.c.b16 %v2264, %v2262
      %v2349 = vpack.c.b16 %v2267, %v2265
      %v2350 = vpack.c.b16 %v2268, %v2266
      %v2351 = vpack.c.b16 %v2271, %v2269
      %v2352 = vpack.c.b16 %v2272, %v2270
      %v2353 = vpack.c.b16 %v2275, %v2273
      %v2354 = vpack.c.b16 %v2276, %v2274
      %v2355 = vpack.c.b16 %v2279, %v2277
      %v2356 = vpack.c.b16 %v2280, %v2278
      %v2357 = vpack.c.b16 %v2283, %v2281
      %v2358 = vpack.c.b16 %v2284, %v2282
      %v2359 = vpack.c.b16 %v2287, %v2285
      %v2360 = vpack.c.b16 %v2288, %v2286
      %v2361 = vpack.c.b16 %v2291, %v2289
      %v2362 = vpack.c.b16 %v2292, %v2290
      %v2363 = vpack.c.b16 %v2295, %v2293
      %v2364 = vpack.c.b16 %v2296, %v2294
      %v2365 = vpack.c.b16 %v2299, %v2297
      %v2366 = vpack.c.b16 %v2300, %v2298
      %v2367 = vpack.c.b16 %v2303, %v2301
      %v2368 = vpack.c.b16 %v2304, %v2302
      %2433 = vmatprep.subr.bf16.mxu0 %v2320
      %2434 = vmatpush1.bf16.msra.mxu0 %v2319
      %2435 = vmatprep.subr.bf16.mxu0 %v2318
      %2436 = vmatpush1.bf16.msra.mxu0 %v2317
      %2437 = vmatprep.subr.bf16.mxu0 %v2316
      %2438 = vmatpush1.bf16.msra.mxu0 %v2315
      %2439 = vmatprep.subr.bf16.mxu0 %v2314
      %2440 = vmatpush1.bf16.msra.mxu0 %v2313
      %2441 = vmatprep.subr.bf16.mxu0 %v2312
      %2442 = vmatpush1.bf16.msra.mxu0 %v2311
      %2443 = vmatprep.subr.bf16.mxu0 %v2310
      %2444 = vmatpush1.bf16.msra.mxu0 %v2309
      %2445 = vmatprep.subr.bf16.mxu0 %v2308
      %2446 = vmatpush1.bf16.msra.mxu0 %v2307
      %2447 = vmatprep.subr.bf16.mxu0 %v2306
      %2448 = vmatpush1.bf16.msra.mxu0 %v2305
      %2449 = vmatprep.subr.bf16.mxu0 %v2336
      %2450 = vmatpush2.bf16.msra.mxu0 %v2335
      %2451 = vmatprep.subr.bf16.mxu0 %v2334
      %2452 = vmatpush2.bf16.msra.mxu0 %v2333
      %2453 = vmatprep.subr.bf16.mxu0 %v2332
      %2454 = vmatpush2.bf16.msra.mxu0 %v2331
      %2455 = vmatprep.subr.bf16.mxu0 %v2330
      %2456 = vmatpush2.bf16.msra.mxu0 %v2329
      %2457 = vmatprep.subr.bf16.mxu0 %v2328
      %2458 = vmatpush2.bf16.msra.mxu0 %v2327
      %2459 = vmatprep.subr.bf16.mxu0 %v2326
      %2460 = vmatpush2.bf16.msra.mxu0 %v2325
      %2461 = vmatprep.subr.bf16.mxu0 %v2324
      %2462 = vmatpush2.bf16.msra.mxu0 %v2323
      %2463 = vmatprep.subr.bf16.mxu0 %v2322
      %2464 = vmatpush2.bf16.msra.mxu0 %v2321
      %2465 = vmatprep.mubr.bf16.mxu0 %v2034
      %2466 = vmatmul.mubr.bf16.gmra.mxu0 %v2033
      %v2467 = vpop.f32.mrf.mxu0
      %v2468 = vadd.f32 %v2106, %v2467
      %v2469 = vpop.f32.mrf.mxu0
      %v2470 = vadd.f32 %v2110, %v2469
      %v2471 = vpop.f32.mrf.mxu0
      %v2472 = vadd.f32 %v2106, %v2471
      %v2473 = vpop.f32.mrf.mxu0
      %v2474 = vadd.f32 %v2110, %v2473
      %2475 = vdwg.mxu0
      %2476 = vmatprep.subr.bf16.mxu0 %v2352
      %2477 = vmatpush1.bf16.msra.mxu0 %v2351
      %2478 = vmatprep.subr.bf16.mxu0 %v2350
      %2479 = vmatpush1.bf16.msra.mxu0 %v2349
      %2480 = vmatprep.subr.bf16.mxu0 %v2348
      %2481 = vmatpush1.bf16.msra.mxu0 %v2347
      %2482 = vmatprep.subr.bf16.mxu0 %v2346
      %2483 = vmatpush1.bf16.msra.mxu0 %v2345
      %2484 = vmatprep.subr.bf16.mxu0 %v2344
      %2485 = vmatpush1.bf16.msra.mxu0 %v2343
      %2486 = vmatprep.subr.bf16.mxu0 %v2342
      %2487 = vmatpush1.bf16.msra.mxu0 %v2341
      %2488 = vmatprep.subr.bf16.mxu0 %v2340
      %2489 = vmatpush1.bf16.msra.mxu0 %v2339
      %2490 = vmatprep.subr.bf16.mxu0 %v2338
      %2491 = vmatpush1.bf16.msra.mxu0 %v2337
      %2492 = vmatprep.subr.bf16.mxu0 %v2368
      %2493 = vmatpush2.bf16.msra.mxu0 %v2367
      %2494 = vmatprep.subr.bf16.mxu0 %v2366
      %2495 = vmatpush2.bf16.msra.mxu0 %v2365
      %2496 = vmatprep.subr.bf16.mxu0 %v2364
      %2497 = vmatpush2.bf16.msra.mxu0 %v2363
      %2498 = vmatprep.subr.bf16.mxu0 %v2362
      %2499 = vmatpush2.bf16.msra.mxu0 %v2361
      %2500 = vmatprep.subr.bf16.mxu0 %v2360
      %2501 = vmatpush2.bf16.msra.mxu0 %v2359
      %2502 = vmatprep.subr.bf16.mxu0 %v2358
      %2503 = vmatpush2.bf16.msra.mxu0 %v2357
      %2504 = vmatprep.subr.bf16.mxu0 %v2356
      %2505 = vmatpush2.bf16.msra.mxu0 %v2355
      %2506 = vmatprep.subr.bf16.mxu0 %v2354
      %2507 = vmatpush2.bf16.msra.mxu0 %v2353
      %2508 = vmatprep.mubr.bf16.mxu0 %v2036
      %2509 = vmatmul.mubr.bf16.gmra.mxu0 %v2035
      %v2510 = vpop.f32.mrf.mxu0
      %v2511 = vadd.f32 %v2468, %v2510
      %v2512 = vpop.f32.mrf.mxu0
      %v2513 = vadd.f32 %v2470, %v2512
      %v2514 = vpop.f32.mrf.mxu0
      %v2515 = vadd.f32 %v2472, %v2514
      %v2516 = vpop.f32.mrf.mxu0
      %v2517 = vadd.f32 %v2474, %v2516
      %2518 = vdwg.mxu0
      %v2519 = vmul.f32 %v2513, 0.5
      %v2520 = vmul.f32 %v2517, 0.5
      %v2521 = vmul.f32 %v2519, 1.442695
      %v2522 = vpow.pop %v2521
      %v2523 = vmul.f32 %v2520, 1.442695
      %v2524 = vpow.pop %v2523
      %v2525 = vmul.f32 %v442, %v2522
      %v2526 = vmul.f32 %v443, %v2524
      %v2527 = vadd.f32 %v2511, %v2525
      %v2528 = vadd.f32 %v2515, %v2526
      %v2529 = vpack.c.bf16 %v2528, %v2527
      %v2530 = vld [vmem:[%s6] sm:$0xff]
      %v2531 = vld [vmem:[%s6 + $0x8] sm:$0xff]
      %v2532 = vld [vmem:[%s6 + $0x10] sm:$0xff]
      %v2533 = vld [vmem:[%s6 + $0x18] sm:$0xff]
      %v2534 = vld [vmem:[%s6 + $0x20] sm:$0xff]
      %v2535 = vld [vmem:[%s6 + $0x28] sm:$0xff]
      %v2536 = vld [vmem:[%s6 + $0x30] sm:$0xff]
      %v2537 = vld [vmem:[%s6 + $0x38] sm:$0xff]
      %v2538 = vld [vmem:[%s6 + $0x40] sm:$0xff]
      %v2539 = vld [vmem:[%s6 + $0x48] sm:$0xff]
      %v2540 = vld [vmem:[%s6 + $0x50] sm:$0xff]
      %v2541 = vld [vmem:[%s6 + $0x58] sm:$0xff]
      %v2542 = vld [vmem:[%s6 + $0x60] sm:$0xff]
      %v2543 = vld [vmem:[%s6 + $0x68] sm:$0xff]
      %v2544 = vld [vmem:[%s6 + $0x70] sm:$0xff]
      %v2545 = vld [vmem:[%s6 + $0x78] sm:$0xff]
      %v2546 = vld [vmem:[%s6 + $0x80] sm:$0xff]
      %v2547 = vld [vmem:[%s6 + $0x88] sm:$0xff]
      %v2548 = vld [vmem:[%s6 + $0x90] sm:$0xff]
      %v2549 = vld [vmem:[%s6 + $0x98] sm:$0xff]
      %v2550 = vld [vmem:[%s6 + $0xa0] sm:$0xff]
      %v2551 = vld [vmem:[%s6 + $0xa8] sm:$0xff]
      %v2552 = vld [vmem:[%s6 + $0xb0] sm:$0xff]
      %v2553 = vld [vmem:[%s6 + $0xb8] sm:$0xff]
      %v2554 = vld [vmem:[%s6 + $0xc0] sm:$0xff]
      %v2555 = vld [vmem:[%s6 + $0xc8] sm:$0xff]
      %v2556 = vld [vmem:[%s6 + $0xd0] sm:$0xff]
      %v2557 = vld [vmem:[%s6 + $0xd8] sm:$0xff]
      %v2558 = vld [vmem:[%s6 + $0xe0] sm:$0xff]
      %v2559 = vld [vmem:[%s6 + $0xe8] sm:$0xff]
      %v2560 = vld [vmem:[%s6 + $0xf0] sm:$0xff]
      %v2561 = vld [vmem:[%s6 + $0xf8] sm:$0xff]
      %v2562 = vld [vmem:[%s7] sm:$0xf]
      %v2564 = vlaneseq
      %v2565 = vshrl.u32 %v2564, 7
      %v2566 = vsub.s32 0, %v2565
      %v2567 = vrot.slane %v2562, %v2566
      %v2568 = vlaneseq
      %v2569 = vshrl.u32 %v2568, 7
      %v2570 = vsub.s32 1, %v2569
      %v2571 = vrot.slane %v2562, %v2570
      %v2572 = vlaneseq
      %v2573 = vshrl.u32 %v2572, 7
      %v2574 = vsub.s32 2, %v2573
      %v2575 = vrot.slane %v2562, %v2574
      %v2576 = vlaneseq
      %v2577 = vshrl.u32 %v2576, 7
      %v2578 = vsub.s32 3, %v2577
      %v2579 = vrot.slane %v2562, %v2578
      %v2616 = vunpack.c.l.b16 %v2530
      %v2617 = vunpack.c.h.b16 %v2530
      %v2618 = vunpack.c.l.b16 %v2531
      %v2619 = vunpack.c.h.b16 %v2531
      %v2620 = vunpack.c.l.b16 %v2532
      %v2621 = vunpack.c.h.b16 %v2532
      %v2622 = vunpack.c.l.b16 %v2533
      %v2623 = vunpack.c.h.b16 %v2533
      %v2624 = vunpack.c.l.b16 %v2534
      %v2625 = vunpack.c.h.b16 %v2534
      %v2626 = vunpack.c.l.b16 %v2535
      %v2627 = vunpack.c.h.b16 %v2535
      %v2628 = vunpack.c.l.b16 %v2536
      %v2629 = vunpack.c.h.b16 %v2536
      %v2630 = vunpack.c.l.b16 %v2537
      %v2631 = vunpack.c.h.b16 %v2537
      %v2632 = vunpack.c.l.b16 %v2538
      %v2633 = vunpack.c.h.b16 %v2538
      %v2634 = vunpack.c.l.b16 %v2539
      %v2635 = vunpack.c.h.b16 %v2539
      %v2636 = vunpack.c.l.b16 %v2540
      %v2637 = vunpack.c.h.b16 %v2540
      %v2638 = vunpack.c.l.b16 %v2541
      %v2639 = vunpack.c.h.b16 %v2541
      %v2640 = vunpack.c.l.b16 %v2542
      %v2641 = vunpack.c.h.b16 %v2542
      %v2642 = vunpack.c.l.b16 %v2543
      %v2643 = vunpack.c.h.b16 %v2543
      %v2644 = vunpack.c.l.b16 %v2544
      %v2645 = vunpack.c.h.b16 %v2544
      %v2646 = vunpack.c.l.b16 %v2545
      %v2647 = vunpack.c.h.b16 %v2545
      %v2648 = vunpack.c.l.b16 %v2546
      %v2649 = vunpack.c.h.b16 %v2546
      %v2650 = vunpack.c.l.b16 %v2547
      %v2651 = vunpack.c.h.b16 %v2547
      %v2652 = vunpack.c.l.b16 %v2548
      %v2653 = vunpack.c.h.b16 %v2548
      %v2654 = vunpack.c.l.b16 %v2549
      %v2655 = vunpack.c.h.b16 %v2549
      %v2656 = vunpack.c.l.b16 %v2550
      %v2657 = vunpack.c.h.b16 %v2550
      %v2658 = vunpack.c.l.b16 %v2551
      %v2659 = vunpack.c.h.b16 %v2551
      %v2660 = vunpack.c.l.b16 %v2552
      %v2661 = vunpack.c.h.b16 %v2552
      %v2662 = vunpack.c.l.b16 %v2553
      %v2663 = vunpack.c.h.b16 %v2553
      %v2664 = vunpack.c.l.b16 %v2554
      %v2665 = vunpack.c.h.b16 %v2554
      %v2666 = vunpack.c.l.b16 %v2555
      %v2667 = vunpack.c.h.b16 %v2555
      %v2668 = vunpack.c.l.b16 %v2556
      %v2669 = vunpack.c.h.b16 %v2556
      %v2670 = vunpack.c.l.b16 %v2557
      %v2671 = vunpack.c.h.b16 %v2557
      %v2672 = vunpack.c.l.b16 %v2558
      %v2673 = vunpack.c.h.b16 %v2558
      %v2674 = vunpack.c.l.b16 %v2559
      %v2675 = vunpack.c.h.b16 %v2559
      %v2676 = vunpack.c.l.b16 %v2560
      %v2677 = vunpack.c.h.b16 %v2560
      %v2678 = vunpack.c.l.b16 %v2561
      %v2679 = vunpack.c.h.b16 %v2561
      %v2680 = vpack.c.b16 %v2620, %v2616
      %v2681 = vpack.c.b16 %v2621, %v2617
      %v2682 = vpack.c.b16 %v2622, %v2618
      %v2683 = vpack.c.b16 %v2623, %v2619
      %v2684 = vpack.c.b16 %v2628, %v2624
      %v2685 = vpack.c.b16 %v2629, %v2625
      %v2686 = vpack.c.b16 %v2630, %v2626
      %v2687 = vpack.c.b16 %v2631, %v2627
      %v2688 = vpack.c.b16 %v2636, %v2632
      %v2689 = vpack.c.b16 %v2637, %v2633
      %v2690 = vpack.c.b16 %v2638, %v2634
      %v2691 = vpack.c.b16 %v2639, %v2635
      %v2692 = vpack.c.b16 %v2644, %v2640
      %v2693 = vpack.c.b16 %v2645, %v2641
      %v2694 = vpack.c.b16 %v2646, %v2642
      %v2695 = vpack.c.b16 %v2647, %v2643
      %v2696 = vpack.c.b16 %v2652, %v2648
      %v2697 = vpack.c.b16 %v2653, %v2649
      %v2698 = vpack.c.b16 %v2654, %v2650
      %v2699 = vpack.c.b16 %v2655, %v2651
      %v2700 = vpack.c.b16 %v2660, %v2656
      %v2701 = vpack.c.b16 %v2661, %v2657
      %v2702 = vpack.c.b16 %v2662, %v2658
      %v2703 = vpack.c.b16 %v2663, %v2659
      %v2704 = vpack.c.b16 %v2668, %v2664
      %v2705 = vpack.c.b16 %v2669, %v2665
      %v2706 = vpack.c.b16 %v2670, %v2666
      %v2707 = vpack.c.b16 %v2671, %v2667
      %v2708 = vpack.c.b16 %v2676, %v2672
      %v2709 = vpack.c.b16 %v2677, %v2673
      %v2710 = vpack.c.b16 %v2678, %v2674
      %v2711 = vpack.c.b16 %v2679, %v2675
      %2744 = vmatprep.subr.bf16.mxu0 %v2709
      %2745 = vmatpush1.bf16.msra.mxu0 %v2708
      %2746 = vmatprep.subr.bf16.mxu0 %v2705
      %2747 = vmatpush1.bf16.msra.mxu0 %v2704
      %2748 = vmatprep.subr.bf16.mxu0 %v2701
      %2749 = vmatpush1.bf16.msra.mxu0 %v2700
      %2750 = vmatprep.subr.bf16.mxu0 %v2697
      %2751 = vmatpush1.bf16.msra.mxu0 %v2696
      %2752 = vmatprep.subr.bf16.mxu0 %v2693
      %2753 = vmatpush1.bf16.msra.mxu0 %v2692
      %2754 = vmatprep.subr.bf16.mxu0 %v2689
      %2755 = vmatpush1.bf16.msra.mxu0 %v2688
      %2756 = vmatprep.subr.bf16.mxu0 %v2685
      %2757 = vmatpush1.bf16.msra.mxu0 %v2684
      %2758 = vmatprep.subr.bf16.mxu0 %v2681
      %2759 = vmatpush1.bf16.msra.mxu0 %v2680
      %2760 = vmatprep.subr.bf16.mxu0 0
      %2761 = vmatpush2.bf16.msra.mxu0 0
      %2762 = vmatprep.subr.bf16.mxu0 0
      %2763 = vmatpush2.bf16.msra.mxu0 0
      %2764 = vmatprep.subr.bf16.mxu0 0
      %2765 = vmatpush2.bf16.msra.mxu0 0
      %2766 = vmatprep.subr.bf16.mxu0 0
      %2767 = vmatpush2.bf16.msra.mxu0 0
      %2768 = vmatprep.subr.bf16.mxu0 0
      %2769 = vmatpush2.bf16.msra.mxu0 0
      %2770 = vmatprep.subr.bf16.mxu0 0
      %2771 = vmatpush2.bf16.msra.mxu0 0
      %2772 = vmatprep.subr.bf16.mxu0 0
      %2773 = vmatpush2.bf16.msra.mxu0 0
      %2774 = vmatprep.subr.bf16.mxu0 0
      %2775 = vmatpush2.bf16.msra.mxu0 0
      %2776 = vmatprep.mubr.bf16.mxu0 0
      %2777 = vmatmul.mubr.bf16.gmra.mxu0 %v2529
      %v2778 = vpop.f32.mrf.mxu0
      %v2779 = vadd.f32 %v2567, %v2778
      %v2780 = vpop.f32.mrf.mxu0
      %v2781 = vadd.f32 %v2571, %v2780
      %v2782 = vpop.f32.mrf.mxu0
      %v2783 = vadd.f32 %v2567, %v2782
      %v2784 = vpop.f32.mrf.mxu0
      %v2785 = vadd.f32 %v2571, %v2784
      %2786 = vdwg.mxu0
      %2787 = vmatprep.subr.bf16.mxu0 %v2711
      %2788 = vmatpush1.bf16.msra.mxu0 %v2710
      %2789 = vmatprep.subr.bf16.mxu0 %v2707
      %2790 = vmatpush1.bf16.msra.mxu0 %v2706
      %2791 = vmatprep.subr.bf16.mxu0 %v2703
      %2792 = vmatpush1.bf16.msra.mxu0 %v2702
      %2793 = vmatprep.subr.bf16.mxu0 %v2699
      %2794 = vmatpush1.bf16.msra.mxu0 %v2698
      %2795 = vmatprep.subr.bf16.mxu0 %v2695
      %2796 = vmatpush1.bf16.msra.mxu0 %v2694
      %2797 = vmatprep.subr.bf16.mxu0 %v2691
      %2798 = vmatpush1.bf16.msra.mxu0 %v2690
      %2799 = vmatprep.subr.bf16.mxu0 %v2687
      %2800 = vmatpush1.bf16.msra.mxu0 %v2686
      %2801 = vmatprep.subr.bf16.mxu0 %v2683
      %2802 = vmatpush1.bf16.msra.mxu0 %v2682
      %2803 = vmatprep.subr.bf16.mxu0 0
      %2804 = vmatpush2.bf16.msra.mxu0 0
      %2805 = vmatprep.subr.bf16.mxu0 0
      %2806 = vmatpush2.bf16.msra.mxu0 0
      %2807 = vmatprep.subr.bf16.mxu0 0
      %2808 = vmatpush2.bf16.msra.mxu0 0
      %2809 = vmatprep.subr.bf16.mxu0 0
      %2810 = vmatpush2.bf16.msra.mxu0 0
      %2811 = vmatprep.subr.bf16.mxu0 0
      %2812 = vmatpush2.bf16.msra.mxu0 0
      %2813 = vmatprep.subr.bf16.mxu0 0
      %2814 = vmatpush2.bf16.msra.mxu0 0
      %2815 = vmatprep.subr.bf16.mxu0 0
      %2816 = vmatpush2.bf16.msra.mxu0 0
      %2817 = vmatprep.subr.bf16.mxu0 0
      %2818 = vmatpush2.bf16.msra.mxu0 0
      %2819 = vmatprep.mubr.bf16.mxu0 0
      %2820 = vmatmul.mubr.bf16.gmra.mxu0 %v2529
      %v2821 = vpop.f32.mrf.mxu0
      %v2822 = vadd.f32 %v2575, %v2821
      %v2823 = vpop.f32.mrf.mxu0
      %v2824 = vadd.f32 %v2579, %v2823
      %v2825 = vpop.f32.mrf.mxu0
      %v2826 = vadd.f32 %v2575, %v2825
      %v2827 = vpop.f32.mrf.mxu0
      %v2828 = vadd.f32 %v2579, %v2827
      %2829 = vdwg.mxu0
      %v2830 = vmax.f32 %v2779, 0.0
      %v2831 = vmax.f32 %v2781, 0.0
      %v2832 = vmax.f32 %v2822, 0.0
      %v2833 = vmax.f32 %v2824, 0.0
      %v2834 = vmax.f32 %v2783, 0.0
      %v2835 = vmax.f32 %v2785, 0.0
      %v2836 = vmax.f32 %v2826, 0.0
      %v2837 = vmax.f32 %v2828, 0.0
      %v2838 = vpack.c.bf16 %v2834, %v2830
      %v2839 = vpack.c.bf16 %v2835, %v2831
      %v2840 = vpack.c.bf16 %v2836, %v2832
      %v2841 = vpack.c.bf16 %v2837, %v2833
      %v2842 = vld [vmem:[%s8] sm:$0xff]
      %v2843 = vld [vmem:[%s8 + $0x8] sm:$0xff]
      %v2844 = vld [vmem:[%s8 + $0x10] sm:$0xff]
      %v2845 = vld [vmem:[%s8 + $0x18] sm:$0xf]
      %v2846 = vld [vmem:[%s8 + $0x1c] sm:$0xff]
      %v2847 = vld [vmem:[%s8 + $0x24] sm:$0xff]
      %v2848 = vld [vmem:[%s8 + $0x2c] sm:$0xff]
      %v2849 = vld [vmem:[%s8 + $0x34] sm:$0xf]
      %v2850 = vld [vmem:[%s8 + $0x38] sm:$0xff]
      %v2851 = vld [vmem:[%s8 + $0x40] sm:$0xff]
      %v2852 = vld [vmem:[%s8 + $0x48] sm:$0xff]
      %v2853 = vld [vmem:[%s8 + $0x50] sm:$0xf]
      %v2854 = vld [vmem:[%s8 + $0x54] sm:$0xff]
      %v2855 = vld [vmem:[%s8 + $0x5c] sm:$0xff]
      %v2856 = vld [vmem:[%s8 + $0x64] sm:$0xff]
      %v2857 = vld [vmem:[%s8 + $0x6c] sm:$0xf]
      %v2858 = vld [vmem:[%s8 + $0x70] sm:$0xff]
      %v2859 = vld [vmem:[%s8 + $0x78] sm:$0xff]
      %v2860 = vld [vmem:[%s8 + $0x80] sm:$0xff]
      %v2861 = vld [vmem:[%s8 + $0x88] sm:$0xf]
      %v2862 = vld [vmem:[%s8 + $0x8c] sm:$0xff]
      %v2863 = vld [vmem:[%s8 + $0x94] sm:$0xff]
      %v2864 = vld [vmem:[%s8 + $0x9c] sm:$0xff]
      %v2865 = vld [vmem:[%s8 + $0xa4] sm:$0xf]
      %v2866 = vld [vmem:[%s8 + $0xa8] sm:$0xff]
      %v2867 = vld [vmem:[%s8 + $0xb0] sm:$0xff]
      %v2868 = vld [vmem:[%s8 + $0xb8] sm:$0xff]
      %v2869 = vld [vmem:[%s8 + $0xc0] sm:$0xf]
      %v2870 = vld [vmem:[%s8 + $0xc4] sm:$0xff]
      %v2871 = vld [vmem:[%s8 + $0xcc] sm:$0xff]
      %v2872 = vld [vmem:[%s8 + $0xd4] sm:$0xff]
      %v2873 = vld [vmem:[%s8 + $0xdc] sm:$0xf]
      %v2874 = vld [vmem:[%s8 + $0xe0] sm:$0xff]
      %v2875 = vld [vmem:[%s8 + $0xe8] sm:$0xff]
      %v2876 = vld [vmem:[%s8 + $0xf0] sm:$0xff]
      %v2877 = vld [vmem:[%s8 + $0xf8] sm:$0xf]
      %v2878 = vld [vmem:[%s8 + $0xfc] sm:$0xff]
      %v2879 = vld [vmem:[%s8 + $0x104] sm:$0xff]
      %v2880 = vld [vmem:[%s8 + $0x10c] sm:$0xff]
      %v2881 = vld [vmem:[%s8 + $0x114] sm:$0xf]
      %v2882 = vld [vmem:[%s8 + $0x118] sm:$0xff]
      %v2883 = vld [vmem:[%s8 + $0x120] sm:$0xff]
      %v2884 = vld [vmem:[%s8 + $0x128] sm:$0xff]
      %v2885 = vld [vmem:[%s8 + $0x130] sm:$0xf]
      %v2886 = vld [vmem:[%s8 + $0x134] sm:$0xff]
      %v2887 = vld [vmem:[%s8 + $0x13c] sm:$0xff]
      %v2888 = vld [vmem:[%s8 + $0x144] sm:$0xff]
      %v2889 = vld [vmem:[%s8 + $0x14c] sm:$0xf]
      %v2890 = vld [vmem:[%s8 + $0x150] sm:$0xff]
      %v2891 = vld [vmem:[%s8 + $0x158] sm:$0xff]
      %v2892 = vld [vmem:[%s8 + $0x160] sm:$0xff]
      %v2893 = vld [vmem:[%s8 + $0x168] sm:$0xf]
      %v2894 = vld [vmem:[%s8 + $0x16c] sm:$0xff]
      %v2895 = vld [vmem:[%s8 + $0x174] sm:$0xff]
      %v2896 = vld [vmem:[%s8 + $0x17c] sm:$0xff]
      %v2897 = vld [vmem:[%s8 + $0x184] sm:$0xf]
      %v2898 = vld [vmem:[%s8 + $0x188] sm:$0xff]
      %v2899 = vld [vmem:[%s8 + $0x190] sm:$0xff]
      %v2900 = vld [vmem:[%s8 + $0x198] sm:$0xff]
      %v2901 = vld [vmem:[%s8 + $0x1a0] sm:$0xf]
      %v2902 = vld [vmem:[%s8 + $0x1a4] sm:$0xff]
      %v2903 = vld [vmem:[%s8 + $0x1ac] sm:$0xff]
      %v2904 = vld [vmem:[%s8 + $0x1b4] sm:$0xff]
      %v2905 = vld [vmem:[%s8 + $0x1bc] sm:$0xf]
      %v2906 = vld [vmem:[%s8 + $0x1c0] sm:$0xff]
      %v2907 = vld [vmem:[%s8 + $0x1c8] sm:$0xff]
      %v2908 = vld [vmem:[%s8 + $0x1d0] sm:$0xff]
      %v2909 = vld [vmem:[%s8 + $0x1d8] sm:$0xf]
      %v2910 = vld [vmem:[%s8 + $0x1dc] sm:$0xff]
      %v2911 = vld [vmem:[%s8 + $0x1e4] sm:$0xff]
      %v2912 = vld [vmem:[%s8 + $0x1ec] sm:$0xff]
      %v2913 = vld [vmem:[%s8 + $0x1f4] sm:$0xf]
      %v2914 = vld [vmem:[%s8 + $0x1f8] sm:$0xff]
      %v2915 = vld [vmem:[%s8 + $0x200] sm:$0xff]
      %v2916 = vld [vmem:[%s8 + $0x208] sm:$0xff]
      %v2917 = vld [vmem:[%s8 + $0x210] sm:$0xf]
      %v2918 = vld [vmem:[%s8 + $0x214] sm:$0xff]
      %v2919 = vld [vmem:[%s8 + $0x21c] sm:$0xff]
      %v2920 = vld [vmem:[%s8 + $0x224] sm:$0xff]
      %v2921 = vld [vmem:[%s8 + $0x22c] sm:$0xf]
      %v2922 = vld [vmem:[%s8 + $0x230] sm:$0xff]
      %v2923 = vld [vmem:[%s8 + $0x238] sm:$0xff]
      %v2924 = vld [vmem:[%s8 + $0x240] sm:$0xff]
      %v2925 = vld [vmem:[%s8 + $0x248] sm:$0xf]
      %v2926 = vld [vmem:[%s8 + $0x24c] sm:$0xff]
      %v2927 = vld [vmem:[%s8 + $0x254] sm:$0xff]
      %v2928 = vld [vmem:[%s8 + $0x25c] sm:$0xff]
      %v2929 = vld [vmem:[%s8 + $0x264] sm:$0xf]
      %v2930 = vld [vmem:[%s8 + $0x268] sm:$0xff]
      %v2931 = vld [vmem:[%s8 + $0x270] sm:$0xff]
      %v2932 = vld [vmem:[%s8 + $0x278] sm:$0xff]
      %v2933 = vld [vmem:[%s8 + $0x280] sm:$0xf]
      %v2934 = vld [vmem:[%s8 + $0x284] sm:$0xff]
      %v2935 = vld [vmem:[%s8 + $0x28c] sm:$0xff]
      %v2936 = vld [vmem:[%s8 + $0x294] sm:$0xff]
      %v2937 = vld [vmem:[%s8 + $0x29c] sm:$0xf]
      %v2938 = vld [vmem:[%s8 + $0x2a0] sm:$0xff]
      %v2939 = vld [vmem:[%s8 + $0x2a8] sm:$0xff]
      %v2940 = vld [vmem:[%s8 + $0x2b0] sm:$0xff]
      %v2941 = vld [vmem:[%s8 + $0x2b8] sm:$0xf]
      %v2942 = vld [vmem:[%s8 + $0x2bc] sm:$0xff]
      %v2943 = vld [vmem:[%s8 + $0x2c4] sm:$0xff]
      %v2944 = vld [vmem:[%s8 + $0x2cc] sm:$0xff]
      %v2945 = vld [vmem:[%s8 + $0x2d4] sm:$0xf]
      %v2946 = vld [vmem:[%s8 + $0x2d8] sm:$0xff]
      %v2947 = vld [vmem:[%s8 + $0x2e0] sm:$0xff]
      %v2948 = vld [vmem:[%s8 + $0x2e8] sm:$0xff]
      %v2949 = vld [vmem:[%s8 + $0x2f0] sm:$0xf]
      %v2950 = vld [vmem:[%s8 + $0x2f4] sm:$0xff]
      %v2951 = vld [vmem:[%s8 + $0x2fc] sm:$0xff]
      %v2952 = vld [vmem:[%s8 + $0x304] sm:$0xff]
      %v2953 = vld [vmem:[%s8 + $0x30c] sm:$0xf]
      %v2954 = vld [vmem:[%s8 + $0x310] sm:$0xff]
      %v2955 = vld [vmem:[%s8 + $0x318] sm:$0xff]
      %v2956 = vld [vmem:[%s8 + $0x320] sm:$0xff]
      %v2957 = vld [vmem:[%s8 + $0x328] sm:$0xf]
      %v2958 = vld [vmem:[%s8 + $0x32c] sm:$0xff]
      %v2959 = vld [vmem:[%s8 + $0x334] sm:$0xff]
      %v2960 = vld [vmem:[%s8 + $0x33c] sm:$0xff]
      %v2961 = vld [vmem:[%s8 + $0x344] sm:$0xf]
      %v2962 = vld [vmem:[%s8 + $0x348] sm:$0xff]
      %v2963 = vld [vmem:[%s8 + $0x350] sm:$0xff]
      %v2964 = vld [vmem:[%s8 + $0x358] sm:$0xff]
      %v2965 = vld [vmem:[%s8 + $0x360] sm:$0xf]
      %v2966 = vld [vmem:[%s8 + $0x364] sm:$0xff]
      %v2967 = vld [vmem:[%s8 + $0x36c] sm:$0xff]
      %v2968 = vld [vmem:[%s8 + $0x374] sm:$0xff]
      %v2969 = vld [vmem:[%s8 + $0x37c] sm:$0xf]
      %v2970 = vld [vmem:[%s8 + $0x380] sm:$0xff]
      %v2971 = vld [vmem:[%s8 + $0x388] sm:$0xff]
      %v2972 = vld [vmem:[%s8 + $0x390] sm:$0xff]
      %v2973 = vld [vmem:[%s8 + $0x398] sm:$0xf]
      %v2974 = vld [vmem:[%s8 + $0x39c] sm:$0xff]
      %v2975 = vld [vmem:[%s8 + $0x3a4] sm:$0xff]
      %v2976 = vld [vmem:[%s8 + $0x3ac] sm:$0xff]
      %v2977 = vld [vmem:[%s8 + $0x3b4] sm:$0xf]
      %v2978 = vld [vmem:[%s8 + $0x3b8] sm:$0xff]
      %v2979 = vld [vmem:[%s8 + $0x3c0] sm:$0xff]
      %v2980 = vld [vmem:[%s8 + $0x3c8] sm:$0xff]
      %v2981 = vld [vmem:[%s8 + $0x3d0] sm:$0xf]
      %v2982 = vld [vmem:[%s8 + $0x3d4] sm:$0xff]
      %v2983 = vld [vmem:[%s8 + $0x3dc] sm:$0xff]
      %v2984 = vld [vmem:[%s8 + $0x3e4] sm:$0xff]
      %v2985 = vld [vmem:[%s8 + $0x3ec] sm:$0xf]
      %v2986 = vld [vmem:[%s8 + $0x3f0] sm:$0xff]
      %v2987 = vld [vmem:[%s8 + $0x3f8] sm:$0xff]
      %v2988 = vld [vmem:[%s8 + $0x400] sm:$0xff]
      %v2989 = vld [vmem:[%s8 + $0x408] sm:$0xf]
      %v2990 = vld [vmem:[%s8 + $0x40c] sm:$0xff]
      %v2991 = vld [vmem:[%s8 + $0x414] sm:$0xff]
      %v2992 = vld [vmem:[%s8 + $0x41c] sm:$0xff]
      %v2993 = vld [vmem:[%s8 + $0x424] sm:$0xf]
      %v2994 = vld [vmem:[%s8 + $0x428] sm:$0xff]
      %v2995 = vld [vmem:[%s8 + $0x430] sm:$0xff]
      %v2996 = vld [vmem:[%s8 + $0x438] sm:$0xff]
      %v2997 = vld [vmem:[%s8 + $0x440] sm:$0xf]
      %v2998 = vld [vmem:[%s8 + $0x444] sm:$0xff]
      %v2999 = vld [vmem:[%s8 + $0x44c] sm:$0xff]
      %v3000 = vld [vmem:[%s8 + $0x454] sm:$0xff]
      %v3001 = vld [vmem:[%s8 + $0x45c] sm:$0xf]
      %v3002 = vld [vmem:[%s8 + $0x460] sm:$0xff]
      %v3003 = vld [vmem:[%s8 + $0x468] sm:$0xff]
      %v3004 = vld [vmem:[%s8 + $0x470] sm:$0xff]
      %v3005 = vld [vmem:[%s8 + $0x478] sm:$0xf]
      %v3006 = vld [vmem:[%s8 + $0x47c] sm:$0xff]
      %v3007 = vld [vmem:[%s8 + $0x484] sm:$0xff]
      %v3008 = vld [vmem:[%s8 + $0x48c] sm:$0xff]
      %v3009 = vld [vmem:[%s8 + $0x494] sm:$0xf]
      %v3010 = vld [vmem:[%s8 + $0x498] sm:$0xff]
      %v3011 = vld [vmem:[%s8 + $0x4a0] sm:$0xff]
      %v3012 = vld [vmem:[%s8 + $0x4a8] sm:$0xff]
      %v3013 = vld [vmem:[%s8 + $0x4b0] sm:$0xf]
      %v3014 = vld [vmem:[%s8 + $0x4b4] sm:$0xff]
      %v3015 = vld [vmem:[%s8 + $0x4bc] sm:$0xff]
      %v3016 = vld [vmem:[%s8 + $0x4c4] sm:$0xff]
      %v3017 = vld [vmem:[%s8 + $0x4cc] sm:$0xf]
      %v3018 = vld [vmem:[%s8 + $0x4d0] sm:$0xff]
      %v3019 = vld [vmem:[%s8 + $0x4d8] sm:$0xff]
      %v3020 = vld [vmem:[%s8 + $0x4e0] sm:$0xff]
      %v3021 = vld [vmem:[%s8 + $0x4e8] sm:$0xf]
      %v3022 = vld [vmem:[%s8 + $0x4ec] sm:$0xff]
      %v3023 = vld [vmem:[%s8 + $0x4f4] sm:$0xff]
      %v3024 = vld [vmem:[%s8 + $0x4fc] sm:$0xff]
      %v3025 = vld [vmem:[%s8 + $0x504] sm:$0xf]
      %v3026 = vld [vmem:[%s8 + $0x508] sm:$0xff]
      %v3027 = vld [vmem:[%s8 + $0x510] sm:$0xff]
      %v3028 = vld [vmem:[%s8 + $0x518] sm:$0xff]
      %v3029 = vld [vmem:[%s8 + $0x520] sm:$0xf]
      %v3030 = vld [vmem:[%s8 + $0x524] sm:$0xff]
      %v3031 = vld [vmem:[%s8 + $0x52c] sm:$0xff]
      %v3032 = vld [vmem:[%s8 + $0x534] sm:$0xff]
      %v3033 = vld [vmem:[%s8 + $0x53c] sm:$0xf]
      %v3034 = vld [vmem:[%s8 + $0x540] sm:$0xff]
      %v3035 = vld [vmem:[%s8 + $0x548] sm:$0xff]
      %v3036 = vld [vmem:[%s8 + $0x550] sm:$0xff]
      %v3037 = vld [vmem:[%s8 + $0x558] sm:$0xf]
      %v3038 = vld [vmem:[%s8 + $0x55c] sm:$0xff]
      %v3039 = vld [vmem:[%s8 + $0x564] sm:$0xff]
      %v3040 = vld [vmem:[%s8 + $0x56c] sm:$0xff]
      %v3041 = vld [vmem:[%s8 + $0x574] sm:$0xf]
      %v3042 = vld [vmem:[%s8 + $0x578] sm:$0xff]
      %v3043 = vld [vmem:[%s8 + $0x580] sm:$0xff]
      %v3044 = vld [vmem:[%s8 + $0x588] sm:$0xff]
      %v3045 = vld [vmem:[%s8 + $0x590] sm:$0xf]
      %v3046 = vld [vmem:[%s8 + $0x594] sm:$0xff]
      %v3047 = vld [vmem:[%s8 + $0x59c] sm:$0xff]
      %v3048 = vld [vmem:[%s8 + $0x5a4] sm:$0xff]
      %v3049 = vld [vmem:[%s8 + $0x5ac] sm:$0xf]
      %v3050 = vld [vmem:[%s8 + $0x5b0] sm:$0xff]
      %v3051 = vld [vmem:[%s8 + $0x5b8] sm:$0xff]
      %v3052 = vld [vmem:[%s8 + $0x5c0] sm:$0xff]
      %v3053 = vld [vmem:[%s8 + $0x5c8] sm:$0xf]
      %v3054 = vld [vmem:[%s8 + $0x5cc] sm:$0xff]
      %v3055 = vld [vmem:[%s8 + $0x5d4] sm:$0xff]
      %v3056 = vld [vmem:[%s8 + $0x5dc] sm:$0xff]
      %v3057 = vld [vmem:[%s8 + $0x5e4] sm:$0xf]
      %v3058 = vld [vmem:[%s8 + $0x5e8] sm:$0xff]
      %v3059 = vld [vmem:[%s8 + $0x5f0] sm:$0xff]
      %v3060 = vld [vmem:[%s8 + $0x5f8] sm:$0xff]
      %v3061 = vld [vmem:[%s8 + $0x600] sm:$0xf]
      %v3062 = vld [vmem:[%s8 + $0x604] sm:$0xff]
      %v3063 = vld [vmem:[%s8 + $0x60c] sm:$0xff]
      %v3064 = vld [vmem:[%s8 + $0x614] sm:$0xff]
      %v3065 = vld [vmem:[%s8 + $0x61c] sm:$0xf]
      %v3066 = vld [vmem:[%s8 + $0x620] sm:$0xff]
      %v3067 = vld [vmem:[%s8 + $0x628] sm:$0xff]
      %v3068 = vld [vmem:[%s8 + $0x630] sm:$0xff]
      %v3069 = vld [vmem:[%s8 + $0x638] sm:$0xf]
      %v3070 = vld [vmem:[%s8 + $0x63c] sm:$0xff]
      %v3071 = vld [vmem:[%s8 + $0x644] sm:$0xff]
      %v3072 = vld [vmem:[%s8 + $0x64c] sm:$0xff]
      %v3073 = vld [vmem:[%s8 + $0x654] sm:$0xf]
      %v3074 = vld [vmem:[%s8 + $0x658] sm:$0xff]
      %v3075 = vld [vmem:[%s8 + $0x660] sm:$0xff]
      %v3076 = vld [vmem:[%s8 + $0x668] sm:$0xff]
      %v3077 = vld [vmem:[%s8 + $0x670] sm:$0xf]
      %v3078 = vld [vmem:[%s8 + $0x674] sm:$0xff]
      %v3079 = vld [vmem:[%s8 + $0x67c] sm:$0xff]
      %v3080 = vld [vmem:[%s8 + $0x684] sm:$0xff]
      %v3081 = vld [vmem:[%s8 + $0x68c] sm:$0xf]
      %v3082 = vld [vmem:[%s8 + $0x690] sm:$0xff]
      %v3083 = vld [vmem:[%s8 + $0x698] sm:$0xff]
      %v3084 = vld [vmem:[%s8 + $0x6a0] sm:$0xff]
      %v3085 = vld [vmem:[%s8 + $0x6a8] sm:$0xf]
      %v3086 = vld [vmem:[%s8 + $0x6ac] sm:$0xff]
      %v3087 = vld [vmem:[%s8 + $0x6b4] sm:$0xff]
      %v3088 = vld [vmem:[%s8 + $0x6bc] sm:$0xff]
      %v3089 = vld [vmem:[%s8 + $0x6c4] sm:$0xf]
      %v3090 = vld [vmem:[%s8 + $0x6c8] sm:$0xff]
      %v3091 = vld [vmem:[%s8 + $0x6d0] sm:$0xff]
      %v3092 = vld [vmem:[%s8 + $0x6d8] sm:$0xff]
      %v3093 = vld [vmem:[%s8 + $0x6e0] sm:$0xf]
      %v3094 = vld [vmem:[%s8 + $0x6e4] sm:$0xff]
      %v3095 = vld [vmem:[%s8 + $0x6ec] sm:$0xff]
      %v3096 = vld [vmem:[%s8 + $0x6f4] sm:$0xff]
      %v3097 = vld [vmem:[%s8 + $0x6fc] sm:$0xf]
      %v3098 = vld [vmem:[%s9] sm:$0x7f]
      %v3100 = vlaneseq
      %v3101 = vshrl.u32 %v3100, 7
      %v3102 = vsub.s32 0, %v3101
      %v3103 = vrot.slane %v3098, %v3102
      %v3104 = vlaneseq
      %v3105 = vshrl.u32 %v3104, 7
      %v3106 = vsub.s32 1, %v3105
      %v3107 = vrot.slane %v3098, %v3106
      %v3108 = vlaneseq
      %v3109 = vshrl.u32 %v3108, 7
      %v3110 = vsub.s32 2, %v3109
      %v3111 = vrot.slane %v3098, %v3110
      %v3112 = vlaneseq
      %v3113 = vshrl.u32 %v3112, 7
      %v3114 = vsub.s32 3, %v3113
      %v3115 = vrot.slane %v3098, %v3114
      %v3116 = vlaneseq
      %v3117 = vshrl.u32 %v3116, 7
      %v3118 = vsub.s32 4, %v3117
      %v3119 = vrot.slane %v3098, %v3118
      %v3120 = vlaneseq
      %v3121 = vshrl.u32 %v3120, 7
      %v3122 = vsub.s32 5, %v3121
      %v3123 = vrot.slane %v3098, %v3122
      %v3124 = vlaneseq
      %v3125 = vshrl.u32 %v3124, 7
      %v3126 = vsub.s32 6, %v3125
      %v3127 = vrot.slane %v3098, %v3126
      %v3391 = vunpack.c.l.b16 %v2842
      %v3392 = vunpack.c.h.b16 %v2842
      %v3393 = vunpack.c.l.b16 %v2843
      %v3394 = vunpack.c.h.b16 %v2843
      %v3395 = vunpack.c.l.b16 %v2844
      %v3396 = vunpack.c.h.b16 %v2844
      %v3397 = vunpack.c.l.b16 %v2845
      %v3398 = vunpack.c.l.b16 %v2846
      %v3399 = vunpack.c.h.b16 %v2846
      %v3400 = vunpack.c.l.b16 %v2847
      %v3401 = vunpack.c.h.b16 %v2847
      %v3402 = vunpack.c.l.b16 %v2848
      %v3403 = vunpack.c.h.b16 %v2848
      %v3404 = vunpack.c.l.b16 %v2849
      %v3405 = vunpack.c.l.b16 %v2850
      %v3406 = vunpack.c.h.b16 %v2850
      %v3407 = vunpack.c.l.b16 %v2851
      %v3408 = vunpack.c.h.b16 %v2851
      %v3409 = vunpack.c.l.b16 %v2852
      %v3410 = vunpack.c.h.b16 %v2852
      %v3411 = vunpack.c.l.b16 %v2853
      %v3412 = vunpack.c.l.b16 %v2854
      %v3413 = vunpack.c.h.b16 %v2854
      %v3414 = vunpack.c.l.b16 %v2855
      %v3415 = vunpack.c.h.b16 %v2855
      %v3416 = vunpack.c.l.b16 %v2856
      %v3417 = vunpack.c.h.b16 %v2856
      %v3418 = vunpack.c.l.b16 %v2857
      %v3419 = vunpack.c.l.b16 %v2858
      %v3420 = vunpack.c.h.b16 %v2858
      %v3421 = vunpack.c.l.b16 %v2859
      %v3422 = vunpack.c.h.b16 %v2859
      %v3423 = vunpack.c.l.b16 %v2860
      %v3424 = vunpack.c.h.b16 %v2860
      %v3425 = vunpack.c.l.b16 %v2861
      %v3426 = vunpack.c.l.b16 %v2862
      %v3427 = vunpack.c.h.b16 %v2862
      %v3428 = vunpack.c.l.b16 %v2863
      %v3429 = vunpack.c.h.b16 %v2863
      %v3430 = vunpack.c.l.b16 %v2864
      %v3431 = vunpack.c.h.b16 %v2864
      %v3432 = vunpack.c.l.b16 %v2865
      %v3433 = vunpack.c.l.b16 %v2866
      %v3434 = vunpack.c.h.b16 %v2866
      %v3435 = vunpack.c.l.b16 %v2867
      %v3436 = vunpack.c.h.b16 %v2867
      %v3437 = vunpack.c.l.b16 %v2868
      %v3438 = vunpack.c.h.b16 %v2868
      %v3439 = vunpack.c.l.b16 %v2869
      %v3440 = vunpack.c.l.b16 %v2870
      %v3441 = vunpack.c.h.b16 %v2870
      %v3442 = vunpack.c.l.b16 %v2871
      %v3443 = vunpack.c.h.b16 %v2871
      %v3444 = vunpack.c.l.b16 %v2872
      %v3445 = vunpack.c.h.b16 %v2872
      %v3446 = vunpack.c.l.b16 %v2873
      %v3447 = vunpack.c.l.b16 %v2874
      %v3448 = vunpack.c.h.b16 %v2874
      %v3449 = vunpack.c.l.b16 %v2875
      %v3450 = vunpack.c.h.b16 %v2875
      %v3451 = vunpack.c.l.b16 %v2876
      %v3452 = vunpack.c.h.b16 %v2876
      %v3453 = vunpack.c.l.b16 %v2877
      %v3454 = vunpack.c.l.b16 %v2878
      %v3455 = vunpack.c.h.b16 %v2878
      %v3456 = vunpack.c.l.b16 %v2879
      %v3457 = vunpack.c.h.b16 %v2879
      %v3458 = vunpack.c.l.b16 %v2880
      %v3459 = vunpack.c.h.b16 %v2880
      %v3460 = vunpack.c.l.b16 %v2881
      %v3461 = vunpack.c.l.b16 %v2882
      %v3462 = vunpack.c.h.b16 %v2882
      %v3463 = vunpack.c.l.b16 %v2883
      %v3464 = vunpack.c.h.b16 %v2883
      %v3465 = vunpack.c.l.b16 %v2884
      %v3466 = vunpack.c.h.b16 %v2884
      %v3467 = vunpack.c.l.b16 %v2885
      %v3468 = vunpack.c.l.b16 %v2886
      %v3469 = vunpack.c.h.b16 %v2886
      %v3470 = vunpack.c.l.b16 %v2887
      %v3471 = vunpack.c.h.b16 %v2887
      %v3472 = vunpack.c.l.b16 %v2888
      %v3473 = vunpack.c.h.b16 %v2888
      %v3474 = vunpack.c.l.b16 %v2889
      %v3475 = vunpack.c.l.b16 %v2890
      %v3476 = vunpack.c.h.b16 %v2890
      %v3477 = vunpack.c.l.b16 %v2891
      %v3478 = vunpack.c.h.b16 %v2891
      %v3479 = vunpack.c.l.b16 %v2892
      %v3480 = vunpack.c.h.b16 %v2892
      %v3481 = vunpack.c.l.b16 %v2893
      %v3482 = vunpack.c.l.b16 %v2894
      %v3483 = vunpack.c.h.b16 %v2894
      %v3484 = vunpack.c.l.b16 %v2895
      %v3485 = vunpack.c.h.b16 %v2895
      %v3486 = vunpack.c.l.b16 %v2896
      %v3487 = vunpack.c.h.b16 %v2896
      %v3488 = vunpack.c.l.b16 %v2897
      %v3489 = vunpack.c.l.b16 %v2898
      %v3490 = vunpack.c.h.b16 %v2898
      %v3491 = vunpack.c.l.b16 %v2899
      %v3492 = vunpack.c.h.b16 %v2899
      %v3493 = vunpack.c.l.b16 %v2900
      %v3494 = vunpack.c.h.b16 %v2900
      %v3495 = vunpack.c.l.b16 %v2901
      %v3496 = vunpack.c.l.b16 %v2902
      %v3497 = vunpack.c.h.b16 %v2902
      %v3498 = vunpack.c.l.b16 %v2903
      %v3499 = vunpack.c.h.b16 %v2903
      %v3500 = vunpack.c.l.b16 %v2904
      %v3501 = vunpack.c.h.b16 %v2904
      %v3502 = vunpack.c.l.b16 %v2905
      %v3503 = vunpack.c.l.b16 %v2906
      %v3504 = vunpack.c.h.b16 %v2906
      %v3505 = vunpack.c.l.b16 %v2907
      %v3506 = vunpack.c.h.b16 %v2907
      %v3507 = vunpack.c.l.b16 %v2908
      %v3508 = vunpack.c.h.b16 %v2908
      %v3509 = vunpack.c.l.b16 %v2909
      %v3510 = vunpack.c.l.b16 %v2910
      %v3511 = vunpack.c.h.b16 %v2910
      %v3512 = vunpack.c.l.b16 %v2911
      %v3513 = vunpack.c.h.b16 %v2911
      %v3514 = vunpack.c.l.b16 %v2912
      %v3515 = vunpack.c.h.b16 %v2912
      %v3516 = vunpack.c.l.b16 %v2913
      %v3517 = vunpack.c.l.b16 %v2914
      %v3518 = vunpack.c.h.b16 %v2914
      %v3519 = vunpack.c.l.b16 %v2915
      %v3520 = vunpack.c.h.b16 %v2915
      %v3521 = vunpack.c.l.b16 %v2916
      %v3522 = vunpack.c.h.b16 %v2916
      %v3523 = vunpack.c.l.b16 %v2917
      %v3524 = vunpack.c.l.b16 %v2918
      %v3525 = vunpack.c.h.b16 %v2918
      %v3526 = vunpack.c.l.b16 %v2919
      %v3527 = vunpack.c.h.b16 %v2919
      %v3528 = vunpack.c.l.b16 %v2920
      %v3529 = vunpack.c.h.b16 %v2920
      %v3530 = vunpack.c.l.b16 %v2921
      %v3531 = vunpack.c.l.b16 %v2922
      %v3532 = vunpack.c.h.b16 %v2922
      %v3533 = vunpack.c.l.b16 %v2923
      %v3534 = vunpack.c.h.b16 %v2923
      %v3535 = vunpack.c.l.b16 %v2924
      %v3536 = vunpack.c.h.b16 %v2924
      %v3537 = vunpack.c.l.b16 %v2925
      %v3538 = vunpack.c.l.b16 %v2926
      %v3539 = vunpack.c.h.b16 %v2926
      %v3540 = vunpack.c.l.b16 %v2927
      %v3541 = vunpack.c.h.b16 %v2927
      %v3542 = vunpack.c.l.b16 %v2928
      %v3543 = vunpack.c.h.b16 %v2928
      %v3544 = vunpack.c.l.b16 %v2929
      %v3545 = vunpack.c.l.b16 %v2930
      %v3546 = vunpack.c.h.b16 %v2930
      %v3547 = vunpack.c.l.b16 %v2931
      %v3548 = vunpack.c.h.b16 %v2931
      %v3549 = vunpack.c.l.b16 %v2932
      %v3550 = vunpack.c.h.b16 %v2932
      %v3551 = vunpack.c.l.b16 %v2933
      %v3552 = vunpack.c.l.b16 %v2934
      %v3553 = vunpack.c.h.b16 %v2934
      %v3554 = vunpack.c.l.b16 %v2935
      %v3555 = vunpack.c.h.b16 %v2935
      %v3556 = vunpack.c.l.b16 %v2936
      %v3557 = vunpack.c.h.b16 %v2936
      %v3558 = vunpack.c.l.b16 %v2937
      %v3559 = vunpack.c.l.b16 %v2938
      %v3560 = vunpack.c.h.b16 %v2938
      %v3561 = vunpack.c.l.b16 %v2939
      %v3562 = vunpack.c.h.b16 %v2939
      %v3563 = vunpack.c.l.b16 %v2940
      %v3564 = vunpack.c.h.b16 %v2940
      %v3565 = vunpack.c.l.b16 %v2941
      %v3566 = vunpack.c.l.b16 %v2942
      %v3567 = vunpack.c.h.b16 %v2942
      %v3568 = vunpack.c.l.b16 %v2943
      %v3569 = vunpack.c.h.b16 %v2943
      %v3570 = vunpack.c.l.b16 %v2944
      %v3571 = vunpack.c.h.b16 %v2944
      %v3572 = vunpack.c.l.b16 %v2945
      %v3573 = vunpack.c.l.b16 %v2946
      %v3574 = vunpack.c.h.b16 %v2946
      %v3575 = vunpack.c.l.b16 %v2947
      %v3576 = vunpack.c.h.b16 %v2947
      %v3577 = vunpack.c.l.b16 %v2948
      %v3578 = vunpack.c.h.b16 %v2948
      %v3579 = vunpack.c.l.b16 %v2949
      %v3580 = vunpack.c.l.b16 %v2950
      %v3581 = vunpack.c.h.b16 %v2950
      %v3582 = vunpack.c.l.b16 %v2951
      %v3583 = vunpack.c.h.b16 %v2951
      %v3584 = vunpack.c.l.b16 %v2952
      %v3585 = vunpack.c.h.b16 %v2952
      %v3586 = vunpack.c.l.b16 %v2953
      %v3587 = vunpack.c.l.b16 %v2954
      %v3588 = vunpack.c.h.b16 %v2954
      %v3589 = vunpack.c.l.b16 %v2955
      %v3590 = vunpack.c.h.b16 %v2955
      %v3591 = vunpack.c.l.b16 %v2956
      %v3592 = vunpack.c.h.b16 %v2956
      %v3593 = vunpack.c.l.b16 %v2957
      %v3594 = vunpack.c.l.b16 %v2958
      %v3595 = vunpack.c.h.b16 %v2958
      %v3596 = vunpack.c.l.b16 %v2959
      %v3597 = vunpack.c.h.b16 %v2959
      %v3598 = vunpack.c.l.b16 %v2960
      %v3599 = vunpack.c.h.b16 %v2960
      %v3600 = vunpack.c.l.b16 %v2961
      %v3601 = vunpack.c.l.b16 %v2962
      %v3602 = vunpack.c.h.b16 %v2962
      %v3603 = vunpack.c.l.b16 %v2963
      %v3604 = vunpack.c.h.b16 %v2963
      %v3605 = vunpack.c.l.b16 %v2964
      %v3606 = vunpack.c.h.b16 %v2964
      %v3607 = vunpack.c.l.b16 %v2965
      %v3608 = vunpack.c.l.b16 %v2966
      %v3609 = vunpack.c.h.b16 %v2966
      %v3610 = vunpack.c.l.b16 %v2967
      %v3611 = vunpack.c.h.b16 %v2967
      %v3612 = vunpack.c.l.b16 %v2968
      %v3613 = vunpack.c.h.b16 %v2968
      %v3614 = vunpack.c.l.b16 %v2969
      %v3615 = vunpack.c.l.b16 %v2970
      %v3616 = vunpack.c.h.b16 %v2970
      %v3617 = vunpack.c.l.b16 %v2971
      %v3618 = vunpack.c.h.b16 %v2971
      %v3619 = vunpack.c.l.b16 %v2972
      %v3620 = vunpack.c.h.b16 %v2972
      %v3621 = vunpack.c.l.b16 %v2973
      %v3622 = vunpack.c.l.b16 %v2974
      %v3623 = vunpack.c.h.b16 %v2974
      %v3624 = vunpack.c.l.b16 %v2975
      %v3625 = vunpack.c.h.b16 %v2975
      %v3626 = vunpack.c.l.b16 %v2976
      %v3627 = vunpack.c.h.b16 %v2976
      %v3628 = vunpack.c.l.b16 %v2977
      %v3629 = vunpack.c.l.b16 %v2978
      %v3630 = vunpack.c.h.b16 %v2978
      %v3631 = vunpack.c.l.b16 %v2979
      %v3632 = vunpack.c.h.b16 %v2979
      %v3633 = vunpack.c.l.b16 %v2980
      %v3634 = vunpack.c.h.b16 %v2980
      %v3635 = vunpack.c.l.b16 %v2981
      %v3636 = vunpack.c.l.b16 %v2982
      %v3637 = vunpack.c.h.b16 %v2982
      %v3638 = vunpack.c.l.b16 %v2983
      %v3639 = vunpack.c.h.b16 %v2983
      %v3640 = vunpack.c.l.b16 %v2984
      %v3641 = vunpack.c.h.b16 %v2984
      %v3642 = vunpack.c.l.b16 %v2985
      %v3643 = vunpack.c.l.b16 %v2986
      %v3644 = vunpack.c.h.b16 %v2986
      %v3645 = vunpack.c.l.b16 %v2987
      %v3646 = vunpack.c.h.b16 %v2987
      %v3647 = vunpack.c.l.b16 %v2988
      %v3648 = vunpack.c.h.b16 %v2988
      %v3649 = vunpack.c.l.b16 %v2989
      %v3650 = vunpack.c.l.b16 %v2990
      %v3651 = vunpack.c.h.b16 %v2990
      %v3652 = vunpack.c.l.b16 %v2991
      %v3653 = vunpack.c.h.b16 %v2991
      %v3654 = vunpack.c.l.b16 %v2992
      %v3655 = vunpack.c.h.b16 %v2992
      %v3656 = vunpack.c.l.b16 %v2993
      %v3657 = vunpack.c.l.b16 %v2994
      %v3658 = vunpack.c.h.b16 %v2994
      %v3659 = vunpack.c.l.b16 %v2995
      %v3660 = vunpack.c.h.b16 %v2995
      %v3661 = vunpack.c.l.b16 %v2996
      %v3662 = vunpack.c.h.b16 %v2996
      %v3663 = vunpack.c.l.b16 %v2997
      %v3664 = vunpack.c.l.b16 %v2998
      %v3665 = vunpack.c.h.b16 %v2998
      %v3666 = vunpack.c.l.b16 %v2999
      %v3667 = vunpack.c.h.b16 %v2999
      %v3668 = vunpack.c.l.b16 %v3000
      %v3669 = vunpack.c.h.b16 %v3000
      %v3670 = vunpack.c.l.b16 %v3001
      %v3671 = vunpack.c.l.b16 %v3002
      %v3672 = vunpack.c.h.b16 %v3002
      %v3673 = vunpack.c.l.b16 %v3003
      %v3674 = vunpack.c.h.b16 %v3003
      %v3675 = vunpack.c.l.b16 %v3004
      %v3676 = vunpack.c.h.b16 %v3004
      %v3677 = vunpack.c.l.b16 %v3005
      %v3678 = vunpack.c.l.b16 %v3006
      %v3679 = vunpack.c.h.b16 %v3006
      %v3680 = vunpack.c.l.b16 %v3007
      %v3681 = vunpack.c.h.b16 %v3007
      %v3682 = vunpack.c.l.b16 %v3008
      %v3683 = vunpack.c.h.b16 %v3008
      %v3684 = vunpack.c.l.b16 %v3009
      %v3685 = vunpack.c.l.b16 %v3010
      %v3686 = vunpack.c.h.b16 %v3010
      %v3687 = vunpack.c.l.b16 %v3011
      %v3688 = vunpack.c.h.b16 %v3011
      %v3689 = vunpack.c.l.b16 %v3012
      %v3690 = vunpack.c.h.b16 %v3012
      %v3691 = vunpack.c.l.b16 %v3013
      %v3692 = vunpack.c.l.b16 %v3014
      %v3693 = vunpack.c.h.b16 %v3014
      %v3694 = vunpack.c.l.b16 %v3015
      %v3695 = vunpack.c.h.b16 %v3015
      %v3696 = vunpack.c.l.b16 %v3016
      %v3697 = vunpack.c.h.b16 %v3016
      %v3698 = vunpack.c.l.b16 %v3017
      %v3699 = vunpack.c.l.b16 %v3018
      %v3700 = vunpack.c.h.b16 %v3018
      %v3701 = vunpack.c.l.b16 %v3019
      %v3702 = vunpack.c.h.b16 %v3019
      %v3703 = vunpack.c.l.b16 %v3020
      %v3704 = vunpack.c.h.b16 %v3020
      %v3705 = vunpack.c.l.b16 %v3021
      %v3706 = vunpack.c.l.b16 %v3022
      %v3707 = vunpack.c.h.b16 %v3022
      %v3708 = vunpack.c.l.b16 %v3023
      %v3709 = vunpack.c.h.b16 %v3023
      %v3710 = vunpack.c.l.b16 %v3024
      %v3711 = vunpack.c.h.b16 %v3024
      %v3712 = vunpack.c.l.b16 %v3025
      %v3713 = vunpack.c.l.b16 %v3026
      %v3714 = vunpack.c.h.b16 %v3026
      %v3715 = vunpack.c.l.b16 %v3027
      %v3716 = vunpack.c.h.b16 %v3027
      %v3717 = vunpack.c.l.b16 %v3028
      %v3718 = vunpack.c.h.b16 %v3028
      %v3719 = vunpack.c.l.b16 %v3029
      %v3720 = vunpack.c.l.b16 %v3030
      %v3721 = vunpack.c.h.b16 %v3030
      %v3722 = vunpack.c.l.b16 %v3031
      %v3723 = vunpack.c.h.b16 %v3031
      %v3724 = vunpack.c.l.b16 %v3032
      %v3725 = vunpack.c.h.b16 %v3032
      %v3726 = vunpack.c.l.b16 %v3033
      %v3727 = vunpack.c.l.b16 %v3034
      %v3728 = vunpack.c.h.b16 %v3034
      %v3729 = vunpack.c.l.b16 %v3035
      %v3730 = vunpack.c.h.b16 %v3035
      %v3731 = vunpack.c.l.b16 %v3036
      %v3732 = vunpack.c.h.b16 %v3036
      %v3733 = vunpack.c.l.b16 %v3037
      %v3734 = vunpack.c.l.b16 %v3038
      %v3735 = vunpack.c.h.b16 %v3038
      %v3736 = vunpack.c.l.b16 %v3039
      %v3737 = vunpack.c.h.b16 %v3039
      %v3738 = vunpack.c.l.b16 %v3040
      %v3739 = vunpack.c.h.b16 %v3040
      %v3740 = vunpack.c.l.b16 %v3041
      %v3741 = vunpack.c.l.b16 %v3042
      %v3742 = vunpack.c.h.b16 %v3042
      %v3743 = vunpack.c.l.b16 %v3043
      %v3744 = vunpack.c.h.b16 %v3043
      %v3745 = vunpack.c.l.b16 %v3044
      %v3746 = vunpack.c.h.b16 %v3044
      %v3747 = vunpack.c.l.b16 %v3045
      %v3748 = vunpack.c.l.b16 %v3046
      %v3749 = vunpack.c.h.b16 %v3046
      %v3750 = vunpack.c.l.b16 %v3047
      %v3751 = vunpack.c.h.b16 %v3047
      %v3752 = vunpack.c.l.b16 %v3048
      %v3753 = vunpack.c.h.b16 %v3048
      %v3754 = vunpack.c.l.b16 %v3049
      %v3755 = vunpack.c.l.b16 %v3050
      %v3756 = vunpack.c.h.b16 %v3050
      %v3757 = vunpack.c.l.b16 %v3051
      %v3758 = vunpack.c.h.b16 %v3051
      %v3759 = vunpack.c.l.b16 %v3052
      %v3760 = vunpack.c.h.b16 %v3052
      %v3761 = vunpack.c.l.b16 %v3053
      %v3762 = vunpack.c.l.b16 %v3054
      %v3763 = vunpack.c.h.b16 %v3054
      %v3764 = vunpack.c.l.b16 %v3055
      %v3765 = vunpack.c.h.b16 %v3055
      %v3766 = vunpack.c.l.b16 %v3056
      %v3767 = vunpack.c.h.b16 %v3056
      %v3768 = vunpack.c.l.b16 %v3057
      %v3769 = vunpack.c.l.b16 %v3058
      %v3770 = vunpack.c.h.b16 %v3058
      %v3771 = vunpack.c.l.b16 %v3059
      %v3772 = vunpack.c.h.b16 %v3059
      %v3773 = vunpack.c.l.b16 %v3060
      %v3774 = vunpack.c.h.b16 %v3060
      %v3775 = vunpack.c.l.b16 %v3061
      %v3776 = vunpack.c.l.b16 %v3062
      %v3777 = vunpack.c.h.b16 %v3062
      %v3778 = vunpack.c.l.b16 %v3063
      %v3779 = vunpack.c.h.b16 %v3063
      %v3780 = vunpack.c.l.b16 %v3064
      %v3781 = vunpack.c.h.b16 %v3064
      %v3782 = vunpack.c.l.b16 %v3065
      %v3783 = vunpack.c.l.b16 %v3066
      %v3784 = vunpack.c.h.b16 %v3066
      %v3785 = vunpack.c.l.b16 %v3067
      %v3786 = vunpack.c.h.b16 %v3067
      %v3787 = vunpack.c.l.b16 %v3068
      %v3788 = vunpack.c.h.b16 %v3068
      %v3789 = vunpack.c.l.b16 %v3069
      %v3790 = vunpack.c.l.b16 %v3070
      %v3791 = vunpack.c.h.b16 %v3070
      %v3792 = vunpack.c.l.b16 %v3071
      %v3793 = vunpack.c.h.b16 %v3071
      %v3794 = vunpack.c.l.b16 %v3072
      %v3795 = vunpack.c.h.b16 %v3072
      %v3796 = vunpack.c.l.b16 %v3073
      %v3797 = vunpack.c.l.b16 %v3074
      %v3798 = vunpack.c.h.b16 %v3074
      %v3799 = vunpack.c.l.b16 %v3075
      %v3800 = vunpack.c.h.b16 %v3075
      %v3801 = vunpack.c.l.b16 %v3076
      %v3802 = vunpack.c.h.b16 %v3076
      %v3803 = vunpack.c.l.b16 %v3077
      %v3804 = vunpack.c.l.b16 %v3078
      %v3805 = vunpack.c.h.b16 %v3078
      %v3806 = vunpack.c.l.b16 %v3079
      %v3807 = vunpack.c.h.b16 %v3079
      %v3808 = vunpack.c.l.b16 %v3080
      %v3809 = vunpack.c.h.b16 %v3080
      %v3810 = vunpack.c.l.b16 %v3081
      %v3811 = vunpack.c.l.b16 %v3082
      %v3812 = vunpack.c.h.b16 %v3082
      %v3813 = vunpack.c.l.b16 %v3083
      %v3814 = vunpack.c.h.b16 %v3083
      %v3815 = vunpack.c.l.b16 %v3084
      %v3816 = vunpack.c.h.b16 %v3084
      %v3817 = vunpack.c.l.b16 %v3085
      %v3818 = vunpack.c.l.b16 %v3086
      %v3819 = vunpack.c.h.b16 %v3086
      %v3820 = vunpack.c.l.b16 %v3087
      %v3821 = vunpack.c.h.b16 %v3087
      %v3822 = vunpack.c.l.b16 %v3088
      %v3823 = vunpack.c.h.b16 %v3088
      %v3824 = vunpack.c.l.b16 %v3089
      %v3825 = vunpack.c.l.b16 %v3090
      %v3826 = vunpack.c.h.b16 %v3090
      %v3827 = vunpack.c.l.b16 %v3091
      %v3828 = vunpack.c.h.b16 %v3091
      %v3829 = vunpack.c.l.b16 %v3092
      %v3830 = vunpack.c.h.b16 %v3092
      %v3831 = vunpack.c.l.b16 %v3093
      %v3832 = vunpack.c.l.b16 %v3094
      %v3833 = vunpack.c.h.b16 %v3094
      %v3834 = vunpack.c.l.b16 %v3095
      %v3835 = vunpack.c.h.b16 %v3095
      %v3836 = vunpack.c.l.b16 %v3096
      %v3837 = vunpack.c.h.b16 %v3096
      %v3838 = vunpack.c.l.b16 %v3097
      %v3839 = vpack.c.b16 %v3398, %v3391
      %v3840 = vpack.c.b16 %v3399, %v3392
      %v3841 = vpack.c.b16 %v3400, %v3393
      %v3842 = vpack.c.b16 %v3401, %v3394
      %v3843 = vpack.c.b16 %v3402, %v3395
      %v3844 = vpack.c.b16 %v3403, %v3396
      %v3845 = vpack.c.b16 %v3404, %v3397
      %v3846 = vpack.c.b16 %v3412, %v3405
      %v3847 = vpack.c.b16 %v3413, %v3406
      %v3848 = vpack.c.b16 %v3414, %v3407
      %v3849 = vpack.c.b16 %v3415, %v3408
      %v3850 = vpack.c.b16 %v3416, %v3409
      %v3851 = vpack.c.b16 %v3417, %v3410
      %v3852 = vpack.c.b16 %v3418, %v3411
      %v3853 = vpack.c.b16 %v3426, %v3419
      %v3854 = vpack.c.b16 %v3427, %v3420
      %v3855 = vpack.c.b16 %v3428, %v3421
      %v3856 = vpack.c.b16 %v3429, %v3422
      %v3857 = vpack.c.b16 %v3430, %v3423
      %v3858 = vpack.c.b16 %v3431, %v3424
      %v3859 = vpack.c.b16 %v3432, %v3425
      %v3860 = vpack.c.b16 %v3440, %v3433
      %v3861 = vpack.c.b16 %v3441, %v3434
      %v3862 = vpack.c.b16 %v3442, %v3435
      %v3863 = vpack.c.b16 %v3443, %v3436
      %v3864 = vpack.c.b16 %v3444, %v3437
      %v3865 = vpack.c.b16 %v3445, %v3438
      %v3866 = vpack.c.b16 %v3446, %v3439
      %v3867 = vpack.c.b16 %v3454, %v3447
      %v3868 = vpack.c.b16 %v3455, %v3448
      %v3869 = vpack.c.b16 %v3456, %v3449
      %v3870 = vpack.c.b16 %v3457, %v3450
      %v3871 = vpack.c.b16 %v3458, %v3451
      %v3872 = vpack.c.b16 %v3459, %v3452
      %v3873 = vpack.c.b16 %v3460, %v3453
      %v3874 = vpack.c.b16 %v3468, %v3461
      %v3875 = vpack.c.b16 %v3469, %v3462
      %v3876 = vpack.c.b16 %v3470, %v3463
      %v3877 = vpack.c.b16 %v3471, %v3464
      %v3878 = vpack.c.b16 %v3472, %v3465
      %v3879 = vpack.c.b16 %v3473, %v3466
      %v3880 = vpack.c.b16 %v3474, %v3467
      %v3881 = vpack.c.b16 %v3482, %v3475
      %v3882 = vpack.c.b16 %v3483, %v3476
      %v3883 = vpack.c.b16 %v3484, %v3477
      %v3884 = vpack.c.b16 %v3485, %v3478
      %v3885 = vpack.c.b16 %v3486, %v3479
      %v3886 = vpack.c.b16 %v3487, %v3480
      %v3887 = vpack.c.b16 %v3488, %v3481
      %v3888 = vpack.c.b16 %v3496, %v3489
      %v3889 = vpack.c.b16 %v3497, %v3490
      %v3890 = vpack.c.b16 %v3498, %v3491
      %v3891 = vpack.c.b16 %v3499, %v3492
      %v3892 = vpack.c.b16 %v3500, %v3493
      %v3893 = vpack.c.b16 %v3501, %v3494
      %v3894 = vpack.c.b16 %v3502, %v3495
      %v3895 = vpack.c.b16 %v3510, %v3503
      %v3896 = vpack.c.b16 %v3511, %v3504
      %v3897 = vpack.c.b16 %v3512, %v3505
      %v3898 = vpack.c.b16 %v3513, %v3506
      %v3899 = vpack.c.b16 %v3514, %v3507
      %v3900 = vpack.c.b16 %v3515, %v3508
      %v3901 = vpack.c.b16 %v3516, %v3509
      %v3902 = vpack.c.b16 %v3524, %v3517
      %v3903 = vpack.c.b16 %v3525, %v3518
      %v3904 = vpack.c.b16 %v3526, %v3519
      %v3905 = vpack.c.b16 %v3527, %v3520
      %v3906 = vpack.c.b16 %v3528, %v3521
      %v3907 = vpack.c.b16 %v3529, %v3522
      %v3908 = vpack.c.b16 %v3530, %v3523
      %v3909 = vpack.c.b16 %v3538, %v3531
      %v3910 = vpack.c.b16 %v3539, %v3532
      %v3911 = vpack.c.b16 %v3540, %v3533
      %v3912 = vpack.c.b16 %v3541, %v3534
      %v3913 = vpack.c.b16 %v3542, %v3535
      %v3914 = vpack.c.b16 %v3543, %v3536
      %v3915 = vpack.c.b16 %v3544, %v3537
      %v3916 = vpack.c.b16 %v3552, %v3545
      %v3917 = vpack.c.b16 %v3553, %v3546
      %v3918 = vpack.c.b16 %v3554, %v3547
      %v3919 = vpack.c.b16 %v3555, %v3548
      %v3920 = vpack.c.b16 %v3556, %v3549
      %v3921 = vpack.c.b16 %v3557, %v3550
      %v3922 = vpack.c.b16 %v3558, %v3551
      %v3923 = vpack.c.b16 %v3566, %v3559
      %v3924 = vpack.c.b16 %v3567, %v3560
      %v3925 = vpack.c.b16 %v3568, %v3561
      %v3926 = vpack.c.b16 %v3569, %v3562
      %v3927 = vpack.c.b16 %v3570, %v3563
      %v3928 = vpack.c.b16 %v3571, %v3564
      %v3929 = vpack.c.b16 %v3572, %v3565
      %v3930 = vpack.c.b16 %v3580, %v3573
      %v3931 = vpack.c.b16 %v3581, %v3574
      %v3932 = vpack.c.b16 %v3582, %v3575
      %v3933 = vpack.c.b16 %v3583, %v3576
      %v3934 = vpack.c.b16 %v3584, %v3577
      %v3935 = vpack.c.b16 %v3585, %v3578
      %v3936 = vpack.c.b16 %v3586, %v3579
      %v3937 = vpack.c.b16 %v3594, %v3587
      %v3938 = vpack.c.b16 %v3595, %v3588
      %v3939 = vpack.c.b16 %v3596, %v3589
      %v3940 = vpack.c.b16 %v3597, %v3590
      %v3941 = vpack.c.b16 %v3598, %v3591
      %v3942 = vpack.c.b16 %v3599, %v3592
      %v3943 = vpack.c.b16 %v3600, %v3593
      %v3944 = vpack.c.b16 %v3608, %v3601
      %v3945 = vpack.c.b16 %v3609, %v3602
      %v3946 = vpack.c.b16 %v3610, %v3603
      %v3947 = vpack.c.b16 %v3611, %v3604
      %v3948 = vpack.c.b16 %v3612, %v3605
      %v3949 = vpack.c.b16 %v3613, %v3606
      %v3950 = vpack.c.b16 %v3614, %v3607
      %v3951 = vpack.c.b16 %v3622, %v3615
      %v3952 = vpack.c.b16 %v3623, %v3616
      %v3953 = vpack.c.b16 %v3624, %v3617
      %v3954 = vpack.c.b16 %v3625, %v3618
      %v3955 = vpack.c.b16 %v3626, %v3619
      %v3956 = vpack.c.b16 %v3627, %v3620
      %v3957 = vpack.c.b16 %v3628, %v3621
      %v3958 = vpack.c.b16 %v3636, %v3629
      %v3959 = vpack.c.b16 %v3637, %v3630
      %v3960 = vpack.c.b16 %v3638, %v3631
      %v3961 = vpack.c.b16 %v3639, %v3632
      %v3962 = vpack.c.b16 %v3640, %v3633
      %v3963 = vpack.c.b16 %v3641, %v3634
      %v3964 = vpack.c.b16 %v3642, %v3635
      %v3965 = vpack.c.b16 %v3650, %v3643
      %v3966 = vpack.c.b16 %v3651, %v3644
      %v3967 = vpack.c.b16 %v3652, %v3645
      %v3968 = vpack.c.b16 %v3653, %v3646
      %v3969 = vpack.c.b16 %v3654, %v3647
      %v3970 = vpack.c.b16 %v3655, %v3648
      %v3971 = vpack.c.b16 %v3656, %v3649
      %v3972 = vpack.c.b16 %v3664, %v3657
      %v3973 = vpack.c.b16 %v3665, %v3658
      %v3974 = vpack.c.b16 %v3666, %v3659
      %v3975 = vpack.c.b16 %v3667, %v3660
      %v3976 = vpack.c.b16 %v3668, %v3661
      %v3977 = vpack.c.b16 %v3669, %v3662
      %v3978 = vpack.c.b16 %v3670, %v3663
      %v3979 = vpack.c.b16 %v3678, %v3671
      %v3980 = vpack.c.b16 %v3679, %v3672
      %v3981 = vpack.c.b16 %v3680, %v3673
      %v3982 = vpack.c.b16 %v3681, %v3674
      %v3983 = vpack.c.b16 %v3682, %v3675
      %v3984 = vpack.c.b16 %v3683, %v3676
      %v3985 = vpack.c.b16 %v3684, %v3677
      %v3986 = vpack.c.b16 %v3692, %v3685
      %v3987 = vpack.c.b16 %v3693, %v3686
      %v3988 = vpack.c.b16 %v3694, %v3687
      %v3989 = vpack.c.b16 %v3695, %v3688
      %v3990 = vpack.c.b16 %v3696, %v3689
      %v3991 = vpack.c.b16 %v3697, %v3690
      %v3992 = vpack.c.b16 %v3698, %v3691
      %v3993 = vpack.c.b16 %v3706, %v3699
      %v3994 = vpack.c.b16 %v3707, %v3700
      %v3995 = vpack.c.b16 %v3708, %v3701
      %v3996 = vpack.c.b16 %v3709, %v3702
      %v3997 = vpack.c.b16 %v3710, %v3703
      %v3998 = vpack.c.b16 %v3711, %v3704
      %v3999 = vpack.c.b16 %v3712, %v3705
      %v4000 = vpack.c.b16 %v3720, %v3713
      %v4001 = vpack.c.b16 %v3721, %v3714
      %v4002 = vpack.c.b16 %v3722, %v3715
      %v4003 = vpack.c.b16 %v3723, %v3716
      %v4004 = vpack.c.b16 %v3724, %v3717
      %v4005 = vpack.c.b16 %v3725, %v3718
      %v4006 = vpack.c.b16 %v3726, %v3719
      %v4007 = vpack.c.b16 %v3734, %v3727
      %v4008 = vpack.c.b16 %v3735, %v3728
      %v4009 = vpack.c.b16 %v3736, %v3729
      %v4010 = vpack.c.b16 %v3737, %v3730
      %v4011 = vpack.c.b16 %v3738, %v3731
      %v4012 = vpack.c.b16 %v3739, %v3732
      %v4013 = vpack.c.b16 %v3740, %v3733
      %v4014 = vpack.c.b16 %v3748, %v3741
      %v4015 = vpack.c.b16 %v3749, %v3742
      %v4016 = vpack.c.b16 %v3750, %v3743
      %v4017 = vpack.c.b16 %v3751, %v3744
      %v4018 = vpack.c.b16 %v3752, %v3745
      %v4019 = vpack.c.b16 %v3753, %v3746
      %v4020 = vpack.c.b16 %v3754, %v3747
      %v4021 = vpack.c.b16 %v3762, %v3755
      %v4022 = vpack.c.b16 %v3763, %v3756
      %v4023 = vpack.c.b16 %v3764, %v3757
      %v4024 = vpack.c.b16 %v3765, %v3758
      %v4025 = vpack.c.b16 %v3766, %v3759
      %v4026 = vpack.c.b16 %v3767, %v3760
      %v4027 = vpack.c.b16 %v3768, %v3761
      %v4028 = vpack.c.b16 %v3776, %v3769
      %v4029 = vpack.c.b16 %v3777, %v3770
      %v4030 = vpack.c.b16 %v3778, %v3771
      %v4031 = vpack.c.b16 %v3779, %v3772
      %v4032 = vpack.c.b16 %v3780, %v3773
      %v4033 = vpack.c.b16 %v3781, %v3774
      %v4034 = vpack.c.b16 %v3782, %v3775
      %v4035 = vpack.c.b16 %v3790, %v3783
      %v4036 = vpack.c.b16 %v3791, %v3784
      %v4037 = vpack.c.b16 %v3792, %v3785
      %v4038 = vpack.c.b16 %v3793, %v3786
      %v4039 = vpack.c.b16 %v3794, %v3787
      %v4040 = vpack.c.b16 %v3795, %v3788
      %v4041 = vpack.c.b16 %v3796, %v3789
      %v4042 = vpack.c.b16 %v3804, %v3797
      %v4043 = vpack.c.b16 %v3805, %v3798
      %v4044 = vpack.c.b16 %v3806, %v3799
      %v4045 = vpack.c.b16 %v3807, %v3800
      %v4046 = vpack.c.b16 %v3808, %v3801
      %v4047 = vpack.c.b16 %v3809, %v3802
      %v4048 = vpack.c.b16 %v3810, %v3803
      %v4049 = vpack.c.b16 %v3818, %v3811
      %v4050 = vpack.c.b16 %v3819, %v3812
      %v4051 = vpack.c.b16 %v3820, %v3813
      %v4052 = vpack.c.b16 %v3821, %v3814
      %v4053 = vpack.c.b16 %v3822, %v3815
      %v4054 = vpack.c.b16 %v3823, %v3816
      %v4055 = vpack.c.b16 %v3824, %v3817
      %v4056 = vpack.c.b16 %v3832, %v3825
      %v4057 = vpack.c.b16 %v3833, %v3826
      %v4058 = vpack.c.b16 %v3834, %v3827
      %v4059 = vpack.c.b16 %v3835, %v3828
      %v4060 = vpack.c.b16 %v3836, %v3829
      %v4061 = vpack.c.b16 %v3837, %v3830
      %v4062 = vpack.c.b16 %v3838, %v3831
      %4287 = vmatprep.subr.bf16.mxu0 %v3889
      %4288 = vmatpush1.bf16.msra.mxu0 %v3888
      %4289 = vmatprep.subr.bf16.mxu0 %v3882
      %4290 = vmatpush1.bf16.msra.mxu0 %v3881
      %4291 = vmatprep.subr.bf16.mxu0 %v3875
      %4292 = vmatpush1.bf16.msra.mxu0 %v3874
      %4293 = vmatprep.subr.bf16.mxu0 %v3868
      %4294 = vmatpush1.bf16.msra.mxu0 %v3867
      %4295 = vmatprep.subr.bf16.mxu0 %v3861
      %4296 = vmatpush1.bf16.msra.mxu0 %v3860
      %4297 = vmatprep.subr.bf16.mxu0 %v3854
      %4298 = vmatpush1.bf16.msra.mxu0 %v3853
      %4299 = vmatprep.subr.bf16.mxu0 %v3847
      %4300 = vmatpush1.bf16.msra.mxu0 %v3846
      %4301 = vmatprep.subr.bf16.mxu0 %v3840
      %4302 = vmatpush1.bf16.msra.mxu0 %v3839
      %4303 = vmatprep.subr.bf16.mxu0 %v3945
      %4304 = vmatpush2.bf16.msra.mxu0 %v3944
      %4305 = vmatprep.subr.bf16.mxu0 %v3938
      %4306 = vmatpush2.bf16.msra.mxu0 %v3937
      %4307 = vmatprep.subr.bf16.mxu0 %v3931
      %4308 = vmatpush2.bf16.msra.mxu0 %v3930
      %4309 = vmatprep.subr.bf16.mxu0 %v3924
      %4310 = vmatpush2.bf16.msra.mxu0 %v3923
      %4311 = vmatprep.subr.bf16.mxu0 %v3917
      %4312 = vmatpush2.bf16.msra.mxu0 %v3916
      %4313 = vmatprep.subr.bf16.mxu0 %v3910
      %4314 = vmatpush2.bf16.msra.mxu0 %v3909
      %4315 = vmatprep.subr.bf16.mxu0 %v3903
      %4316 = vmatpush2.bf16.msra.mxu0 %v3902
      %4317 = vmatprep.subr.bf16.mxu0 %v3896
      %4318 = vmatpush2.bf16.msra.mxu0 %v3895
      %4319 = vmatprep.mubr.bf16.mxu0 %v2839
      %4320 = vmatmul.mubr.bf16.gmra.mxu0 %v2838
      %v4321 = vpop.f32.mrf.mxu0
      %v4322 = vadd.f32 %v3103, %v4321
      %v4323 = vpop.f32.mrf.mxu0
      %v4324 = vadd.f32 %v3107, %v4323
      %v4325 = vpop.f32.mrf.mxu0
      %v4326 = vadd.f32 %v3103, %v4325
      %v4327 = vpop.f32.mrf.mxu0
      %v4328 = vadd.f32 %v3107, %v4327
      %4329 = vdwg.mxu0
      %4330 = vmatprep.subr.bf16.mxu0 %v4001
      %4331 = vmatpush1.bf16.msra.mxu0 %v4000
      %4332 = vmatprep.subr.bf16.mxu0 %v3994
      %4333 = vmatpush1.bf16.msra.mxu0 %v3993
      %4334 = vmatprep.subr.bf16.mxu0 %v3987
      %4335 = vmatpush1.bf16.msra.mxu0 %v3986
      %4336 = vmatprep.subr.bf16.mxu0 %v3980
      %4337 = vmatpush1.bf16.msra.mxu0 %v3979
      %4338 = vmatprep.subr.bf16.mxu0 %v3973
      %4339 = vmatpush1.bf16.msra.mxu0 %v3972
      %4340 = vmatprep.subr.bf16.mxu0 %v3966
      %4341 = vmatpush1.bf16.msra.mxu0 %v3965
      %4342 = vmatprep.subr.bf16.mxu0 %v3959
      %4343 = vmatpush1.bf16.msra.mxu0 %v3958
      %4344 = vmatprep.subr.bf16.mxu0 %v3952
      %4345 = vmatpush1.bf16.msra.mxu0 %v3951
      %4346 = vmatprep.subr.bf16.mxu0 %v4057
      %4347 = vmatpush2.bf16.msra.mxu0 %v4056
      %4348 = vmatprep.subr.bf16.mxu0 %v4050
      %4349 = vmatpush2.bf16.msra.mxu0 %v4049
      %4350 = vmatprep.subr.bf16.mxu0 %v4043
      %4351 = vmatpush2.bf16.msra.mxu0 %v4042
      %4352 = vmatprep.subr.bf16.mxu0 %v4036
      %4353 = vmatpush2.bf16.msra.mxu0 %v4035
      %4354 = vmatprep.subr.bf16.mxu0 %v4029
      %4355 = vmatpush2.bf16.msra.mxu0 %v4028
      %4356 = vmatprep.subr.bf16.mxu0 %v4022
      %4357 = vmatpush2.bf16.msra.mxu0 %v4021
      %4358 = vmatprep.subr.bf16.mxu0 %v4015
      %4359 = vmatpush2.bf16.msra.mxu0 %v4014
      %4360 = vmatprep.subr.bf16.mxu0 %v4008
      %4361 = vmatpush2.bf16.msra.mxu0 %v4007
      %4362 = vmatprep.mubr.bf16.mxu0 %v2841
      %4363 = vmatmul.mubr.bf16.gmra.mxu0 %v2840
      %v4364 = vpop.f32.mrf.mxu0
      %v4365 = vadd.f32 %v4322, %v4364
      %v4366 = vpop.f32.mrf.mxu0
      %v4367 = vadd.f32 %v4324, %v4366
      %v4368 = vpop.f32.mrf.mxu0
      %v4369 = vadd.f32 %v4326, %v4368
      %v4370 = vpop.f32.mrf.mxu0
      %v4371 = vadd.f32 %v4328, %v4370
      %4372 = vdwg.mxu0
      %4373 = vmatprep.subr.bf16.mxu0 %v3891
      %4374 = vmatpush1.bf16.msra.mxu0 %v3890
      %4375 = vmatprep.subr.bf16.mxu0 %v3884
      %4376 = vmatpush1.bf16.msra.mxu0 %v3883
      %4377 = vmatprep.subr.bf16.mxu0 %v3877
      %4378 = vmatpush1.bf16.msra.mxu0 %v3876
      %4379 = vmatprep.subr.bf16.mxu0 %v3870
      %4380 = vmatpush1.bf16.msra.mxu0 %v3869
      %4381 = vmatprep.subr.bf16.mxu0 %v3863
      %4382 = vmatpush1.bf16.msra.mxu0 %v3862
      %4383 = vmatprep.subr.bf16.mxu0 %v3856
      %4384 = vmatpush1.bf16.msra.mxu0 %v3855
      %4385 = vmatprep.subr.bf16.mxu0 %v3849
      %4386 = vmatpush1.bf16.msra.mxu0 %v3848
      %4387 = vmatprep.subr.bf16.mxu0 %v3842
      %4388 = vmatpush1.bf16.msra.mxu0 %v3841
      %4389 = vmatprep.subr.bf16.mxu0 %v3947
      %4390 = vmatpush2.bf16.msra.mxu0 %v3946
      %4391 = vmatprep.subr.bf16.mxu0 %v3940
      %4392 = vmatpush2.bf16.msra.mxu0 %v3939
      %4393 = vmatprep.subr.bf16.mxu0 %v3933
      %4394 = vmatpush2.bf16.msra.mxu0 %v3932
      %4395 = vmatprep.subr.bf16.mxu0 %v3926
      %4396 = vmatpush2.bf16.msra.mxu0 %v3925
      %4397 = vmatprep.subr.bf16.mxu0 %v3919
      %4398 = vmatpush2.bf16.msra.mxu0 %v3918
      %4399 = vmatprep.subr.bf16.mxu0 %v3912
      %4400 = vmatpush2.bf16.msra.mxu0 %v3911
      %4401 = vmatprep.subr.bf16.mxu0 %v3905
      %4402 = vmatpush2.bf16.msra.mxu0 %v3904
      %4403 = vmatprep.subr.bf16.mxu0 %v3898
      %4404 = vmatpush2.bf16.msra.mxu0 %v3897
      %4405 = vmatprep.mubr.bf16.mxu0 %v2839
      %4406 = vmatmul.mubr.bf16.gmra.mxu0 %v2838
      %v4407 = vpop.f32.mrf.mxu0
      %v4408 = vadd.f32 %v3111, %v4407
      %v4409 = vpop.f32.mrf.mxu0
      %v4410 = vadd.f32 %v3115, %v4409
      %v4411 = vpop.f32.mrf.mxu0
      %v4412 = vadd.f32 %v3111, %v4411
      %v4413 = vpop.f32.mrf.mxu0
      %v4414 = vadd.f32 %v3115, %v4413
      %4415 = vdwg.mxu0
      %4416 = vmatprep.subr.bf16.mxu0 %v4003
      %4417 = vmatpush1.bf16.msra.mxu0 %v4002
      %4418 = vmatprep.subr.bf16.mxu0 %v3996
      %4419 = vmatpush1.bf16.msra.mxu0 %v3995
      %4420 = vmatprep.subr.bf16.mxu0 %v3989
      %4421 = vmatpush1.bf16.msra.mxu0 %v3988
      %4422 = vmatprep.subr.bf16.mxu0 %v3982
      %4423 = vmatpush1.bf16.msra.mxu0 %v3981
      %4424 = vmatprep.subr.bf16.mxu0 %v3975
      %4425 = vmatpush1.bf16.msra.mxu0 %v3974
      %4426 = vmatprep.subr.bf16.mxu0 %v3968
      %4427 = vmatpush1.bf16.msra.mxu0 %v3967
      %4428 = vmatprep.subr.bf16.mxu0 %v3961
      %4429 = vmatpush1.bf16.msra.mxu0 %v3960
      %4430 = vmatprep.subr.bf16.mxu0 %v3954
      %4431 = vmatpush1.bf16.msra.mxu0 %v3953
      %4432 = vmatprep.subr.bf16.mxu0 %v4059
      %4433 = vmatpush2.bf16.msra.mxu0 %v4058
      %4434 = vmatprep.subr.bf16.mxu0 %v4052
      %4435 = vmatpush2.bf16.msra.mxu0 %v4051
      %4436 = vmatprep.subr.bf16.mxu0 %v4045
      %4437 = vmatpush2.bf16.msra.mxu0 %v4044
      %4438 = vmatprep.subr.bf16.mxu0 %v4038
      %4439 = vmatpush2.bf16.msra.mxu0 %v4037
      %4440 = vmatprep.subr.bf16.mxu0 %v4031
      %4441 = vmatpush2.bf16.msra.mxu0 %v4030
      %4442 = vmatprep.subr.bf16.mxu0 %v4024
      %4443 = vmatpush2.bf16.msra.mxu0 %v4023
      %4444 = vmatprep.subr.bf16.mxu0 %v4017
      %4445 = vmatpush2.bf16.msra.mxu0 %v4016
      %4446 = vmatprep.subr.bf16.mxu0 %v4010
      %4447 = vmatpush2.bf16.msra.mxu0 %v4009
      %4448 = vmatprep.mubr.bf16.mxu0 %v2841
      %4449 = vmatmul.mubr.bf16.gmra.mxu0 %v2840
      %v4450 = vpop.f32.mrf.mxu0
      %v4451 = vadd.f32 %v4408, %v4450
      %v4452 = vpop.f32.mrf.mxu0
      %v4453 = vadd.f32 %v4410, %v4452
      %v4454 = vpop.f32.mrf.mxu0
      %v4455 = vadd.f32 %v4412, %v4454
      %v4456 = vpop.f32.mrf.mxu0
      %v4457 = vadd.f32 %v4414, %v4456
      %4458 = vdwg.mxu0
      %4459 = vmatprep.subr.bf16.mxu0 %v3893
      %4460 = vmatpush1.bf16.msra.mxu0 %v3892
      %4461 = vmatprep.subr.bf16.mxu0 %v3886
      %4462 = vmatpush1.bf16.msra.mxu0 %v3885
      %4463 = vmatprep.subr.bf16.mxu0 %v3879
      %4464 = vmatpush1.bf16.msra.mxu0 %v3878
      %4465 = vmatprep.subr.bf16.mxu0 %v3872
      %4466 = vmatpush1.bf16.msra.mxu0 %v3871
      %4467 = vmatprep.subr.bf16.mxu0 %v3865
      %4468 = vmatpush1.bf16.msra.mxu0 %v3864
      %4469 = vmatprep.subr.bf16.mxu0 %v3858
      %4470 = vmatpush1.bf16.msra.mxu0 %v3857
      %4471 = vmatprep.subr.bf16.mxu0 %v3851
      %4472 = vmatpush1.bf16.msra.mxu0 %v3850
      %4473 = vmatprep.subr.bf16.mxu0 %v3844
      %4474 = vmatpush1.bf16.msra.mxu0 %v3843
      %4475 = vmatprep.subr.bf16.mxu0 %v3949
      %4476 = vmatpush2.bf16.msra.mxu0 %v3948
      %4477 = vmatprep.subr.bf16.mxu0 %v3942
      %4478 = vmatpush2.bf16.msra.mxu0 %v3941
      %4479 = vmatprep.subr.bf16.mxu0 %v3935
      %4480 = vmatpush2.bf16.msra.mxu0 %v3934
      %4481 = vmatprep.subr.bf16.mxu0 %v3928
      %4482 = vmatpush2.bf16.msra.mxu0 %v3927
      %4483 = vmatprep.subr.bf16.mxu0 %v3921
      %4484 = vmatpush2.bf16.msra.mxu0 %v3920
      %4485 = vmatprep.subr.bf16.mxu0 %v3914
      %4486 = vmatpush2.bf16.msra.mxu0 %v3913
      %4487 = vmatprep.subr.bf16.mxu0 %v3907
      %4488 = vmatpush2.bf16.msra.mxu0 %v3906
      %4489 = vmatprep.subr.bf16.mxu0 %v3900
      %4490 = vmatpush2.bf16.msra.mxu0 %v3899
      %4491 = vmatprep.mubr.bf16.mxu0 %v2839
      %4492 = vmatmul.mubr.bf16.gmra.mxu0 %v2838
      %v4493 = vpop.f32.mrf.mxu0
      %v4494 = vadd.f32 %v3119, %v4493
      %v4495 = vpop.f32.mrf.mxu0
      %v4496 = vadd.f32 %v3123, %v4495
      %v4497 = vpop.f32.mrf.mxu0
      %v4498 = vadd.f32 %v3119, %v4497
      %v4499 = vpop.f32.mrf.mxu0
      %v4500 = vadd.f32 %v3123, %v4499
      %4501 = vdwg.mxu0
      %4502 = vmatprep.subr.bf16.mxu0 %v4005
      %4503 = vmatpush1.bf16.msra.mxu0 %v4004
      %4504 = vmatprep.subr.bf16.mxu0 %v3998
      %4505 = vmatpush1.bf16.msra.mxu0 %v3997
      %4506 = vmatprep.subr.bf16.mxu0 %v3991
      %4507 = vmatpush1.bf16.msra.mxu0 %v3990
      %4508 = vmatprep.subr.bf16.mxu0 %v3984
      %4509 = vmatpush1.bf16.msra.mxu0 %v3983
      %4510 = vmatprep.subr.bf16.mxu0 %v3977
      %4511 = vmatpush1.bf16.msra.mxu0 %v3976
      %4512 = vmatprep.subr.bf16.mxu0 %v3970
      %4513 = vmatpush1.bf16.msra.mxu0 %v3969
      %4514 = vmatprep.subr.bf16.mxu0 %v3963
      %4515 = vmatpush1.bf16.msra.mxu0 %v3962
      %4516 = vmatprep.subr.bf16.mxu0 %v3956
      %4517 = vmatpush1.bf16.msra.mxu0 %v3955
      %4518 = vmatprep.subr.bf16.mxu0 %v4061
      %4519 = vmatpush2.bf16.msra.mxu0 %v4060
      %4520 = vmatprep.subr.bf16.mxu0 %v4054
      %4521 = vmatpush2.bf16.msra.mxu0 %v4053
      %4522 = vmatprep.subr.bf16.mxu0 %v4047
      %4523 = vmatpush2.bf16.msra.mxu0 %v4046
      %4524 = vmatprep.subr.bf16.mxu0 %v4040
      %4525 = vmatpush2.bf16.msra.mxu0 %v4039
      %4526 = vmatprep.subr.bf16.mxu0 %v4033
      %4527 = vmatpush2.bf16.msra.mxu0 %v4032
      %4528 = vmatprep.subr.bf16.mxu0 %v4026
      %4529 = vmatpush2.bf16.msra.mxu0 %v4025
      %4530 = vmatprep.subr.bf16.mxu0 %v4019
      %4531 = vmatpush2.bf16.msra.mxu0 %v4018
      %4532 = vmatprep.subr.bf16.mxu0 %v4012
      %4533 = vmatpush2.bf16.msra.mxu0 %v4011
      %4534 = vmatprep.mubr.bf16.mxu0 %v2841
      %4535 = vmatmul.mubr.bf16.gmra.mxu0 %v2840
      %v4536 = vpop.f32.mrf.mxu0
      %v4537 = vadd.f32 %v4494, %v4536
      %v4538 = vpop.f32.mrf.mxu0
      %v4539 = vadd.f32 %v4496, %v4538
      %v4540 = vpop.f32.mrf.mxu0
      %v4541 = vadd.f32 %v4498, %v4540
      %v4542 = vpop.f32.mrf.mxu0
      %v4543 = vadd.f32 %v4500, %v4542
      %4544 = vdwg.mxu0
      %4545 = vmatprep.subr.bf16.mxu0 0
      %4546 = vmatpush1.bf16.msra.mxu0 %v3894
      %4547 = vmatprep.subr.bf16.mxu0 0
      %4548 = vmatpush1.bf16.msra.mxu0 %v3887
      %4549 = vmatprep.subr.bf16.mxu0 0
      %4550 = vmatpush1.bf16.msra.mxu0 %v3880
      %4551 = vmatprep.subr.bf16.mxu0 0
      %4552 = vmatpush1.bf16.msra.mxu0 %v3873
      %4553 = vmatprep.subr.bf16.mxu0 0
      %4554 = vmatpush1.bf16.msra.mxu0 %v3866
      %4555 = vmatprep.subr.bf16.mxu0 0
      %4556 = vmatpush1.bf16.msra.mxu0 %v3859
      %4557 = vmatprep.subr.bf16.mxu0 0
      %4558 = vmatpush1.bf16.msra.mxu0 %v3852
      %4559 = vmatprep.subr.bf16.mxu0 0
      %4560 = vmatpush1.bf16.msra.mxu0 %v3845
      %4561 = vmatprep.subr.bf16.mxu0 0
      %4562 = vmatpush2.bf16.msra.mxu0 %v3950
      %4563 = vmatprep.subr.bf16.mxu0 0
      %4564 = vmatpush2.bf16.msra.mxu0 %v3943
      %4565 = vmatprep.subr.bf16.mxu0 0
      %4566 = vmatpush2.bf16.msra.mxu0 %v3936
      %4567 = vmatprep.subr.bf16.mxu0 0
      %4568 = vmatpush2.bf16.msra.mxu0 %v3929
      %4569 = vmatprep.subr.bf16.mxu0 0
      %4570 = vmatpush2.bf16.msra.mxu0 %v3922
      %4571 = vmatprep.subr.bf16.mxu0 0
      %4572 = vmatpush2.bf16.msra.mxu0 %v3915
      %4573 = vmatprep.subr.bf16.mxu0 0
      %4574 = vmatpush2.bf16.msra.mxu0 %v3908
      %4575 = vmatprep.subr.bf16.mxu0 0
      %4576 = vmatpush2.bf16.msra.mxu0 %v3901
      %4577 = vmatprep.mubr.bf16.mxu0 %v2839
      %4578 = vmatmul.mubr.bf16.gmra.mxu0 %v2838
      %v4579 = vpop.f32.mrf.mxu0
      %v4580 = vadd.f32 %v3127, %v4579
      %v4581 = vpop.f32.mrf.mxu0
      %v4582 = vpop.f32.mrf.mxu0
      %v4583 = vadd.f32 %v3127, %v4582
      %v4584 = vpop.f32.mrf.mxu0
      %4585 = vdwg.mxu0
      %4586 = vmatprep.subr.bf16.mxu0 0
      %4587 = vmatpush1.bf16.msra.mxu0 %v4006
      %4588 = vmatprep.subr.bf16.mxu0 0
      %4589 = vmatpush1.bf16.msra.mxu0 %v3999
      %4590 = vmatprep.subr.bf16.mxu0 0
      %4591 = vmatpush1.bf16.msra.mxu0 %v3992
      %4592 = vmatprep.subr.bf16.mxu0 0
      %4593 = vmatpush1.bf16.msra.mxu0 %v3985
      %4594 = vmatprep.subr.bf16.mxu0 0
      %4595 = vmatpush1.bf16.msra.mxu0 %v3978
      %4596 = vmatprep.subr.bf16.mxu0 0
      %4597 = vmatpush1.bf16.msra.mxu0 %v3971
      %4598 = vmatprep.subr.bf16.mxu0 0
      %4599 = vmatpush1.bf16.msra.mxu0 %v3964
      %4600 = vmatprep.subr.bf16.mxu0 0
      %4601 = vmatpush1.bf16.msra.mxu0 %v3957
      %4602 = vmatprep.subr.bf16.mxu0 0
      %4603 = vmatpush2.bf16.msra.mxu0 %v4062
      %4604 = vmatprep.subr.bf16.mxu0 0
      %4605 = vmatpush2.bf16.msra.mxu0 %v4055
      %4606 = vmatprep.subr.bf16.mxu0 0
      %4607 = vmatpush2.bf16.msra.mxu0 %v4048
      %4608 = vmatprep.subr.bf16.mxu0 0
      %4609 = vmatpush2.bf16.msra.mxu0 %v4041
      %4610 = vmatprep.subr.bf16.mxu0 0
      %4611 = vmatpush2.bf16.msra.mxu0 %v4034
      %4612 = vmatprep.subr.bf16.mxu0 0
      %4613 = vmatpush2.bf16.msra.mxu0 %v4027
      %4614 = vmatprep.subr.bf16.mxu0 0
      %4615 = vmatpush2.bf16.msra.mxu0 %v4020
      %4616 = vmatprep.subr.bf16.mxu0 0
      %4617 = vmatpush2.bf16.msra.mxu0 %v4013
      %4618 = vmatprep.mubr.bf16.mxu0 %v2841
      %4619 = vmatmul.mubr.bf16.gmra.mxu0 %v2840
      %v4620 = vpop.f32.mrf.mxu0
      %v4621 = vadd.f32 %v4580, %v4620
      %v4622 = vpop.f32.mrf.mxu0
      %v4623 = vpop.f32.mrf.mxu0
      %v4624 = vadd.f32 %v4583, %v4623
      %v4625 = vpop.f32.mrf.mxu0
      %4626 = vdwg.mxu0
      %v4627 = vxor.u32 %v4365, 2147483648
      %v4628 = vxor.u32 %v4367, 2147483648
      %v4629 = vxor.u32 %v4451, 2147483648
      %v4630 = vxor.u32 %v4453, 2147483648
      %v4631 = vxor.u32 %v4537, 2147483648
      %v4632 = vxor.u32 %v4539, 2147483648
      %v4633 = vxor.u32 %v4621, 2147483648
      %v4634 = vxor.u32 %v4369, 2147483648
      %v4635 = vxor.u32 %v4371, 2147483648
      %v4636 = vxor.u32 %v4455, 2147483648
      %v4637 = vxor.u32 %v4457, 2147483648
      %v4638 = vxor.u32 %v4541, 2147483648
      %v4639 = vxor.u32 %v4543, 2147483648
      %v4640 = vxor.u32 %v4624, 2147483648
      %v4641 = vmul.f32 %v4627, 1.442695
      %v4642 = vpow.pop %v4641
      %v4643 = vmul.f32 %v4628, 1.442695
      %v4644 = vpow.pop %v4643
      %v4645 = vmul.f32 %v4629, 1.442695
      %v4646 = vpow.pop %v4645
      %v4647 = vmul.f32 %v4630, 1.442695
      %v4648 = vpow.pop %v4647
      %v4649 = vmul.f32 %v4631, 1.442695
      %v4650 = vpow.pop %v4649
      %v4651 = vmul.f32 %v4632, 1.442695
      %v4652 = vpow.pop %v4651
      %v4653 = vmul.f32 %v4633, 1.442695
      %v4654 = vpow.pop %v4653
      %v4655 = vmul.f32 %v4634, 1.442695
      %v4656 = vpow.pop %v4655
      %v4657 = vmul.f32 %v4635, 1.442695
      %v4658 = vpow.pop %v4657
      %v4659 = vmul.f32 %v4636, 1.442695
      %v4660 = vpow.pop %v4659
      %v4661 = vmul.f32 %v4637, 1.442695
      %v4662 = vpow.pop %v4661
      %v4663 = vmul.f32 %v4638, 1.442695
      %v4664 = vpow.pop %v4663
      %v4665 = vmul.f32 %v4639, 1.442695
      %v4666 = vpow.pop %v4665
      %v4667 = vmul.f32 %v4640, 1.442695
      %v4668 = vpow.pop %v4667
      %v4669 = vadd.f32 %v4642, 1.0
      %v4670 = vadd.f32 %v4644, 1.0
      %v4671 = vadd.f32 %v4646, 1.0
      %v4672 = vadd.f32 %v4648, 1.0
      %v4673 = vadd.f32 %v4650, 1.0
      %v4674 = vadd.f32 %v4652, 1.0
      %v4675 = vadd.f32 %v4654, 1.0
      %v4676 = vadd.f32 %v4656, 1.0
      %v4677 = vadd.f32 %v4658, 1.0
      %v4678 = vadd.f32 %v4660, 1.0
      %v4679 = vadd.f32 %v4662, 1.0
      %v4680 = vadd.f32 %v4664, 1.0
      %v4681 = vadd.f32 %v4666, 1.0
      %v4682 = vadd.f32 %v4668, 1.0
      %v4683 = vrcp.pop %v4669
      %v4684 = vmul.f32 1.0, %v4683
      %v4685 = vrcp.pop %v4670
      %v4686 = vmul.f32 1.0, %v4685
      %v4687 = vrcp.pop %v4671
      %v4688 = vmul.f32 1.0, %v4687
      %v4689 = vrcp.pop %v4672
      %v4690 = vmul.f32 1.0, %v4689
      %v4691 = vrcp.pop %v4673
      %v4692 = vmul.f32 1.0, %v4691
      %v4693 = vrcp.pop %v4674
      %v4694 = vmul.f32 1.0, %v4693
      %v4695 = vrcp.pop %v4675
      %v4696 = vmul.f32 1.0, %v4695
      %v4697 = vrcp.pop %v4676
      %v4698 = vmul.f32 1.0, %v4697
      %v4699 = vrcp.pop %v4677
      %v4700 = vmul.f32 1.0, %v4699
      %v4701 = vrcp.pop %v4678
      %v4702 = vmul.f32 1.0, %v4701
      %v4703 = vrcp.pop %v4679
      %v4704 = vmul.f32 1.0, %v4703
      %v4705 = vrcp.pop %v4680
      %v4706 = vmul.f32 1.0, %v4705
      %v4707 = vrcp.pop %v4681
      %v4708 = vmul.f32 1.0, %v4707
      %v4709 = vrcp.pop %v4682
      %v4710 = vmul.f32 1.0, %v4709
      %v4711 = vpack.c.bf16 %v4698, %v4684
      %v4712 = vpack.c.bf16 %v4700, %v4686
      %v4713 = vpack.c.bf16 %v4702, %v4688
      %v4714 = vpack.c.bf16 %v4704, %v4690
      %v4715 = vpack.c.bf16 %v4706, %v4692
      %v4716 = vpack.c.bf16 %v4708, %v4694
      %v4717 = vpack.c.bf16 %v4710, %v4696
      %v4725 = vunpack.c.l.b16 %v4711
      %v4726 = vunpack.c.l.b16 %v4712
      %v4727 = vunpack.c.l.b16 %v4713
      %v4728 = vunpack.c.l.b16 %v4714
      %v4729 = vunpack.c.l.b16 %v4715
      %v4730 = vunpack.c.l.b16 %v4716
      %v4731 = vunpack.c.l.b16 %v4717
      %v4732 = vunpack.c.h.b16 %v4711
      %v4733 = vunpack.c.h.b16 %v4712
      %v4734 = vunpack.c.h.b16 %v4713
      %v4735 = vunpack.c.h.b16 %v4714
      %v4736 = vunpack.c.h.b16 %v4715
      %v4737 = vunpack.c.h.b16 %v4716
      %v4738 = vunpack.c.h.b16 %v4717
      %v4739 = vpack.c.b16 %v4726, %v4725
      %v4740 = vpack.c.b16 %v4728, %v4727
      %v4741 = vpack.c.b16 %v4730, %v4729
      %v4742 = vpack.c.b16 %v4731, %v4731
      %v4743 = vpack.c.b16 %v4733, %v4732
      %v4744 = vpack.c.b16 %v4735, %v4734
      %v4745 = vpack.c.b16 %v4737, %v4736
      %v4746 = vpack.c.b16 %v4738, %v4738
      %4755 = vst [vmem:[%s424] sm:$0xff] %v4739
      %4756 = vst [vmem:[%s424 + $0x8] sm:$0xff] %v4740
      %4757 = vst [vmem:[%s424 + $0x10] sm:$0xff] %v4741
      %vm4758 = vcmask 125952
      %4759 = vst.msk [vmem:[%s424 + $0x18] sm:$0xf] %vm4758, %v4742
      %4760 = vst [vmem:[%s424 + $0x1c] sm:$0xff] %v4743
      %4761 = vst [vmem:[%s424 + $0x24] sm:$0xff] %v4744
      %4762 = vst [vmem:[%s424 + $0x2c] sm:$0xff] %v4745
      %4763 = vst.msk [vmem:[%s424 + $0x34] sm:$0xf] %vm4758, %v4746
      %4764 = vst [vmem:[%s431] sm:$0xff] %v2511
      %4765 = vst [vmem:[%s431 + $0x8] sm:$0xff] %v2513
      %4766 = vst [vmem:[%s431 + $0x10] sm:$0xff] %v2515
      %4767 = vst [vmem:[%s431 + $0x18] sm:$0xff] %v2517
      %s4768 = smul.u32 2, %s23
      %p4769 = scmp.lt.s32.totalorder %s4768, 3
      %s4770 = scalar_select %p4769, %s4768, 3
      %s4771 = smul.addr %s4770, 7
      %s4772 = smul.addr %s4771, 4
      %s4773 = scalar_lea.vmem %s10, %s4772
      %s4774 = smul.u32 2, %s23
      %p4775 = scmp.lt.s32.totalorder %s4774, 3
      %s4776 = scalar_select %p4775, %s4774, 3
      %s4777 = smul.addr %s4776, 2
      %s4778 = smul.addr %s4777, 8
      %s4779 = scalar_lea.vmem %s11, %s4778
      // Predicated region
      $region61: #{vae_forward.1} parent=59 // pred_check
        %p4780 = pneg %p261
      $region62: #{vae_forward.1} parent=59 // pred_check_branch
        %4782 = sbr.rel (%p4780) target = $region64
      $region63: #{vae_forward.1} parent=59 // pred_region
        %s4783 = smul.u32 2, %s23
      $region64: #{vae_forward.1} parent=59 // pred_fallthru
        _
      // Predicated region
      $region65: #{vae_forward.1} parent=59 // pred_check
        %p4784 = pneg %p287
      $region66: #{vae_forward.1} parent=59 // pred_check_branch
        %4786 = sbr.rel (%p4784) target = $region68
      $region67: #{vae_forward.1} parent=59 // pred_region
        %s4787 = smul.u32 2, %s23
      $region68: #{vae_forward.1} parent=59 // pred_fallthru
        _
    $region60: #{vae_forward.1} parent=5 // pred_fallthru
      _
    %p4788 = scmp.le.s32.totalorder 2, %s18
    // Predicated region
    $region69: #{vae_forward.1} parent=5 // pred_check
      %p4789 = pneg %p4788
    $region70: #{vae_forward.1} parent=5 // pred_check_branch
      %4791 = sbr.rel (%p4789) target = $region72
    $region71: #{vae_forward.1} parent=5 // pred_region
      %s4792 = ssub.s32 %s18, 2
      // Predicated region
      $region73: #{vae_forward.1} parent=71 // pred_check
        %p4793 = pneg %p267
      $region74: #{vae_forward.1} parent=71 // pred_check_branch
        %4795 = sbr.rel (%p4793) target = $region76
      $region75: #{vae_forward.1} parent=71 // pred_region
        %s4796 = smul.u32 2, %s24
        %p4797 = scmp.lt.s32.totalorder %s4796, 3
        %s4798 = scalar_select %p4797, %s4796, 3
        %s4799 = smul.addr %s4798, 7
        %s4800 = smul.addr %s4799, 4
        %s4801 = scalar_lea.vmem %s10, %s4800
      $region76: #{vae_forward.1} parent=71 // pred_fallthru
        _
      // Predicated region
      $region77: #{vae_forward.1} parent=71 // pred_check
        %p4802 = pneg %p293
      $region78: #{vae_forward.1} parent=71 // pred_check_branch
        %4804 = sbr.rel (%p4802) target = $region80
      $region79: #{vae_forward.1} parent=71 // pred_region
        %s4805 = smul.u32 2, %s24
        %p4806 = scmp.lt.s32.totalorder %s4805, 3
        %s4807 = scalar_select %p4806, %s4805, 3
        %s4808 = smul.addr %s4807, 2
        %s4809 = smul.addr %s4808, 8
        %s4810 = scalar_lea.vmem %s11, %s4809
      $region80: #{vae_forward.1} parent=71 // pred_fallthru
        _
    $region72: #{vae_forward.1} parent=5 // pred_fallthru
      _
  $region6: #{vae_forward.1} parent=0 // loop_footer
    %s22 = sadd.s32 1, %s18
  $region7: #{vae_forward.1} parent=0 // loop_footer_branch
    %17 = sbr.rel target = $region3
  $region8: #{vae_forward.1} parent=0 // loop_exit
    _

</llo_original>
